<compile_context>
chip_gen: v7x
topology: tpu7x:2x2x1
jax: 0.10.0
libtpu: 0.0.40
codegen_flags: <defaults>
</compile_context>

<pallas_src>
import functools

import jax
import jax.numpy as jnp
import numpy as np
from jax.experimental import pallas as pl
from jax.experimental.pallas import tpu as pltpu


# ----------------------------------------------------------------------------
# In-kernel helpers (traced inside the kernels; f32 elementwise, bf16 matmuls)
# ----------------------------------------------------------------------------
def _layernorm(x, g, b, eps):
    mean = jnp.mean(x, axis=-1, keepdims=True)
    var = jnp.mean((x - mean) ** 2, axis=-1, keepdims=True)
    return (x - mean) * jax.lax.rsqrt(var + eps) * g + b


def _window_attention(xn, bias, wqkv_ref, bqkv_ref, wproj_ref, bproj_ref,
                      num_head, Wb, N, C):
    """xn: (Wb*N, C) normalized tokens. Returns proj output (Wb*N, C) in f32.

    The attention scale is pre-folded into the q columns of wqkv/bqkv.
    """
    hd = C // num_head

    # fused QKV projection: (M, C) @ (C, 3C), bf16 operands, f32 accumulation
    qkv = jnp.dot(xn.astype(jnp.bfloat16), wqkv_ref[...],
                  preferred_element_type=jnp.float32) + bqkv_ref[0]      # (M, 3C)

    # head/window-batched layout (num_head*Wb, N, hd); batch index = h*Wb + w.
    # TODO(synk): replace with a multi-batch einsum once Mosaic dot_general
    # supports more than one (leading) batch dimension.
    def split_heads(base):
        parts = [qkv[:, base + h * hd: base + (h + 1) * hd].reshape(Wb, N, hd)
                 for h in range(num_head)]
        return jnp.concatenate(parts, axis=0)

    q = split_heads(0).astype(jnp.bfloat16)          # scale already folded in
    k = split_heads(C).astype(jnp.bfloat16)
    v = split_heads(2 * C).astype(jnp.bfloat16)

    # scores: contract last dims directly (no explicit k.T), f32 accumulation
    s = jnp.einsum('bnd,bmd->bnm', q, k,
                   preferred_element_type=jnp.float32)                   # (nh*Wb,N,N)
    s = s.reshape(num_head, Wb, N, N) + bias[:, None]                    # rel-pos bias
    s = s - jnp.max(s, axis=-1, keepdims=True)
    p = jnp.exp(s)
    p = p * pl.reciprocal(jnp.sum(p, axis=-1, keepdims=True), approx=True)
    p = p.reshape(num_head * Wb, N, N).astype(jnp.bfloat16)

    o = jnp.einsum('bnm,bmd->bnd', p, v,
                   preferred_element_type=jnp.float32)                   # (nh*Wb,N,hd)
    o = o.reshape(num_head, Wb * N, hd)
    o = jnp.concatenate([o[h] for h in range(num_head)], axis=-1)        # (M, C)

    return jnp.dot(o.astype(jnp.bfloat16), wproj_ref[...],
                   preferred_element_type=jnp.float32) + bproj_ref[0]    # (M, C)


def _mlp(x1, g2, b2, w1_ref, bb1_ref, w2_ref, bb2_ref, eps):
    """x1: (M, C) f32. LN2 + fc1 + exact GELU + fc2; returns (M, hidden->C) f32."""
    xn = _layernorm(x1, g2, b2, eps)
    h = jnp.dot(xn.astype(jnp.bfloat16), w1_ref[...],
                preferred_element_type=jnp.float32) + bb1_ref[0]
    # exact (erf) GELU, matching torch.nn.GELU default, in f32
    h = 0.5 * h * (1.0 + jax.lax.erf(h * 0.7071067811865476))
    return jnp.dot(h.astype(jnp.bfloat16), w2_ref[...],
                   preferred_element_type=jnp.float32) + bb2_ref[0]


# ----------------------------------------------------------------------------
# Kernel A (shift_size == 0): fully fused block per window slab.
# grid = ((B*H/ws)//Wb, W/ws); x block = (Wb, ws, ws, C) via strided window DMA.
# ----------------------------------------------------------------------------
def _attn_mlp_kernel(x_ref, bias_ref, g1_ref, b1_ref, wqkv_ref, bqkv_ref,
                     wproj_ref, bproj_ref, g2_ref, b2_ref, w1_ref, bb1_ref,
                     w2_ref, bb2_ref, o_ref, *, num_head, eps):
    xw = x_ref[...]                                  # (Wb, ws, ws, C) f32
    Wb, wsa, wsb, C = xw.shape
    N = wsa * wsb

    x2 = xw.reshape(Wb * N, C)
    xn = _layernorm(x2, g1_ref[0], b1_ref[0], eps)
    attn = _window_attention(xn, bias_ref[...], wqkv_ref, bqkv_ref,
                             wproj_ref, bproj_ref, num_head, Wb, N, C)
    x1 = x2 + attn                                   # residual #1 (f32)
    y = _mlp(x1, g2_ref[0], b2_ref[0], w1_ref, bb1_ref, w2_ref, bb2_ref, eps)
    o_ref[...] = (x1 + y).reshape(Wb, wsa, wsb, C).astype(o_ref.dtype)   # residual #2


# ----------------------------------------------------------------------------
# Kernel B (shift_size > 0): window attention + residual #1 only.
# ----------------------------------------------------------------------------
def _attn_kernel(x_ref, bias_ref, g1_ref, b1_ref, wqkv_ref, bqkv_ref,
                 wproj_ref, bproj_ref, o_ref, *, num_head, eps):
    xw = x_ref[...]                                  # (Wb, ws, ws, C) f32 (shifted)
    Wb, wsa, wsb, C = xw.shape
    N = wsa * wsb

    x2 = xw.reshape(Wb * N, C)
    xn = _layernorm(x2, g1_ref[0], b1_ref[0], eps)
    attn = _window_attention(xn, bias_ref[...], wqkv_ref, bqkv_ref,
                             wproj_ref, bproj_ref, num_head, Wb, N, C)
    # residual #1 on the shifted view; roll(a)+roll(b)=roll(a+b), so the wrapper's
    # un-shift of this sum equals shortcut + un-shifted attention output.
    o_ref[...] = (x2 + attn).reshape(Wb, wsa, wsb, C).astype(o_ref.dtype)


# ----------------------------------------------------------------------------
# Kernel C (shift_size > 0): LN2 + MLP + residual #2, on token-row tiles.
# ----------------------------------------------------------------------------
def _mlp_kernel(x_ref, g2_ref, b2_ref, w1_ref, bb1_ref, w2_ref, bb2_ref, o_ref,
                *, eps):
    x = x_ref[...]                                   # (tm, C) f32
    y = _mlp(x, g2_ref[0], b2_ref[0], w1_ref, bb1_ref, w2_ref, bb2_ref, eps)
    o_ref[...] = (x + y).astype(o_ref.dtype)


# ----------------------------------------------------------------------------
# Tiling / spec helpers
# ----------------------------------------------------------------------------
def _largest_divisor_leq(n, cap):
    cap = max(1, min(n, cap))
    for d in range(cap, 0, -1):
        if n % d == 0:
            return d
    return 1


def _pick_window_batch(num_row_groups, n_col_groups, tokens_per_window, target_tokens):
    """Windows per grid step: keep ~target_tokens tokens/slab, prefer an even grid."""
    cap = min(num_row_groups, max(1, target_tokens // tokens_per_window))
    divisors = [d for d in range(1, cap + 1) if num_row_groups % d == 0]
    best = divisors[-1]
    for d in sorted(divisors, reverse=True):
        steps = (num_row_groups // d) * n_col_groups
        if steps >= 2 and steps % 2 == 0:            # v7x: 2 TCs shard parallel axes
            return d
    return best


def _pick_row_tile(num_rows, cap):
    """Biggest row tile <= cap dividing num_rows; prefer an even number of steps."""
    best = None
    for tm in (1024, 512, 256, 128, 64, 32, 16, 8):
        if tm > cap or num_rows % tm:
            continue
        if best is None:
            best = tm
        steps = num_rows // tm
        if steps >= 2 and steps % 2 == 0:
            return tm
    if best is not None:
        return best
    return _largest_divisor_leq(num_rows, cap)


def _vmem_capacity_bytes():
    default = 64 * 1024 * 1024
    try:
        fn = getattr(pltpu, "get_tpu_info", None)
        if fn is None:
            return default
        info = fn()
        return int(getattr(info, "vmem_capacity_bytes", default))
    except Exception:
        return default


def _const_block_spec(shape, index_map):
    """Grid-invariant operand: single-buffer it when the JAX version supports it."""
    try:
        return pl.BlockSpec(shape, index_map, pipeline_mode=pl.Buffered(1))
    except (TypeError, AttributeError):
        return pl.BlockSpec(shape, index_map)


# ----------------------------------------------------------------------------
# Parameter construction (deterministic, synthetic)
# ----------------------------------------------------------------------------
def init_params(key, dim, window_size, num_head, mlp_ratio=4.0):
    hidden = int(dim * mlp_ratio)
    ks = jax.random.split(key, 8)
    s = 0.02
    return dict(
        ln1_g=jnp.ones((1, dim), jnp.float32),
        ln1_b=jnp.zeros((1, dim), jnp.float32),
        ln2_g=jnp.ones((1, dim), jnp.float32),
        ln2_b=jnp.zeros((1, dim), jnp.float32),
        # linear weights stored as (in, out) so kernels can do x @ W
        w_qkv=s * jax.random.normal(ks[0], (dim, 3 * dim), jnp.float32),
        b_qkv=s * jax.random.normal(ks[1], (1, 3 * dim), jnp.float32),
        w_proj=s * jax.random.normal(ks[2], (dim, dim), jnp.float32),
        b_proj=s * jax.random.normal(ks[3], (1, dim), jnp.float32),
        w_fc1=s * jax.random.normal(ks[4], (dim, hidden), jnp.float32),
        b_fc1=s * jax.random.normal(ks[5], (1, hidden), jnp.float32),
        w_fc2=s * jax.random.normal(ks[6], (hidden, dim), jnp.float32),
        b_fc2=s * jax.random.normal(ks[7], (1, dim), jnp.float32),
        rel_table=0.02 * jax.random.truncated_normal(
            jax.random.fold_in(key, 99), -2.0, 2.0,
            ((2 * window_size - 1) ** 2, num_head), jnp.float32),
    )


def relative_position_bias(table, ws, num_head):
    """Replicates WindowAttention.relative_position_indexs + bias gather."""
    coords = jnp.stack(jnp.meshgrid(jnp.arange(ws), jnp.arange(ws), indexing="ij"))
    cf = coords.reshape(2, -1)                                  # (2, N)
    rel = cf[:, :, None] - cf[:, None, :]                       # (2, N, N)
    rel = rel.transpose(1, 2, 0) + (ws - 1)                     # (N, N, 2)
    idx = rel[..., 0] * (2 * ws - 1) + rel[..., 1]              # (N, N)
    N = ws * ws
    bias = table[idx.reshape(-1)].reshape(N, N, num_head).transpose(2, 0, 1)
    return bias                                                 # (num_head, N, N)


# ----------------------------------------------------------------------------
# Forward wrapper
# ----------------------------------------------------------------------------
def swin_block_forward(x, params, *, H, W, window_size, num_head, shift_size=0,
                       attn_mask=None):
    del attn_mask  # faithfully ignored (the module's WindowAttention ignores it)
    B, L, C = x.shape
    ws = window_size
    assert L == H * W, "L != H * W"
    assert H % ws == 0 and W % ws == 0, "example path requires no padding"
    assert C % num_head == 0
    assert 0 <= shift_size < ws
    N = ws * ws
    nH, nW = H // ws, W // ws
    hd = C // num_head
    scale = hd ** -0.5
    hidden = params["w_fc1"].shape[1]
    eps = 1e-5

    # Fold the attention scale into the q columns of the QKV projection (free),
    # then make bf16 copies of the matmul weights (biases / LN params stay f32).
    w_qkv = params["w_qkv"].at[:, :C].multiply(scale)
    b_qkv = params["b_qkv"].at[:, :C].multiply(scale)
    wqkv = w_qkv.astype(jnp.bfloat16)
    wproj = params["w_proj"].astype(jnp.bfloat16)
    wfc1 = params["w_fc1"].astype(jnp.bfloat16)
    wfc2 = params["w_fc2"].astype(jnp.bfloat16)

    bias = relative_position_bias(params["rel_table"], ws, num_head)

    # Generation-aware slab / VMEM budgets:
    #  v5e/v6e (128 MiB VMEM): ~1024-token slabs, 96 MiB scoped limit.
    #  v7x (64 MiB VMEM/TC):   512-token slabs, 44 MiB limit (headroom).
    vmem_cap = _vmem_capacity_bytes()
    if vmem_cap >= 96 * 1024 * 1024:
        target_tokens, tm_cap, vmem_limit = 1024, 1024, 96 * 1024 * 1024
    else:
        target_tokens, tm_cap, vmem_limit = 512, 512, 44 * 1024 * 1024

    # ---- glue: optional cyclic shift; pure reshape into window-grid view ----
    xi = x.reshape(B, H, W, C)
    if shift_size > 0:
        xi = jnp.roll(xi, shift=(-shift_size, -shift_size), axis=(1, 2))
    # (B*nH, ws, nW, ws, C): window = fixed (row-group, col-group) box -> the
    # window gather is a rectangular strided DMA expressed by the BlockSpec.
    x5 = xi.reshape(B * nH, ws, nW, ws, C)

    Wb = _pick_window_batch(B * nH, nW, N, target_tokens)
    grid1 = ((B * nH) // Wb, nW)

    x_spec = pl.BlockSpec((Wb, ws, None, ws, C), lambda g, c: (g, 0, c, 0, 0))
    c2 = lambda shape: _const_block_spec(shape, lambda g, c: (0,) * len(shape))

    attn_in_specs = [
        x_spec,
        c2((num_head, N, N)),
        c2((1, C)), c2((1, C)),
        c2((C, 3 * C)), c2((1, 3 * C)),
        c2((C, C)), c2((1, C)),
    ]
    attn_args = (x5, bias, params["ln1_g"], params["ln1_b"], wqkv, b_qkv,
                 wproj, params["b_proj"])
    cparams = pltpu.CompilerParams(
        dimension_semantics=("parallel", "parallel"),
        vmem_limit_bytes=vmem_limit)

    if shift_size == 0:
        # ---- single fused kernel: attention + MLP, no x1 HBM round trip ----
        out5 = pl.pallas_call(
            functools.partial(_attn_mlp_kernel, num_head=num_head, eps=eps),
            out_shape=jax.ShapeDtypeStruct((B * nH, ws, nW, ws, C), x.dtype),
            grid=grid1,
            in_specs=attn_in_specs + [
                c2((1, C)), c2((1, C)),
                c2((C, hidden)), c2((1, hidden)),
                c2((hidden, C)), c2((1, C)),
            ],
            out_specs=pl.BlockSpec((Wb, ws, None, ws, C),
                                   lambda g, c: (g, 0, c, 0, 0)),
            compiler_params=cparams,
        )(*attn_args, params["ln2_g"], params["ln2_b"],
          wfc1, params["b_fc1"], wfc2, params["b_fc2"])
        return out5.reshape(B, L, C)

    # ---- shift_size > 0: attention kernel, un-shift in XLA, MLP kernel ------
    x1_5 = pl.pallas_call(
        functools.partial(_attn_kernel, num_head=num_head, eps=eps),
        out_shape=jax.ShapeDtypeStruct((B * nH, ws, nW, ws, C), x.dtype),
        grid=grid1,
        in_specs=attn_in_specs,
        out_specs=pl.BlockSpec((Wb, ws, None, ws, C), lambda g, c: (g, 0, c, 0, 0)),
        compiler_params=cparams,
    )(*attn_args)

    x1i = x1_5.reshape(B, H, W, C)
    x1i = jnp.roll(x1i, shift=(shift_size, shift_size), axis=(1, 2))
    x1 = x1i.reshape(B * L, C)            # already includes the first residual

    M = B * L
    tm = _pick_row_tile(M, tm_cap)
    c1 = lambda shape: _const_block_spec(shape, lambda i: (0,) * len(shape))
    out = pl.pallas_call(
        functools.partial(_mlp_kernel, eps=eps),
        out_shape=jax.ShapeDtypeStruct((M, C), x.dtype),
        grid=(M // tm,),
        in_specs=[
            pl.BlockSpec((tm, C), lambda i: (i, 0)),
            c1((1, C)), c1((1, C)),
            c1((C, hidden)), c1((1, hidden)),
            c1((hidden, C)), c1((1, C)),
        ],
        out_specs=pl.BlockSpec((tm, C), lambda i: (i, 0)),
        compiler_params=pltpu.CompilerParams(
            dimension_semantics=("parallel",),
            vmem_limit_bytes=vmem_limit),
    )(x1, params["ln2_g"], params["ln2_b"], wfc1, params["b_fc1"],
      wfc2, params["b_fc2"])

    return out.reshape(B, L, C)


# ----------------------------------------------------------------------------
# Pure-JAX f32 reference (mirrors the PyTorch forward) for a sanity check
# ----------------------------------------------------------------------------
def swin_block_reference(x, params, *, H, W, window_size, num_head, shift_size=0):
    B, L, C = x.shape
    ws = window_size
    N = ws * ws
    hd = C // num_head
    scale = hd ** -0.5
    eps = 1e-5

    def ln(v, g, b):
        m = jnp.mean(v, axis=-1, keepdims=True)
        va = jnp.mean((v - m) ** 2, axis=-1, keepdims=True)
        return (v - m) / jnp.sqrt(va + eps) * g[0] + b[0]

    shortcut = x
    xi = ln(x, params["ln1_g"], params["ln1_b"]).reshape(B, H, W, C)
    if shift_size > 0:
        xi = jnp.roll(xi, (-shift_size, -shift_size), axis=(1, 2))
    xw = (xi.reshape(B, H // ws, ws, W // ws, ws, C)
            .transpose(0, 1, 3, 2, 4, 5).reshape(-1, N, C))
    qkv = xw @ params["w_qkv"] + params["b_qkv"][0]
    qkv = qkv.reshape(-1, N, 3, num_head, hd).transpose(2, 0, 3, 1, 4)
    q, k, v = qkv[0], qkv[1], qkv[2]
    attn = jnp.einsum("bhnd,bhmd->bhnm", q, k) * scale
    attn = attn + relative_position_bias(params["rel_table"], ws, num_head)[None]
    attn = jax.nn.softmax(attn, axis=-1)
    o = jnp.einsum("bhnm,bhmd->bhnd", attn, v).transpose(0, 2, 1, 3).reshape(-1, N, C)
    o = o @ params["w_proj"] + params["b_proj"][0]
    xr = (o.reshape(B, H // ws, W // ws, ws, ws, C)
           .transpose(0, 1, 3, 2, 4, 5).reshape(B, H, W, C))
    if shift_size > 0:
        xr = jnp.roll(xr, (shift_size, shift_size), axis=(1, 2))
    x1 = shortcut + xr.reshape(B, L, C)
    h = ln(x1, params["ln2_g"], params["ln2_b"]) @ params["w_fc1"] + params["b_fc1"][0]
    h = 0.5 * h * (1.0 + jax.lax.erf(h * 0.7071067811865476))
    return x1 + h @ params["w_fc2"] + params["b_fc2"][0]


if __name__ == "__main__":
    # small but representative shapes: dim=32, window=8, heads=2, H=W=16, B=2
    B, H, W = 2, 16, 16
    dim, window_size, num_head = 32, 8, 2
    shift_size = 0

    key = jax.random.PRNGKey(0)
    kx, kp = jax.random.split(key)
    x = jax.random.normal(kx, (B, H * W, dim), jnp.float32)
    params = init_params(kp, dim, window_size, num_head, mlp_ratio=4.0)

    fwd = jax.jit(functools.partial(
        swin_block_forward, H=H, W=W, window_size=window_size,
        num_head=num_head, shift_size=shift_size))
    out = fwd(x, params)
    jax.block_until_ready(out)

    ref = swin_block_reference(x, params, H=H, W=W, window_size=window_size,
                               num_head=num_head, shift_size=shift_size)
    # bf16 matmul operands (f32 accumulation) + approx softmax reciprocal
    # -> compare with loosened tolerance
    np.testing.assert_allclose(np.asarray(out), np.asarray(ref),
                               rtol=2e-2, atol=2e-2)
    print("KERNEL_OK")
</pallas_src>

<mosaic_0001>
module attributes {stable_mosaic.version = 11 : i64} {
  func.func @_attn_mlp_kernel(%arg0: i32, %arg1: i32, %arg2: memref<4x8x1x8x32xf32, #tpu.memory_space<vmem>>, %arg3: memref<2x64x64xf32, #tpu.memory_space<vmem>>, %arg4: memref<1x32xf32, #tpu.memory_space<vmem>>, %arg5: memref<1x32xf32, #tpu.memory_space<vmem>>, %arg6: memref<32x96xbf16, #tpu.memory_space<vmem>>, %arg7: memref<1x96xf32, #tpu.memory_space<vmem>>, %arg8: memref<32x32xbf16, #tpu.memory_space<vmem>>, %arg9: memref<1x32xf32, #tpu.memory_space<vmem>>, %arg10: memref<1x32xf32, #tpu.memory_space<vmem>>, %arg11: memref<1x32xf32, #tpu.memory_space<vmem>>, %arg12: memref<32x128xbf16, #tpu.memory_space<vmem>>, %arg13: memref<1x128xf32, #tpu.memory_space<vmem>>, %arg14: memref<128x32xbf16, #tpu.memory_space<vmem>>, %arg15: memref<1x32xf32, #tpu.memory_space<vmem>>, %arg16: memref<4x8x1x8x32xf32, #tpu.memory_space<vmem>>) attributes {dimension_semantics = [#tpu.dimension_semantics<parallel>, #tpu.dimension_semantics<parallel>], iteration_bounds = array<i64: 1, 2>, scalar_prefetch = 0 : i64, scratch_operands = 0 : i64, tpu.core_type = #tpu.core_type<tc>, window_params = [{transform_indices = @transform_0, window_bounds = array<i64: 4, 8, 1, 8, 32>}, {pipeline_mode = #tpu.pipeline_mode<synchronous>, transform_indices = @transform_1, window_bounds = array<i64: 2, 64, 64>}, {pipeline_mode = #tpu.pipeline_mode<synchronous>, transform_indices = @transform_2, window_bounds = array<i64: 1, 32>}, {pipeline_mode = #tpu.pipeline_mode<synchronous>, transform_indices = @transform_3, window_bounds = array<i64: 1, 32>}, {pipeline_mode = #tpu.pipeline_mode<synchronous>, transform_indices = @transform_4, window_bounds = array<i64: 32, 96>}, {pipeline_mode = #tpu.pipeline_mode<synchronous>, transform_indices = @transform_5, window_bounds = array<i64: 1, 96>}, {pipeline_mode = #tpu.pipeline_mode<synchronous>, transform_indices = @transform_6, window_bounds = array<i64: 32, 32>}, {pipeline_mode = #tpu.pipeline_mode<synchronous>, transform_indices = @transform_7, window_bounds = array<i64: 1, 32>}, {pipeline_mode = #tpu.pipeline_mode<synchronous>, transform_indices = @transform_8, window_bounds = array<i64: 1, 32>}, {pipeline_mode = #tpu.pipeline_mode<synchronous>, transform_indices = @transform_9, window_bounds = array<i64: 1, 32>}, {pipeline_mode = #tpu.pipeline_mode<synchronous>, transform_indices = @transform_10, window_bounds = array<i64: 32, 128>}, {pipeline_mode = #tpu.pipeline_mode<synchronous>, transform_indices = @transform_11, window_bounds = array<i64: 1, 128>}, {pipeline_mode = #tpu.pipeline_mode<synchronous>, transform_indices = @transform_12, window_bounds = array<i64: 128, 32>}, {pipeline_mode = #tpu.pipeline_mode<synchronous>, transform_indices = @transform_13, window_bounds = array<i64: 1, 32>}, {transform_indices = @transform_14, window_bounds = array<i64: 4, 8, 1, 8, 32>}]} {
    %c0 = arith.constant 0 : index
    %c0_0 = arith.constant 0 : index
    %c0_1 = arith.constant 0 : index
    %c0_2 = arith.constant 0 : index
    %c0_3 = arith.constant 0 : index
    %0 = vector.load %arg2[%c0, %c0_0, %c0_1, %c0_2, %c0_3] : memref<4x8x1x8x32xf32, #tpu.memory_space<vmem>>, vector<4x8x1x8x32xf32>
    %1 = vector.shape_cast %0 : vector<4x8x1x8x32xf32> to vector<4x8x8x32xf32>
    %2 = vector.shape_cast %1 : vector<4x8x8x32xf32> to vector<256x32xf32>
    %c0_4 = arith.constant 0 : index
    %c0_5 = arith.constant 0 : index
    %3 = vector.load %arg4[%c0_4, %c0_5] : memref<1x32xf32, #tpu.memory_space<vmem>>, vector<1x32xf32>
    %4 = vector.shape_cast %3 : vector<1x32xf32> to vector<32xf32>
    %c0_6 = arith.constant 0 : index
    %c0_7 = arith.constant 0 : index
    %5 = vector.load %arg5[%c0_6, %c0_7] : memref<1x32xf32, #tpu.memory_space<vmem>>, vector<1x32xf32>
    %6 = vector.shape_cast %5 : vector<1x32xf32> to vector<32xf32>
    %cst = arith.constant dense<0.000000e+00> : vector<256xf32>
    %7 = vector.multi_reduction <add>, %2, %cst [1] : vector<256x32xf32> to vector<256xf32>
    %8 = vector.shape_cast %7 : vector<256xf32> to vector<256x1xf32>
    %cst_8 = arith.constant 3.200000e+01 : f32
    %9 = vector.broadcast %cst_8 : f32 to vector<256x1xf32>
    %10 = arith.divf %8, %9 : vector<256x1xf32>
    %11 = vector.broadcast %10 : vector<256x1xf32> to vector<256x32xf32>
    %12 = arith.subf %2, %11 : vector<256x32xf32>
    %13 = arith.mulf %12, %12 : vector<256x32xf32>
    %cst_9 = arith.constant dense<0.000000e+00> : vector<256xf32>
    %14 = vector.multi_reduction <add>, %13, %cst_9 [1] : vector<256x32xf32> to vector<256xf32>
    %15 = vector.shape_cast %14 : vector<256xf32> to vector<256x1xf32>
    %cst_10 = arith.constant 3.200000e+01 : f32
    %16 = vector.broadcast %cst_10 : f32 to vector<256x1xf32>
    %17 = arith.divf %15, %16 : vector<256x1xf32>
    %18 = vector.broadcast %10 : vector<256x1xf32> to vector<256x32xf32>
    %19 = arith.subf %2, %18 : vector<256x32xf32>
    %cst_11 = arith.constant 9.99999974E-6 : f32
    %20 = vector.broadcast %cst_11 : f32 to vector<256x1xf32>
    %21 = arith.addf %17, %20 : vector<256x1xf32>
    %22 = math.rsqrt %21 : vector<256x1xf32>
    %23 = vector.broadcast %22 : vector<256x1xf32> to vector<256x32xf32>
    %24 = arith.mulf %19, %23 : vector<256x32xf32>
    %25 = vector.shape_cast %4 : vector<32xf32> to vector<1x32xf32>
    %26 = vector.broadcast %25 : vector<1x32xf32> to vector<256x32xf32>
    %27 = arith.mulf %24, %26 : vector<256x32xf32>
    %28 = vector.shape_cast %6 : vector<32xf32> to vector<1x32xf32>
    %29 = vector.broadcast %28 : vector<1x32xf32> to vector<256x32xf32>
    %30 = arith.addf %27, %29 : vector<256x32xf32>
    %c0_12 = arith.constant 0 : index
    %c0_13 = arith.constant 0 : index
    %c0_14 = arith.constant 0 : index
    %31 = vector.load %arg3[%c0_12, %c0_13, %c0_14] : memref<2x64x64xf32, #tpu.memory_space<vmem>>, vector<2x64x64xf32>
    %32 = arith.truncf %30 : vector<256x32xf32> to vector<256x32xbf16>
    %c0_15 = arith.constant 0 : index
    %c0_16 = arith.constant 0 : index
    %33 = vector.load %arg6[%c0_15, %c0_16] : memref<32x96xbf16, #tpu.memory_space<vmem>>, vector<32x96xbf16>
    %cst_17 = arith.constant dense<0.000000e+00> : vector<256x96xf32>
    %34 = tpu.matmul %32, %33, %cst_17 {dimension_numbers = #tpu.dot_dimension_numbers<[1], [0], [0], [1], [0, 0, 1, 1], [], []>} : vector<256x32xbf16>, vector<32x96xbf16>, vector<256x96xf32> -> vector<256x96xf32>
    %c0_18 = arith.constant 0 : index
    %c0_19 = arith.constant 0 : index
    %35 = vector.load %arg7[%c0_18, %c0_19] : memref<1x96xf32, #tpu.memory_space<vmem>>, vector<1x96xf32>
    %36 = vector.shape_cast %35 : vector<1x96xf32> to vector<96xf32>
    %37 = vector.shape_cast %36 : vector<96xf32> to vector<1x96xf32>
    %38 = vector.broadcast %37 : vector<1x96xf32> to vector<256x96xf32>
    %39 = arith.addf %34, %38 : vector<256x96xf32>
    %40 = vector.extract_strided_slice %39 {offsets = [0, 0], sizes = [256, 16], strides = [1, 1]} : vector<256x96xf32> to vector<256x16xf32>
    %41 = vector.shape_cast %40 : vector<256x16xf32> to vector<4x64x16xf32>
    %42 = vector.extract_strided_slice %39 {offsets = [0, 16], sizes = [256, 16], strides = [1, 1]} : vector<256x96xf32> to vector<256x16xf32>
    %43 = vector.shape_cast %42 : vector<256x16xf32> to vector<4x64x16xf32>
    %44 = tpu.concatenate %41, %43 in 0 : vector<4x64x16xf32>, vector<4x64x16xf32> -> vector<8x64x16xf32>
    %45 = arith.truncf %44 : vector<8x64x16xf32> to vector<8x64x16xbf16>
    %46 = vector.extract_strided_slice %39 {offsets = [0, 32], sizes = [256, 16], strides = [1, 1]} : vector<256x96xf32> to vector<256x16xf32>
    %47 = vector.shape_cast %46 : vector<256x16xf32> to vector<4x64x16xf32>
    %48 = vector.extract_strided_slice %39 {offsets = [0, 48], sizes = [256, 16], strides = [1, 1]} : vector<256x96xf32> to vector<256x16xf32>
    %49 = vector.shape_cast %48 : vector<256x16xf32> to vector<4x64x16xf32>
    %50 = tpu.concatenate %47, %49 in 0 : vector<4x64x16xf32>, vector<4x64x16xf32> -> vector<8x64x16xf32>
    %51 = arith.truncf %50 : vector<8x64x16xf32> to vector<8x64x16xbf16>
    %52 = vector.extract_strided_slice %39 {offsets = [0, 64], sizes = [256, 16], strides = [1, 1]} : vector<256x96xf32> to vector<256x16xf32>
    %53 = vector.shape_cast %52 : vector<256x16xf32> to vector<4x64x16xf32>
    %54 = vector.extract_strided_slice %39 {offsets = [0, 80], sizes = [256, 16], strides = [1, 1]} : vector<256x96xf32> to vector<256x16xf32>
    %55 = vector.shape_cast %54 : vector<256x16xf32> to vector<4x64x16xf32>
    %56 = tpu.concatenate %53, %55 in 0 : vector<4x64x16xf32>, vector<4x64x16xf32> -> vector<8x64x16xf32>
    %57 = arith.truncf %56 : vector<8x64x16xf32> to vector<8x64x16xbf16>
    "tpu.trace_start"() <{level = 10 : i32, message = "bnd,bmd->bnm"}> : () -> ()
    %cst_20 = arith.constant dense<0.000000e+00> : vector<8x64x64xf32>
    %58 = tpu.matmul %45, %51, %cst_20 {dimension_numbers = #tpu.dot_dimension_numbers<[2], [2], [1], [1], [0, 0, 0, 1, 1, 1], [0], [0]>} : vector<8x64x16xbf16>, vector<8x64x16xbf16>, vector<8x64x64xf32> -> vector<8x64x64xf32>
    "tpu.trace_stop"() : () -> ()
    %59 = vector.shape_cast %58 : vector<8x64x64xf32> to vector<2x4x64x64xf32>
    %60 = vector.shape_cast %31 : vector<2x64x64xf32> to vector<2x1x64x64xf32>
    %61 = vector.broadcast %60 : vector<2x1x64x64xf32> to vector<2x4x64x64xf32>
    %62 = arith.addf %59, %61 : vector<2x4x64x64xf32>
    %cst_21 = arith.constant dense<0xFF800000> : vector<2x4x64xf32>
    %63 = vector.multi_reduction <maximumf>, %62, %cst_21 [3] : vector<2x4x64x64xf32> to vector<2x4x64xf32>
    %64 = vector.shape_cast %63 : vector<2x4x64xf32> to vector<2x4x64x1xf32>
    %65 = vector.broadcast %64 : vector<2x4x64x1xf32> to vector<2x4x64x64xf32>
    %66 = arith.subf %62, %65 : vector<2x4x64x64xf32>
    %67 = math.exp %66 : vector<2x4x64x64xf32>
    %cst_22 = arith.constant dense<0.000000e+00> : vector<2x4x64xf32>
    %68 = vector.multi_reduction <add>, %67, %cst_22 [3] : vector<2x4x64x64xf32> to vector<2x4x64xf32>
    %69 = vector.shape_cast %68 : vector<2x4x64xf32> to vector<2x4x64x1xf32>
    %70 = tpu.reciprocal %69 {approx = true} : vector<2x4x64x1xf32> -> vector<2x4x64x1xf32>
    %71 = vector.broadcast %70 : vector<2x4x64x1xf32> to vector<2x4x64x64xf32>
    %72 = arith.mulf %67, %71 : vector<2x4x64x64xf32>
    %73 = vector.shape_cast %72 : vector<2x4x64x64xf32> to vector<8x64x64xf32>
    %74 = arith.truncf %73 : vector<8x64x64xf32> to vector<8x64x64xbf16>
    "tpu.trace_start"() <{level = 10 : i32, message = "bnm,bmd->bnd"}> : () -> ()
    %cst_23 = arith.constant dense<0.000000e+00> : vector<8x64x16xf32>
    %75 = tpu.matmul %74, %57, %cst_23 {dimension_numbers = #tpu.dot_dimension_numbers<[2], [1], [1], [2], [0, 0, 0, 1, 1, 2], [0], [0]>} : vector<8x64x64xbf16>, vector<8x64x16xbf16>, vector<8x64x16xf32> -> vector<8x64x16xf32>
    "tpu.trace_stop"() : () -> ()
    %76 = vector.shape_cast %75 : vector<8x64x16xf32> to vector<2x256x16xf32>
    %77 = vector.extract_strided_slice %76 {offsets = [0, 0, 0], sizes = [1, 256, 16], strides = [1, 1, 1]} : vector<2x256x16xf32> to vector<1x256x16xf32>
    %78 = vector.shape_cast %77 : vector<1x256x16xf32> to vector<256x16xf32>
    %79 = vector.extract_strided_slice %76 {offsets = [1, 0, 0], sizes = [1, 256, 16], strides = [1, 1, 1]} : vector<2x256x16xf32> to vector<1x256x16xf32>
    %80 = vector.shape_cast %79 : vector<1x256x16xf32> to vector<256x16xf32>
    %81 = tpu.concatenate %78, %80 in 1 : vector<256x16xf32>, vector<256x16xf32> -> vector<256x32xf32>
    %82 = arith.truncf %81 : vector<256x32xf32> to vector<256x32xbf16>
    %c0_24 = arith.constant 0 : index
    %c0_25 = arith.constant 0 : index
    %83 = vector.load %arg8[%c0_24, %c0_25] : memref<32x32xbf16, #tpu.memory_space<vmem>>, vector<32x32xbf16>
    %cst_26 = arith.constant dense<0.000000e+00> : vector<256x32xf32>
    %84 = tpu.matmul %82, %83, %cst_26 {dimension_numbers = #tpu.dot_dimension_numbers<[1], [0], [0], [1], [0, 0, 1, 1], [], []>} : vector<256x32xbf16>, vector<32x32xbf16>, vector<256x32xf32> -> vector<256x32xf32>
    %c0_27 = arith.constant 0 : index
    %c0_28 = arith.constant 0 : index
    %85 = vector.load %arg9[%c0_27, %c0_28] : memref<1x32xf32, #tpu.memory_space<vmem>>, vector<1x32xf32>
    %86 = vector.shape_cast %85 : vector<1x32xf32> to vector<32xf32>
    %87 = vector.shape_cast %86 : vector<32xf32> to vector<1x32xf32>
    %88 = vector.broadcast %87 : vector<1x32xf32> to vector<256x32xf32>
    %89 = arith.addf %84, %88 : vector<256x32xf32>
    %90 = arith.addf %2, %89 : vector<256x32xf32>
    %c0_29 = arith.constant 0 : index
    %c0_30 = arith.constant 0 : index
    %91 = vector.load %arg10[%c0_29, %c0_30] : memref<1x32xf32, #tpu.memory_space<vmem>>, vector<1x32xf32>
    %92 = vector.shape_cast %91 : vector<1x32xf32> to vector<32xf32>
    %c0_31 = arith.constant 0 : index
    %c0_32 = arith.constant 0 : index
    %93 = vector.load %arg11[%c0_31, %c0_32] : memref<1x32xf32, #tpu.memory_space<vmem>>, vector<1x32xf32>
    %94 = vector.shape_cast %93 : vector<1x32xf32> to vector<32xf32>
    %cst_33 = arith.constant dense<0.000000e+00> : vector<256xf32>
    %95 = vector.multi_reduction <add>, %90, %cst_33 [1] : vector<256x32xf32> to vector<256xf32>
    %96 = vector.shape_cast %95 : vector<256xf32> to vector<256x1xf32>
    %cst_34 = arith.constant 3.200000e+01 : f32
    %97 = vector.broadcast %cst_34 : f32 to vector<256x1xf32>
    %98 = arith.divf %96, %97 : vector<256x1xf32>
    %99 = vector.broadcast %98 : vector<256x1xf32> to vector<256x32xf32>
    %100 = arith.subf %90, %99 : vector<256x32xf32>
    %101 = arith.mulf %100, %100 : vector<256x32xf32>
    %cst_35 = arith.constant dense<0.000000e+00> : vector<256xf32>
    %102 = vector.multi_reduction <add>, %101, %cst_35 [1] : vector<256x32xf32> to vector<256xf32>
    %103 = vector.shape_cast %102 : vector<256xf32> to vector<256x1xf32>
    %cst_36 = arith.constant 3.200000e+01 : f32
    %104 = vector.broadcast %cst_36 : f32 to vector<256x1xf32>
    %105 = arith.divf %103, %104 : vector<256x1xf32>
    %106 = vector.broadcast %98 : vector<256x1xf32> to vector<256x32xf32>
    %107 = arith.subf %90, %106 : vector<256x32xf32>
    %cst_37 = arith.constant 9.99999974E-6 : f32
    %108 = vector.broadcast %cst_37 : f32 to vector<256x1xf32>
    %109 = arith.addf %105, %108 : vector<256x1xf32>
    %110 = math.rsqrt %109 : vector<256x1xf32>
    %111 = vector.broadcast %110 : vector<256x1xf32> to vector<256x32xf32>
    %112 = arith.mulf %107, %111 : vector<256x32xf32>
    %113 = vector.shape_cast %92 : vector<32xf32> to vector<1x32xf32>
    %114 = vector.broadcast %113 : vector<1x32xf32> to vector<256x32xf32>
    %115 = arith.mulf %112, %114 : vector<256x32xf32>
    %116 = vector.shape_cast %94 : vector<32xf32> to vector<1x32xf32>
    %117 = vector.broadcast %116 : vector<1x32xf32> to vector<256x32xf32>
    %118 = arith.addf %115, %117 : vector<256x32xf32>
    %119 = arith.truncf %118 : vector<256x32xf32> to vector<256x32xbf16>
    %c0_38 = arith.constant 0 : index
    %c0_39 = arith.constant 0 : index
    %120 = vector.load %arg12[%c0_38, %c0_39] : memref<32x128xbf16, #tpu.memory_space<vmem>>, vector<32x128xbf16>
    %cst_40 = arith.constant dense<0.000000e+00> : vector<256x128xf32>
    %121 = tpu.matmul %119, %120, %cst_40 {dimension_numbers = #tpu.dot_dimension_numbers<[1], [0], [0], [1], [0, 0, 1, 1], [], []>} : vector<256x32xbf16>, vector<32x128xbf16>, vector<256x128xf32> -> vector<256x128xf32>
    %c0_41 = arith.constant 0 : index
    %c0_42 = arith.constant 0 : index
    %122 = vector.load %arg13[%c0_41, %c0_42] : memref<1x128xf32, #tpu.memory_space<vmem>>, vector<1x128xf32>
    %123 = vector.shape_cast %122 : vector<1x128xf32> to vector<128xf32>
    %124 = vector.shape_cast %123 : vector<128xf32> to vector<1x128xf32>
    %125 = vector.broadcast %124 : vector<1x128xf32> to vector<256x128xf32>
    %126 = arith.addf %121, %125 : vector<256x128xf32>
    %cst_43 = arith.constant 5.000000e-01 : f32
    %127 = vector.broadcast %cst_43 : f32 to vector<256x128xf32>
    %128 = arith.mulf %127, %126 : vector<256x128xf32>
    %cst_44 = arith.constant 0.707106769 : f32
    %129 = vector.broadcast %cst_44 : f32 to vector<256x128xf32>
    %130 = arith.mulf %126, %129 : vector<256x128xf32>
    %131 = math.erf %130 : vector<256x128xf32>
    %cst_45 = arith.constant 1.000000e+00 : f32
    %132 = vector.broadcast %cst_45 : f32 to vector<256x128xf32>
    %133 = arith.addf %132, %131 : vector<256x128xf32>
    %134 = arith.mulf %128, %133 : vector<256x128xf32>
    %135 = arith.truncf %134 : vector<256x128xf32> to vector<256x128xbf16>
    %c0_46 = arith.constant 0 : index
    %c0_47 = arith.constant 0 : index
    %136 = vector.load %arg14[%c0_46, %c0_47] : memref<128x32xbf16, #tpu.memory_space<vmem>>, vector<128x32xbf16>
    %cst_48 = arith.constant dense<0.000000e+00> : vector<256x32xf32>
    %137 = tpu.matmul %135, %136, %cst_48 {dimension_numbers = #tpu.dot_dimension_numbers<[1], [0], [0], [1], [0, 0, 1, 1], [], []>} : vector<256x128xbf16>, vector<128x32xbf16>, vector<256x32xf32> -> vector<256x32xf32>
    %c0_49 = arith.constant 0 : index
    %c0_50 = arith.constant 0 : index
    %138 = vector.load %arg15[%c0_49, %c0_50] : memref<1x32xf32, #tpu.memory_space<vmem>>, vector<1x32xf32>
    %139 = vector.shape_cast %138 : vector<1x32xf32> to vector<32xf32>
    %140 = vector.shape_cast %139 : vector<32xf32> to vector<1x32xf32>
    %141 = vector.broadcast %140 : vector<1x32xf32> to vector<256x32xf32>
    %142 = arith.addf %137, %141 : vector<256x32xf32>
    %143 = arith.addf %90, %142 : vector<256x32xf32>
    %144 = vector.shape_cast %143 : vector<256x32xf32> to vector<4x8x8x32xf32>
    %c0_51 = arith.constant 0 : index
    %c0_52 = arith.constant 0 : index
    %c0_53 = arith.constant 0 : index
    %c0_54 = arith.constant 0 : index
    %c0_55 = arith.constant 0 : index
    %145 = vector.load %arg16[%c0_51, %c0_52, %c0_53, %c0_54, %c0_55] : memref<4x8x1x8x32xf32, #tpu.memory_space<vmem>>, vector<4x8x1x8x32xf32>
    %146 = vector.shape_cast %145 : vector<4x8x1x8x32xf32> to vector<4x8x8x32xf32>
    %147 = vector.shape_cast %144 : vector<4x8x8x32xf32> to vector<4x8x1x8x32xf32>
    tpu.vector_store %arg16[%c0_51, %c0_52, %c0_53, %c0_54, %c0_55], %147 {strides = array<i32>} : memref<4x8x1x8x32xf32, #tpu.memory_space<vmem>>, vector<4x8x1x8x32xf32>,
    return
  }
  func.func @transform_0(%arg0: i32, %arg1: i32) -> (i32, i32, i32, i32, i32) {
    %c0_i32 = arith.constant 0 : i32
    %c0_i32_0 = arith.constant 0 : i32
    %c0_i32_1 = arith.constant 0 : i32
    %c0_i32_2 = arith.constant 0 : i32
    return %arg0, %c0_i32, %arg1, %c0_i32_0, %c0_i32_1 : i32, i32, i32, i32, i32
  }
  func.func @transform_1(%arg0: i32, %arg1: i32) -> (i32, i32, i32) {
    %c0_i32 = arith.constant 0 : i32
    %c0_i32_0 = arith.constant 0 : i32
    %c0_i32_1 = arith.constant 0 : i32
    %c0_i32_2 = arith.constant 0 : i32
    return %c0_i32, %c0_i32_0, %c0_i32_1 : i32, i32, i32
  }
  func.func @transform_2(%arg0: i32, %arg1: i32) -> (i32, i32) {
    %c0_i32 = arith.constant 0 : i32
    %c0_i32_0 = arith.constant 0 : i32
    %c0_i32_1 = arith.constant 0 : i32
    return %c0_i32, %c0_i32_0 : i32, i32
  }
  func.func @transform_3(%arg0: i32, %arg1: i32) -> (i32, i32) {
    %c0_i32 = arith.constant 0 : i32
    %c0_i32_0 = arith.constant 0 : i32
    %c0_i32_1 = arith.constant 0 : i32
    return %c0_i32, %c0_i32_0 : i32, i32
  }
  func.func @transform_4(%arg0: i32, %arg1: i32) -> (i32, i32) {
    %c0_i32 = arith.constant 0 : i32
    %c0_i32_0 = arith.constant 0 : i32
    %c0_i32_1 = arith.constant 0 : i32
    return %c0_i32, %c0_i32_0 : i32, i32
  }
  func.func @transform_5(%arg0: i32, %arg1: i32) -> (i32, i32) {
    %c0_i32 = arith.constant 0 : i32
    %c0_i32_0 = arith.constant 0 : i32
    %c0_i32_1 = arith.constant 0 : i32
    return %c0_i32, %c0_i32_0 : i32, i32
  }
  func.func @transform_6(%arg0: i32, %arg1: i32) -> (i32, i32) {
    %c0_i32 = arith.constant 0 : i32
    %c0_i32_0 = arith.constant 0 : i32
    %c0_i32_1 = arith.constant 0 : i32
    return %c0_i32, %c0_i32_0 : i32, i32
  }
  func.func @transform_7(%arg0: i32, %arg1: i32) -> (i32, i32) {
    %c0_i32 = arith.constant 0 : i32
    %c0_i32_0 = arith.constant 0 : i32
    %c0_i32_1 = arith.constant 0 : i32
    return %c0_i32, %c0_i32_0 : i32, i32
  }
  func.func @transform_8(%arg0: i32, %arg1: i32) -> (i32, i32) {
    %c0_i32 = arith.constant 0 : i32
    %c0_i32_0 = arith.constant 0 : i32
    %c0_i32_1 = arith.constant 0 : i32
    return %c0_i32, %c0_i32_0 : i32, i32
  }
  func.func @transform_9(%arg0: i32, %arg1: i32) -> (i32, i32) {
    %c0_i32 = arith.constant 0 : i32
    %c0_i32_0 = arith.constant 0 : i32
    %c0_i32_1 = arith.constant 0 : i32
    return %c0_i32, %c0_i32_0 : i32, i32
  }
  func.func @transform_10(%arg0: i32, %arg1: i32) -> (i32, i32) {
    %c0_i32 = arith.constant 0 : i32
    %c0_i32_0 = arith.constant 0 : i32
    %c0_i32_1 = arith.constant 0 : i32
    return %c0_i32, %c0_i32_0 : i32, i32
  }
  func.func @transform_11(%arg0: i32, %arg1: i32) -> (i32, i32) {
    %c0_i32 = arith.constant 0 : i32
    %c0_i32_0 = arith.constant 0 : i32
    %c0_i32_1 = arith.constant 0 : i32
    return %c0_i32, %c0_i32_0 : i32, i32
  }
  func.func @transform_12(%arg0: i32, %arg1: i32) -> (i32, i32) {
    %c0_i32 = arith.constant 0 : i32
    %c0_i32_0 = arith.constant 0 : i32
    %c0_i32_1 = arith.constant 0 : i32
    return %c0_i32, %c0_i32_0 : i32, i32
  }
  func.func @transform_13(%arg0: i32, %arg1: i32) -> (i32, i32) {
    %c0_i32 = arith.constant 0 : i32
    %c0_i32_0 = arith.constant 0 : i32
    %c0_i32_1 = arith.constant 0 : i32
    return %c0_i32, %c0_i32_0 : i32, i32
  }
  func.func @transform_14(%arg0: i32, %arg1: i32) -> (i32, i32, i32, i32, i32) {
    %c0_i32 = arith.constant 0 : i32
    %c0_i32_0 = arith.constant 0 : i32
    %c0_i32_1 = arith.constant 0 : i32
    %c0_i32_2 = arith.constant 0 : i32
    return %arg0, %c0_i32, %arg1, %c0_i32_0, %c0_i32_1 : i32, i32, i32, i32, i32
  }
}

</mosaic_0001>

<llo_original>
// kernel: sub.8
$region0: #{sub.8}
  %s0 = inlined_call_operand.vmem [shape: s32[2,8,8], index: 0, kind: input, shape index: {}]
  %s1 = inlined_call_operand.vmem [shape: s32[2,64], index: 1, kind: output, shape index: {}]
  $region1: #{sub.8} parent=0
    #allocation0 [shape = 'u8[4096]{0}', space=vmem, size = 0x1000, scoped, tag = 'scoped mem for output reshape']
    %s2 = smov 3
    %v3 = vld [vmem:[%s0] ss:$8 sm:%s2]
    %vm4 = vcmask 64512
    %5 = vst.msk [vmem:[#allocation0] sm:$0x3] %vm4, %v3
    %s6 = scalar_lea.vmem %s0, 7
    %s7 = smov 3
    %v8 = vld [vmem:[%s6] ss:$8 sm:%s7]
    %9 = vrot.lane.b32.xlu0 %v8, 56
    %v10 = vpop.permute.xlu0 %9
    %vm11 = vcmask 523712
    %12 = vst.msk [vmem:[#allocation0] sm:$0x3] %vm11, %v10
    %s13 = scalar_lea.vmem %s0, 6
    %s14 = smov 3
    %v15 = vld [vmem:[%s13] ss:$8 sm:%s14]
    %16 = vrot.lane.b32.xlu0 %v15, 48
    %v17 = vpop.permute.xlu0 %16
    %vm18 = vcmask 458112
    %19 = vst.msk [vmem:[#allocation0] sm:$0x3] %vm18, %v17
    %s20 = scalar_lea.vmem %s0, 5
    %s21 = smov 3
    %v22 = vld [vmem:[%s20] ss:$8 sm:%s21]
    %23 = vrot.lane.b32.xlu0 %v22, 40
    %v24 = vpop.permute.xlu0 %23
    %vm25 = vcmask 392512
    %26 = vst.msk [vmem:[#allocation0] sm:$0x3] %vm25, %v24
    %s27 = scalar_lea.vmem %s0, 4
    %s28 = smov 3
    %v29 = vld [vmem:[%s27] ss:$8 sm:%s28]
    %30 = vrot.lane.b32.xlu0 %v29, 32
    %v31 = vpop.permute.xlu0 %30
    %vm32 = vcmask 326912
    %33 = vst.msk [vmem:[#allocation0] sm:$0x3] %vm32, %v31
    %s34 = scalar_lea.vmem %s0, 3
    %s35 = smov 3
    %v36 = vld [vmem:[%s34] ss:$8 sm:%s35]
    %37 = vrot.lane.b32.xlu0 %v36, 24
    %v38 = vpop.permute.xlu0 %37
    %vm39 = vcmask 261312
    %40 = vst.msk [vmem:[#allocation0] sm:$0x3] %vm39, %v38
    %s41 = scalar_lea.vmem %s0, 2
    %s42 = smov 3
    %v43 = vld [vmem:[%s41] ss:$8 sm:%s42]
    %44 = vrot.lane.b32.xlu0 %v43, 16
    %v45 = vpop.permute.xlu0 %44
    %vm46 = vcmask 195712
    %47 = vst.msk [vmem:[#allocation0] sm:$0x3] %vm46, %v45
    %s48 = scalar_lea.vmem %s0, 1
    %s49 = smov 3
    %v50 = vld [vmem:[%s48] ss:$8 sm:%s49]
    %51 = vrot.lane.b32.xlu0 %v50, 8
    %v52 = vpop.permute.xlu0 %51
    %vm53 = vcmask 130112
    %54 = vst.msk [vmem:[#allocation0] sm:$0x3] %vm53, %v52
    %s56 = sshllo.u32 0, 2
    %v58 = vld [vmem:[#allocation0] sm:%s56]
    %s59 = sshllo.u32 0, 2
    %60 = vst [vmem:[%s1] sm:%s59] %v58

// kernel: swin_block_forward.1
$region0: #{swin_block_forward.1}
  #allocation0 [shape = 'u32[]', space=smem, size = 0x4, offset = 0x4, fixed_abs, tag = 'smem constant byte address 0x4 - core index']
  #allocation1 [shape = 'u32[144,128]{1,0:T(1,128)}', space=vmem, size = 0x12000, scoped, tag = 'internal scratch']
  %s0 = inlined_call_operand.vmem [shape: f32[4,8,2,8,32], index: 0, kind: input, shape index: {}]
  %s1 = inlined_call_operand.vmem [shape: f32[2,64,64], index: 1, kind: input, shape index: {}]
  %s2 = inlined_call_operand.vmem [shape: f32[1,32], index: 2, kind: input, shape index: {}]
  %s3 = inlined_call_operand.vmem [shape: f32[1,32], index: 3, kind: input, shape index: {}]
  %s4 = inlined_call_operand.vmem [shape: bf16[32,96], index: 4, kind: input, shape index: {}]
  %s5 = inlined_call_operand.vmem [shape: f32[1,96], index: 5, kind: input, shape index: {}]
  %s6 = inlined_call_operand.vmem [shape: bf16[32,32], index: 6, kind: input, shape index: {}]
  %s7 = inlined_call_operand.vmem [shape: f32[1,32], index: 7, kind: input, shape index: {}]
  %s8 = inlined_call_operand.vmem [shape: f32[1,32], index: 8, kind: input, shape index: {}]
  %s9 = inlined_call_operand.vmem [shape: f32[1,32], index: 9, kind: input, shape index: {}]
  %s10 = inlined_call_operand.vmem [shape: bf16[32,128], index: 10, kind: input, shape index: {}]
  %s11 = inlined_call_operand.vmem [shape: f32[1,128], index: 11, kind: input, shape index: {}]
  %s12 = inlined_call_operand.vmem [shape: bf16[128,32], index: 12, kind: input, shape index: {}]
  %s13 = inlined_call_operand.vmem [shape: f32[1,32], index: 13, kind: input, shape index: {}]
  %s14 = inlined_call_operand.vmem [shape: f32[4,8,2,8,32], index: 14, kind: output, shape index: {}]
  %s15 = sld [smem:[#allocation0]]
  $region161: #{swin_block_forward.1} parent=0
    _
  %s17 = ssub.s32 1, %s15
  %s18 = scalar_select 0, %s17, %s15
  $region1: #{swin_block_forward.1} parent=0
    #allocation2 [shape = 'u8[262144]{0}', space=vmem, size = 0x40000, scoped, tag = 'input window, operand 0']
    #allocation3 [shape = 'u8[262144]{0}', space=vmem, size = 0x40000, scoped, tag = 'output window, operand 0']
    loop: start=0, step=1, limit=4
    $region2: #{swin_block_forward.1} parent=1 // loop_pre_header
      _
    $region3: #{swin_block_forward.1} parent=1 // loop_header
      %s20 = sphi 0, %s24
      %p21 = scmp.ge.s32.totalorder %s20, 4
      %s27 = sphi 0, %s39
      %s28 = sphi 0, %s35
      %s29 = sphi 0, %s27
      %s30 = sphi 0, %s28
      %s31 = sphi 0, %s29
      %s32 = sphi 0, %s30
      %s44 = sphi 0, %s46
      %s47 = sphi 0, %s44
      %s48 = sphi 0, %s47
      %s64 = sphi 0, %s48
      %s68 = sphi 0, %s68
      %s70 = sphi 0, %s68
      %s71 = sphi 0, %s70
      %s85 = sphi 0, %s71
      %s89 = sphi 0, %s89
      %s91 = sphi 0, %s89
      %s92 = sphi 0, %s91
      %s106 = sphi 0, %s92
      %s110 = sphi 0, %s110
      %s112 = sphi 0, %s110
      %s113 = sphi 0, %s112
      %s127 = sphi 0, %s113
      %s131 = sphi 0, %s131
      %s133 = sphi 0, %s131
      %s134 = sphi 0, %s133
      %s148 = sphi 0, %s134
      %s152 = sphi 0, %s152
      %s154 = sphi 0, %s152
      %s155 = sphi 0, %s154
      %s169 = sphi 0, %s155
      %s173 = sphi 0, %s173
      %s175 = sphi 0, %s173
      %s176 = sphi 0, %s175
      %s190 = sphi 0, %s176
      %s194 = sphi 0, %s194
      %s196 = sphi 0, %s194
      %s197 = sphi 0, %s196
      %s211 = sphi 0, %s197
      %s215 = sphi 0, %s215
      %s217 = sphi 0, %s215
      %s218 = sphi 0, %s217
      %s232 = sphi 0, %s218
      %s236 = sphi 0, %s236
      %s238 = sphi 0, %s236
      %s239 = sphi 0, %s238
      %s253 = sphi 0, %s239
      %s257 = sphi 0, %s257
      %s259 = sphi 0, %s257
      %s260 = sphi 0, %s259
      %s274 = sphi 0, %s260
      %s278 = sphi 0, %s278
      %s280 = sphi 0, %s278
      %s281 = sphi 0, %s280
      %s295 = sphi 0, %s281
      %s299 = sphi 0, %s299
      %s301 = sphi 0, %s299
      %s302 = sphi 0, %s301
      %s316 = sphi 0, %s302
      %s320 = sphi 0, %s320
      %s322 = sphi 0, %s320
      %s323 = sphi 0, %s322
      %s337 = sphi 0, %s323
      %s345 = sphi 0, %s347
      %s348 = sphi 0, %s345
      %s349 = sphi 0, %s348
      %s365 = sphi 0, %s349
    $region4: #{swin_block_forward.1} parent=1 // loop_header_branch
      %23 = sbr.rel (%p21) target = $region8
    $region5: #{swin_block_forward.1} parent=1 // loop_body
      %s25 = ssub.s32 %s20, 1
      %s26 = ssub.s32 %s20, 2
      %s33 = sadd.s32 1, %s28
      %p34 = scmp.ge.s32.totalorder %s33, 2
      %s35 = scalar_select %p34, 0, %s33
      %s36 = sadd.s32 1, %s27
      %s37 = scalar_select %p34, %s36, %s27
      %p38 = scmp.ge.s32.totalorder %s37, 1
      %s39 = scalar_select %p38, 0, %s37
      %s40 = ssub.s32 %s27, %s39
      %s41 = ssub.s32 %s28, %s35
      %s42 = sor.u32 %s40, %s41
      %p43 = scmp.eq.s32.totalorder %s42, 0
      %s45 = sadd.s32 %s44, 1
      %s46 = scalar_select %p43, %s44, %s45
      %p49 = pneg %p43
      %p50 = scmp.eq.s32.totalorder %s20, 1
      %p51 = por %p49, %p50
      %p52 = scmp.ne.s32.totalorder %s44, %s47
      %p53 = scmp.eq.s32.totalorder %s20, 0
      %p54 = por %p52, %p53
      %p55 = scmp.ne.s32.totalorder %s44, %s47
      %p56 = scmp.eq.s32.totalorder %s25, 1
      %p57 = por %p55, %p56
      %p58 = scmp.ne.s32.totalorder %s47, %s48
      %p59 = scmp.eq.s32.totalorder %s25, 0
      %p60 = por %p58, %p59
      %p61 = scmp.ne.s32.totalorder %s47, %s48
      %p62 = scmp.eq.s32.totalorder %s26, 1
      %p63 = por %p61, %p62
      %p65 = scmp.ne.s32.totalorder %s48, %s64
      %p66 = scmp.eq.s32.totalorder %s26, 0
      %p67 = por %p65, %p66
      %s69 = sadd.s32 %s68, 1
      %p72 = scmp.eq.s32.totalorder %s20, 1
      %p73 = scmp.ne.s32.totalorder %s68, %s70
      %p74 = scmp.eq.s32.totalorder %s20, 0
      %p75 = por %p73, %p74
      %p76 = scmp.ne.s32.totalorder %s68, %s70
      %p77 = scmp.eq.s32.totalorder %s25, 1
      %p78 = por %p76, %p77
      %p79 = scmp.ne.s32.totalorder %s70, %s71
      %p80 = scmp.eq.s32.totalorder %s25, 0
      %p81 = por %p79, %p80
      %p82 = scmp.ne.s32.totalorder %s70, %s71
      %p83 = scmp.eq.s32.totalorder %s26, 1
      %p84 = por %p82, %p83
      %p86 = scmp.ne.s32.totalorder %s71, %s85
      %p87 = scmp.eq.s32.totalorder %s26, 0
      %p88 = por %p86, %p87
      %s90 = sadd.s32 %s89, 1
      %p93 = scmp.eq.s32.totalorder %s20, 1
      %p94 = scmp.ne.s32.totalorder %s89, %s91
      %p95 = scmp.eq.s32.totalorder %s20, 0
      %p96 = por %p94, %p95
      %p97 = scmp.ne.s32.totalorder %s89, %s91
      %p98 = scmp.eq.s32.totalorder %s25, 1
      %p99 = por %p97, %p98
      %p100 = scmp.ne.s32.totalorder %s91, %s92
      %p101 = scmp.eq.s32.totalorder %s25, 0
      %p102 = por %p100, %p101
      %p103 = scmp.ne.s32.totalorder %s91, %s92
      %p104 = scmp.eq.s32.totalorder %s26, 1
      %p105 = por %p103, %p104
      %p107 = scmp.ne.s32.totalorder %s92, %s106
      %p108 = scmp.eq.s32.totalorder %s26, 0
      %p109 = por %p107, %p108
      %s111 = sadd.s32 %s110, 1
      %p114 = scmp.eq.s32.totalorder %s20, 1
      %p115 = scmp.ne.s32.totalorder %s110, %s112
      %p116 = scmp.eq.s32.totalorder %s20, 0
      %p117 = por %p115, %p116
      %p118 = scmp.ne.s32.totalorder %s110, %s112
      %p119 = scmp.eq.s32.totalorder %s25, 1
      %p120 = por %p118, %p119
      %p121 = scmp.ne.s32.totalorder %s112, %s113
      %p122 = scmp.eq.s32.totalorder %s25, 0
      %p123 = por %p121, %p122
      %p124 = scmp.ne.s32.totalorder %s112, %s113
      %p125 = scmp.eq.s32.totalorder %s26, 1
      %p126 = por %p124, %p125
      %p128 = scmp.ne.s32.totalorder %s113, %s127
      %p129 = scmp.eq.s32.totalorder %s26, 0
      %p130 = por %p128, %p129
      %s132 = sadd.s32 %s131, 1
      %p135 = scmp.eq.s32.totalorder %s20, 1
      %p136 = scmp.ne.s32.totalorder %s131, %s133
      %p137 = scmp.eq.s32.totalorder %s20, 0
      %p138 = por %p136, %p137
      %p139 = scmp.ne.s32.totalorder %s131, %s133
      %p140 = scmp.eq.s32.totalorder %s25, 1
      %p141 = por %p139, %p140
      %p142 = scmp.ne.s32.totalorder %s133, %s134
      %p143 = scmp.eq.s32.totalorder %s25, 0
      %p144 = por %p142, %p143
      %p145 = scmp.ne.s32.totalorder %s133, %s134
      %p146 = scmp.eq.s32.totalorder %s26, 1
      %p147 = por %p145, %p146
      %p149 = scmp.ne.s32.totalorder %s134, %s148
      %p150 = scmp.eq.s32.totalorder %s26, 0
      %p151 = por %p149, %p150
      %s153 = sadd.s32 %s152, 1
      %p156 = scmp.eq.s32.totalorder %s20, 1
      %p157 = scmp.ne.s32.totalorder %s152, %s154
      %p158 = scmp.eq.s32.totalorder %s20, 0
      %p159 = por %p157, %p158
      %p160 = scmp.ne.s32.totalorder %s152, %s154
      %p161 = scmp.eq.s32.totalorder %s25, 1
      %p162 = por %p160, %p161
      %p163 = scmp.ne.s32.totalorder %s154, %s155
      %p164 = scmp.eq.s32.totalorder %s25, 0
      %p165 = por %p163, %p164
      %p166 = scmp.ne.s32.totalorder %s154, %s155
      %p167 = scmp.eq.s32.totalorder %s26, 1
      %p168 = por %p166, %p167
      %p170 = scmp.ne.s32.totalorder %s155, %s169
      %p171 = scmp.eq.s32.totalorder %s26, 0
      %p172 = por %p170, %p171
      %s174 = sadd.s32 %s173, 1
      %p177 = scmp.eq.s32.totalorder %s20, 1
      %p178 = scmp.ne.s32.totalorder %s173, %s175
      %p179 = scmp.eq.s32.totalorder %s20, 0
      %p180 = por %p178, %p179
      %p181 = scmp.ne.s32.totalorder %s173, %s175
      %p182 = scmp.eq.s32.totalorder %s25, 1
      %p183 = por %p181, %p182
      %p184 = scmp.ne.s32.totalorder %s175, %s176
      %p185 = scmp.eq.s32.totalorder %s25, 0
      %p186 = por %p184, %p185
      %p187 = scmp.ne.s32.totalorder %s175, %s176
      %p188 = scmp.eq.s32.totalorder %s26, 1
      %p189 = por %p187, %p188
      %p191 = scmp.ne.s32.totalorder %s176, %s190
      %p192 = scmp.eq.s32.totalorder %s26, 0
      %p193 = por %p191, %p192
      %s195 = sadd.s32 %s194, 1
      %p198 = scmp.eq.s32.totalorder %s20, 1
      %p199 = scmp.ne.s32.totalorder %s194, %s196
      %p200 = scmp.eq.s32.totalorder %s20, 0
      %p201 = por %p199, %p200
      %p202 = scmp.ne.s32.totalorder %s194, %s196
      %p203 = scmp.eq.s32.totalorder %s25, 1
      %p204 = por %p202, %p203
      %p205 = scmp.ne.s32.totalorder %s196, %s197
      %p206 = scmp.eq.s32.totalorder %s25, 0
      %p207 = por %p205, %p206
      %p208 = scmp.ne.s32.totalorder %s196, %s197
      %p209 = scmp.eq.s32.totalorder %s26, 1
      %p210 = por %p208, %p209
      %p212 = scmp.ne.s32.totalorder %s197, %s211
      %p213 = scmp.eq.s32.totalorder %s26, 0
      %p214 = por %p212, %p213
      %s216 = sadd.s32 %s215, 1
      %p219 = scmp.eq.s32.totalorder %s20, 1
      %p220 = scmp.ne.s32.totalorder %s215, %s217
      %p221 = scmp.eq.s32.totalorder %s20, 0
      %p222 = por %p220, %p221
      %p223 = scmp.ne.s32.totalorder %s215, %s217
      %p224 = scmp.eq.s32.totalorder %s25, 1
      %p225 = por %p223, %p224
      %p226 = scmp.ne.s32.totalorder %s217, %s218
      %p227 = scmp.eq.s32.totalorder %s25, 0
      %p228 = por %p226, %p227
      %p229 = scmp.ne.s32.totalorder %s217, %s218
      %p230 = scmp.eq.s32.totalorder %s26, 1
      %p231 = por %p229, %p230
      %p233 = scmp.ne.s32.totalorder %s218, %s232
      %p234 = scmp.eq.s32.totalorder %s26, 0
      %p235 = por %p233, %p234
      %s237 = sadd.s32 %s236, 1
      %p240 = scmp.eq.s32.totalorder %s20, 1
      %p241 = scmp.ne.s32.totalorder %s236, %s238
      %p242 = scmp.eq.s32.totalorder %s20, 0
      %p243 = por %p241, %p242
      %p244 = scmp.ne.s32.totalorder %s236, %s238
      %p245 = scmp.eq.s32.totalorder %s25, 1
      %p246 = por %p244, %p245
      %p247 = scmp.ne.s32.totalorder %s238, %s239
      %p248 = scmp.eq.s32.totalorder %s25, 0
      %p249 = por %p247, %p248
      %p250 = scmp.ne.s32.totalorder %s238, %s239
      %p251 = scmp.eq.s32.totalorder %s26, 1
      %p252 = por %p250, %p251
      %p254 = scmp.ne.s32.totalorder %s239, %s253
      %p255 = scmp.eq.s32.totalorder %s26, 0
      %p256 = por %p254, %p255
      %s258 = sadd.s32 %s257, 1
      %p261 = scmp.eq.s32.totalorder %s20, 1
      %p262 = scmp.ne.s32.totalorder %s257, %s259
      %p263 = scmp.eq.s32.totalorder %s20, 0
      %p264 = por %p262, %p263
      %p265 = scmp.ne.s32.totalorder %s257, %s259
      %p266 = scmp.eq.s32.totalorder %s25, 1
      %p267 = por %p265, %p266
      %p268 = scmp.ne.s32.totalorder %s259, %s260
      %p269 = scmp.eq.s32.totalorder %s25, 0
      %p270 = por %p268, %p269
      %p271 = scmp.ne.s32.totalorder %s259, %s260
      %p272 = scmp.eq.s32.totalorder %s26, 1
      %p273 = por %p271, %p272
      %p275 = scmp.ne.s32.totalorder %s260, %s274
      %p276 = scmp.eq.s32.totalorder %s26, 0
      %p277 = por %p275, %p276
      %s279 = sadd.s32 %s278, 1
      %p282 = scmp.eq.s32.totalorder %s20, 1
      %p283 = scmp.ne.s32.totalorder %s278, %s280
      %p284 = scmp.eq.s32.totalorder %s20, 0
      %p285 = por %p283, %p284
      %p286 = scmp.ne.s32.totalorder %s278, %s280
      %p287 = scmp.eq.s32.totalorder %s25, 1
      %p288 = por %p286, %p287
      %p289 = scmp.ne.s32.totalorder %s280, %s281
      %p290 = scmp.eq.s32.totalorder %s25, 0
      %p291 = por %p289, %p290
      %p292 = scmp.ne.s32.totalorder %s280, %s281
      %p293 = scmp.eq.s32.totalorder %s26, 1
      %p294 = por %p292, %p293
      %p296 = scmp.ne.s32.totalorder %s281, %s295
      %p297 = scmp.eq.s32.totalorder %s26, 0
      %p298 = por %p296, %p297
      %s300 = sadd.s32 %s299, 1
      %p303 = scmp.eq.s32.totalorder %s20, 1
      %p304 = scmp.ne.s32.totalorder %s299, %s301
      %p305 = scmp.eq.s32.totalorder %s20, 0
      %p306 = por %p304, %p305
      %p307 = scmp.ne.s32.totalorder %s299, %s301
      %p308 = scmp.eq.s32.totalorder %s25, 1
      %p309 = por %p307, %p308
      %p310 = scmp.ne.s32.totalorder %s301, %s302
      %p311 = scmp.eq.s32.totalorder %s25, 0
      %p312 = por %p310, %p311
      %p313 = scmp.ne.s32.totalorder %s301, %s302
      %p314 = scmp.eq.s32.totalorder %s26, 1
      %p315 = por %p313, %p314
      %p317 = scmp.ne.s32.totalorder %s302, %s316
      %p318 = scmp.eq.s32.totalorder %s26, 0
      %p319 = por %p317, %p318
      %s321 = sadd.s32 %s320, 1
      %p324 = scmp.eq.s32.totalorder %s20, 1
      %p325 = scmp.ne.s32.totalorder %s320, %s322
      %p326 = scmp.eq.s32.totalorder %s20, 0
      %p327 = por %p325, %p326
      %p328 = scmp.ne.s32.totalorder %s320, %s322
      %p329 = scmp.eq.s32.totalorder %s25, 1
      %p330 = por %p328, %p329
      %p331 = scmp.ne.s32.totalorder %s322, %s323
      %p332 = scmp.eq.s32.totalorder %s25, 0
      %p333 = por %p331, %p332
      %p334 = scmp.ne.s32.totalorder %s322, %s323
      %p335 = scmp.eq.s32.totalorder %s26, 1
      %p336 = por %p334, %p335
      %p338 = scmp.ne.s32.totalorder %s323, %s337
      %p339 = scmp.eq.s32.totalorder %s26, 0
      %p340 = por %p338, %p339
      %s341 = ssub.s32 %s27, %s39
      %s342 = ssub.s32 %s28, %s35
      %s343 = sor.u32 %s341, %s342
      %p344 = scmp.eq.s32.totalorder %s343, 0
      %s346 = sadd.s32 %s345, 1
      %s347 = scalar_select %p344, %s345, %s346
      %p350 = pneg %p344
      %p351 = scmp.eq.s32.totalorder %s20, 1
      %p352 = por %p350, %p351
      %p353 = scmp.ne.s32.totalorder %s345, %s348
      %p354 = scmp.eq.s32.totalorder %s20, 0
      %p355 = por %p353, %p354
      %p356 = scmp.ne.s32.totalorder %s345, %s348
      %p357 = scmp.eq.s32.totalorder %s25, 1
      %p358 = por %p356, %p357
      %p359 = scmp.ne.s32.totalorder %s348, %s349
      %p360 = scmp.eq.s32.totalorder %s25, 0
      %p361 = por %p359, %p360
      %p362 = scmp.ne.s32.totalorder %s348, %s349
      %p363 = scmp.eq.s32.totalorder %s26, 1
      %p364 = por %p362, %p363
      %p366 = scmp.ne.s32.totalorder %s349, %s365
      %p367 = scmp.eq.s32.totalorder %s26, 0
      %p368 = por %p366, %p367
      %p369 = scmp.le.s32.totalorder 1, %s20
      %p370 = scmp.lt.s32.totalorder %s20, 3
      %p371 = pnand %p369, %p370
      %p372 = pneg %p371
      // Predicated region
      $region9: #{swin_block_forward.1} parent=5 // pred_check
        _
      $region10: #{swin_block_forward.1} parent=5 // pred_check_branch
        %374 = sbr.rel (%p371) target = $region12
      $region11: #{swin_block_forward.1} parent=5 // pred_region
        %s375 = ssub.s32 %s20, 1
        // Predicated region
        $region13: #{swin_block_forward.1} parent=11 // pred_check
          %p376 = pneg %p81
        $region14: #{swin_block_forward.1} parent=11 // pred_check_branch
          %378 = sbr.rel (%p376) target = $region16
        $region15: #{swin_block_forward.1} parent=11 // pred_region
          _
        $region16: #{swin_block_forward.1} parent=11 // pred_fallthru
          _
        // Predicated region
        $region17: #{swin_block_forward.1} parent=11 // pred_check
          %p379 = pneg %p102
        $region18: #{swin_block_forward.1} parent=11 // pred_check_branch
          %381 = sbr.rel (%p379) target = $region20
        $region19: #{swin_block_forward.1} parent=11 // pred_region
          _
        $region20: #{swin_block_forward.1} parent=11 // pred_fallthru
          _
        // Predicated region
        $region21: #{swin_block_forward.1} parent=11 // pred_check
          %p382 = pneg %p123
        $region22: #{swin_block_forward.1} parent=11 // pred_check_branch
          %384 = sbr.rel (%p382) target = $region24
        $region23: #{swin_block_forward.1} parent=11 // pred_region
          _
        $region24: #{swin_block_forward.1} parent=11 // pred_fallthru
          _
        // Predicated region
        $region25: #{swin_block_forward.1} parent=11 // pred_check
          %p385 = pneg %p144
        $region26: #{swin_block_forward.1} parent=11 // pred_check_branch
          %387 = sbr.rel (%p385) target = $region28
        $region27: #{swin_block_forward.1} parent=11 // pred_region
          _
        $region28: #{swin_block_forward.1} parent=11 // pred_fallthru
          _
        // Predicated region
        $region29: #{swin_block_forward.1} parent=11 // pred_check
          %p388 = pneg %p165
        $region30: #{swin_block_forward.1} parent=11 // pred_check_branch
          %390 = sbr.rel (%p388) target = $region32
        $region31: #{swin_block_forward.1} parent=11 // pred_region
          _
        $region32: #{swin_block_forward.1} parent=11 // pred_fallthru
          _
        // Predicated region
        $region33: #{swin_block_forward.1} parent=11 // pred_check
          %p391 = pneg %p186
        $region34: #{swin_block_forward.1} parent=11 // pred_check_branch
          %393 = sbr.rel (%p391) target = $region36
        $region35: #{swin_block_forward.1} parent=11 // pred_region
          _
        $region36: #{swin_block_forward.1} parent=11 // pred_fallthru
          _
        // Predicated region
        $region37: #{swin_block_forward.1} parent=11 // pred_check
          %p394 = pneg %p207
        $region38: #{swin_block_forward.1} parent=11 // pred_check_branch
          %396 = sbr.rel (%p394) target = $region40
        $region39: #{swin_block_forward.1} parent=11 // pred_region
          _
        $region40: #{swin_block_forward.1} parent=11 // pred_fallthru
          _
        // Predicated region
        $region41: #{swin_block_forward.1} parent=11 // pred_check
          %p397 = pneg %p228
        $region42: #{swin_block_forward.1} parent=11 // pred_check_branch
          %399 = sbr.rel (%p397) target = $region44
        $region43: #{swin_block_forward.1} parent=11 // pred_region
          _
        $region44: #{swin_block_forward.1} parent=11 // pred_fallthru
          _
        // Predicated region
        $region45: #{swin_block_forward.1} parent=11 // pred_check
          %p400 = pneg %p249
        $region46: #{swin_block_forward.1} parent=11 // pred_check_branch
          %402 = sbr.rel (%p400) target = $region48
        $region47: #{swin_block_forward.1} parent=11 // pred_region
          _
        $region48: #{swin_block_forward.1} parent=11 // pred_fallthru
          _
        // Predicated region
        $region49: #{swin_block_forward.1} parent=11 // pred_check
          %p403 = pneg %p270
        $region50: #{swin_block_forward.1} parent=11 // pred_check_branch
          %405 = sbr.rel (%p403) target = $region52
        $region51: #{swin_block_forward.1} parent=11 // pred_region
          _
        $region52: #{swin_block_forward.1} parent=11 // pred_fallthru
          _
        // Predicated region
        $region53: #{swin_block_forward.1} parent=11 // pred_check
          %p406 = pneg %p291
        $region54: #{swin_block_forward.1} parent=11 // pred_check_branch
          %408 = sbr.rel (%p406) target = $region56
        $region55: #{swin_block_forward.1} parent=11 // pred_region
          _
        $region56: #{swin_block_forward.1} parent=11 // pred_fallthru
          _
        // Predicated region
        $region57: #{swin_block_forward.1} parent=11 // pred_check
          %p409 = pneg %p312
        $region58: #{swin_block_forward.1} parent=11 // pred_check_branch
          %411 = sbr.rel (%p409) target = $region60
        $region59: #{swin_block_forward.1} parent=11 // pred_region
          _
        $region60: #{swin_block_forward.1} parent=11 // pred_fallthru
          _
        // Predicated region
        $region61: #{swin_block_forward.1} parent=11 // pred_check
          %p412 = pneg %p333
        $region62: #{swin_block_forward.1} parent=11 // pred_check_branch
          %414 = sbr.rel (%p412) target = $region64
        $region63: #{swin_block_forward.1} parent=11 // pred_region
          _
        $region64: #{swin_block_forward.1} parent=11 // pred_fallthru
          _
      $region12: #{swin_block_forward.1} parent=5 // pred_fallthru
        _
      %p415 = scmp.lt.s32.totalorder %s20, 2
      // Predicated region
      $region65: #{swin_block_forward.1} parent=5 // pred_check
        %p416 = pneg %p415
      $region66: #{swin_block_forward.1} parent=5 // pred_check_branch
        %418 = sbr.rel (%p416) target = $region68
      $region67: #{swin_block_forward.1} parent=5 // pred_region
        // Predicated region
        $region69: #{swin_block_forward.1} parent=67 // pred_check
          %p419 = pneg %p54
        $region70: #{swin_block_forward.1} parent=67 // pred_check_branch
          %421 = sbr.rel (%p419) target = $region72
        $region71: #{swin_block_forward.1} parent=67 // pred_region
          %s422 = sand.u32 %s44, 1
          %s423 = sand.u32 %s44, 1
          %s424 = smul.addr %s423, 256
          %s425 = scalar_lea.vmem [#allocation2], %s424
          %s426 = smul.u32 4, %s27
          %s427 = smul.addr %s426, 16
          %s428 = sadd.s32 %s28, %s427
          %s429 = smul.addr %s428, 8
          %s430 = scalar_lea.vmem %s0, %s429
          // Predicated region
          $region73: #{swin_block_forward.1} parent=71 // pred_check
            _
          $region74: #{swin_block_forward.1} parent=71 // pred_check_branch
            %432 = sbr.rel (0) target = $region76
          $region75: #{swin_block_forward.1} parent=71 // pred_region
            // Predicated region
            $region77: #{swin_block_forward.1} parent=75 // pred_check
              _
            $region78: #{swin_block_forward.1} parent=75 // pred_check_branch
              %434 = sbr.rel (0) target = $region80
            $region79: #{swin_block_forward.1} parent=75 // pred_region
              // Predicated region
              $region92: #{swin_block_forward.1} parent=79 // pred_check
                _
              $region93: #{swin_block_forward.1} parent=79 // pred_check_branch
                %511 = sbr.rel (0) target = $region95
              $region94: #{swin_block_forward.1} parent=79 // pred_region
                loop: start=0, step=1, limit=1
                $region96: #{swin_block_forward.1} parent=94 // loop_pre_header
                  _
                $region97: #{swin_block_forward.1} parent=94 // loop_header
                  %s513 = sphi 0, %s517
                  %p514 = scmp.ge.s32.totalorder %s513, 1
                  %s518 = sphi %s430, %s430
                  %s519 = sphi %s425, %s425
                $region98: #{swin_block_forward.1} parent=94 // loop_header_branch
                  %516 = sbr.rel (%p514) target = $region102
                $region99: #{swin_block_forward.1} parent=94 // loop_body
                  %v520 = vld [vmem:[%s518] sm:$0xff]
                  %521 = vst [vmem:[%s519] sm:$0xff] %v520
                  %v522 = vld [vmem:[%s518 + $0x10] sm:$0xff]
                  %523 = vst [vmem:[%s519 + $0x8] sm:$0xff] %v522
                  %v524 = vld [vmem:[%s518 + $0x20] sm:$0xff]
                  %525 = vst [vmem:[%s519 + $0x10] sm:$0xff] %v524
                  %v526 = vld [vmem:[%s518 + $0x30] sm:$0xff]
                  %527 = vst [vmem:[%s519 + $0x18] sm:$0xff] %v526
                  %v528 = vld [vmem:[%s518 + $0x40] sm:$0xff]
                  %529 = vst [vmem:[%s519 + $0x20] sm:$0xff] %v528
                  %v530 = vld [vmem:[%s518 + $0x50] sm:$0xff]
                  %531 = vst [vmem:[%s519 + $0x28] sm:$0xff] %v530
                  %v532 = vld [vmem:[%s518 + $0x60] sm:$0xff]
                  %533 = vst [vmem:[%s519 + $0x30] sm:$0xff] %v532
                  %v534 = vld [vmem:[%s518 + $0x70] sm:$0xff]
                  %535 = vst [vmem:[%s519 + $0x38] sm:$0xff] %v534
                  %v536 = vld [vmem:[%s518 + $0x80] sm:$0xff]
                  %537 = vst [vmem:[%s519 + $0x40] sm:$0xff] %v536
                  %v538 = vld [vmem:[%s518 + $0x90] sm:$0xff]
                  %539 = vst [vmem:[%s519 + $0x48] sm:$0xff] %v538
                  %v540 = vld [vmem:[%s518 + $0xa0] sm:$0xff]
                  %541 = vst [vmem:[%s519 + $0x50] sm:$0xff] %v540
                  %v542 = vld [vmem:[%s518 + $0xb0] sm:$0xff]
                  %543 = vst [vmem:[%s519 + $0x58] sm:$0xff] %v542
                  %v544 = vld [vmem:[%s518 + $0xc0] sm:$0xff]
                  %545 = vst [vmem:[%s519 + $0x60] sm:$0xff] %v544
                  %v546 = vld [vmem:[%s518 + $0xd0] sm:$0xff]
                  %547 = vst [vmem:[%s519 + $0x68] sm:$0xff] %v546
                  %v548 = vld [vmem:[%s518 + $0xe0] sm:$0xff]
                  %549 = vst [vmem:[%s519 + $0x70] sm:$0xff] %v548
                  %v550 = vld [vmem:[%s518 + $0xf0] sm:$0xff]
                  %551 = vst [vmem:[%s519 + $0x78] sm:$0xff] %v550
                  %v552 = vld [vmem:[%s518 + $0x100] sm:$0xff]
                  %553 = vst [vmem:[%s519 + $0x80] sm:$0xff] %v552
                  %v554 = vld [vmem:[%s518 + $0x110] sm:$0xff]
                  %555 = vst [vmem:[%s519 + $0x88] sm:$0xff] %v554
                  %v556 = vld [vmem:[%s518 + $0x120] sm:$0xff]
                  %557 = vst [vmem:[%s519 + $0x90] sm:$0xff] %v556
                  %v558 = vld [vmem:[%s518 + $0x130] sm:$0xff]
                  %559 = vst [vmem:[%s519 + $0x98] sm:$0xff] %v558
                  %v560 = vld [vmem:[%s518 + $0x140] sm:$0xff]
                  %561 = vst [vmem:[%s519 + $0xa0] sm:$0xff] %v560
                  %v562 = vld [vmem:[%s518 + $0x150] sm:$0xff]
                  %563 = vst [vmem:[%s519 + $0xa8] sm:$0xff] %v562
                  %v564 = vld [vmem:[%s518 + $0x160] sm:$0xff]
                  %565 = vst [vmem:[%s519 + $0xb0] sm:$0xff] %v564
                  %v566 = vld [vmem:[%s518 + $0x170] sm:$0xff]
                  %567 = vst [vmem:[%s519 + $0xb8] sm:$0xff] %v566
                  %v568 = vld [vmem:[%s518 + $0x180] sm:$0xff]
                  %569 = vst [vmem:[%s519 + $0xc0] sm:$0xff] %v568
                  %v570 = vld [vmem:[%s518 + $0x190] sm:$0xff]
                  %571 = vst [vmem:[%s519 + $0xc8] sm:$0xff] %v570
                  %v572 = vld [vmem:[%s518 + $0x1a0] sm:$0xff]
                  %573 = vst [vmem:[%s519 + $0xd0] sm:$0xff] %v572
                  %v574 = vld [vmem:[%s518 + $0x1b0] sm:$0xff]
                  %575 = vst [vmem:[%s519 + $0xd8] sm:$0xff] %v574
                  %v576 = vld [vmem:[%s518 + $0x1c0] sm:$0xff]
                  %577 = vst [vmem:[%s519 + $0xe0] sm:$0xff] %v576
                  %v578 = vld [vmem:[%s518 + $0x1d0] sm:$0xff]
                  %579 = vst [vmem:[%s519 + $0xe8] sm:$0xff] %v578
                  %v580 = vld [vmem:[%s518 + $0x1e0] sm:$0xff]
                  %581 = vst [vmem:[%s519 + $0xf0] sm:$0xff] %v580
                  %v582 = vld [vmem:[%s518 + $0x1f0] sm:$0xff]
                  %583 = vst [vmem:[%s519 + $0xf8] sm:$0xff] %v582
                $region100: #{swin_block_forward.1} parent=94 // loop_footer
                  %s517 = sadd.s32 1, %s513
                $region101: #{swin_block_forward.1} parent=94 // loop_footer_branch
                  %512 = sbr.rel target = $region97
                $region102: #{swin_block_forward.1} parent=94 // loop_exit
                  _
              $region95: #{swin_block_forward.1} parent=79 // pred_fallthru
                _
              // Predicated region
              $region103: #{swin_block_forward.1} parent=79 // pred_check
                _
              $region104: #{swin_block_forward.1} parent=79 // pred_check_branch
                %585 = sbr.rel target = $region106
              $region105: #{swin_block_forward.1} parent=79 // pred_region
                _
              $region106: #{swin_block_forward.1} parent=79 // pred_fallthru
                _
            $region80: #{swin_block_forward.1} parent=75 // pred_fallthru
              _
            // Predicated region
            $region81: #{swin_block_forward.1} parent=75 // pred_check
              _
            $region82: #{swin_block_forward.1} parent=75 // pred_check_branch
              %436 = sbr.rel target = $region84
            $region83: #{swin_block_forward.1} parent=75 // pred_region
              loop: start=0, step=1, limit=1
              $region85: #{swin_block_forward.1} parent=83 // loop_pre_header
                _
              $region86: #{swin_block_forward.1} parent=83 // loop_header
                %s439 = sphi 0, %s443
                %p440 = scmp.ge.s32.totalorder %s439, 1
                %s444 = sphi %s430, %s430
                %s445 = sphi %s425, %s425
              $region87: #{swin_block_forward.1} parent=83 // loop_header_branch
                %442 = sbr.rel (%p440) target = $region91
              $region88: #{swin_block_forward.1} parent=83 // loop_body
                %v446 = vld [vmem:[%s444] sm:$0xff]
                %447 = vst [vmem:[%s445] sm:$0xff] %v446
                %v448 = vld [vmem:[%s444 + $0x10] sm:$0xff]
                %449 = vst [vmem:[%s445 + $0x8] sm:$0xff] %v448
                %v450 = vld [vmem:[%s444 + $0x20] sm:$0xff]
                %451 = vst [vmem:[%s445 + $0x10] sm:$0xff] %v450
                %v452 = vld [vmem:[%s444 + $0x30] sm:$0xff]
                %453 = vst [vmem:[%s445 + $0x18] sm:$0xff] %v452
                %v454 = vld [vmem:[%s444 + $0x40] sm:$0xff]
                %455 = vst [vmem:[%s445 + $0x20] sm:$0xff] %v454
                %v456 = vld [vmem:[%s444 + $0x50] sm:$0xff]
                %457 = vst [vmem:[%s445 + $0x28] sm:$0xff] %v456
                %v458 = vld [vmem:[%s444 + $0x60] sm:$0xff]
                %459 = vst [vmem:[%s445 + $0x30] sm:$0xff] %v458
                %v460 = vld [vmem:[%s444 + $0x70] sm:$0xff]
                %461 = vst [vmem:[%s445 + $0x38] sm:$0xff] %v460
                %v462 = vld [vmem:[%s444 + $0x80] sm:$0xff]
                %463 = vst [vmem:[%s445 + $0x40] sm:$0xff] %v462
                %v464 = vld [vmem:[%s444 + $0x90] sm:$0xff]
                %465 = vst [vmem:[%s445 + $0x48] sm:$0xff] %v464
                %v466 = vld [vmem:[%s444 + $0xa0] sm:$0xff]
                %467 = vst [vmem:[%s445 + $0x50] sm:$0xff] %v466
                %v468 = vld [vmem:[%s444 + $0xb0] sm:$0xff]
                %469 = vst [vmem:[%s445 + $0x58] sm:$0xff] %v468
                %v470 = vld [vmem:[%s444 + $0xc0] sm:$0xff]
                %471 = vst [vmem:[%s445 + $0x60] sm:$0xff] %v470
                %v472 = vld [vmem:[%s444 + $0xd0] sm:$0xff]
                %473 = vst [vmem:[%s445 + $0x68] sm:$0xff] %v472
                %v474 = vld [vmem:[%s444 + $0xe0] sm:$0xff]
                %475 = vst [vmem:[%s445 + $0x70] sm:$0xff] %v474
                %v476 = vld [vmem:[%s444 + $0xf0] sm:$0xff]
                %477 = vst [vmem:[%s445 + $0x78] sm:$0xff] %v476
                %v478 = vld [vmem:[%s444 + $0x100] sm:$0xff]
                %479 = vst [vmem:[%s445 + $0x80] sm:$0xff] %v478
                %v480 = vld [vmem:[%s444 + $0x110] sm:$0xff]
                %481 = vst [vmem:[%s445 + $0x88] sm:$0xff] %v480
                %v482 = vld [vmem:[%s444 + $0x120] sm:$0xff]
                %483 = vst [vmem:[%s445 + $0x90] sm:$0xff] %v482
                %v484 = vld [vmem:[%s444 + $0x130] sm:$0xff]
                %485 = vst [vmem:[%s445 + $0x98] sm:$0xff] %v484
                %v486 = vld [vmem:[%s444 + $0x140] sm:$0xff]
                %487 = vst [vmem:[%s445 + $0xa0] sm:$0xff] %v486
                %v488 = vld [vmem:[%s444 + $0x150] sm:$0xff]
                %489 = vst [vmem:[%s445 + $0xa8] sm:$0xff] %v488
                %v490 = vld [vmem:[%s444 + $0x160] sm:$0xff]
                %491 = vst [vmem:[%s445 + $0xb0] sm:$0xff] %v490
                %v492 = vld [vmem:[%s444 + $0x170] sm:$0xff]
                %493 = vst [vmem:[%s445 + $0xb8] sm:$0xff] %v492
                %v494 = vld [vmem:[%s444 + $0x180] sm:$0xff]
                %495 = vst [vmem:[%s445 + $0xc0] sm:$0xff] %v494
                %v496 = vld [vmem:[%s444 + $0x190] sm:$0xff]
                %497 = vst [vmem:[%s445 + $0xc8] sm:$0xff] %v496
                %v498 = vld [vmem:[%s444 + $0x1a0] sm:$0xff]
                %499 = vst [vmem:[%s445 + $0xd0] sm:$0xff] %v498
                %v500 = vld [vmem:[%s444 + $0x1b0] sm:$0xff]
                %501 = vst [vmem:[%s445 + $0xd8] sm:$0xff] %v500
                %v502 = vld [vmem:[%s444 + $0x1c0] sm:$0xff]
                %503 = vst [vmem:[%s445 + $0xe0] sm:$0xff] %v502
                %v504 = vld [vmem:[%s444 + $0x1d0] sm:$0xff]
                %505 = vst [vmem:[%s445 + $0xe8] sm:$0xff] %v504
                %v506 = vld [vmem:[%s444 + $0x1e0] sm:$0xff]
                %507 = vst [vmem:[%s445 + $0xf0] sm:$0xff] %v506
                %v508 = vld [vmem:[%s444 + $0x1f0] sm:$0xff]
                %509 = vst [vmem:[%s445 + $0xf8] sm:$0xff] %v508
              $region89: #{swin_block_forward.1} parent=83 // loop_footer
                %s443 = sadd.s32 1, %s439
              $region90: #{swin_block_forward.1} parent=83 // loop_footer_branch
                %438 = sbr.rel target = $region86
              $region91: #{swin_block_forward.1} parent=83 // loop_exit
                _
            $region84: #{swin_block_forward.1} parent=75 // pred_fallthru
              _
          $region76: #{swin_block_forward.1} parent=71 // pred_fallthru
            _
          %586 = vnop
        $region72: #{swin_block_forward.1} parent=67 // pred_fallthru
          _
      $region68: #{swin_block_forward.1} parent=5 // pred_fallthru
        _
      %p587 = scmp.le.s32.totalorder 1, %s20
      %p588 = scmp.lt.s32.totalorder %s20, 3
      %p589 = pnand %p587, %p588
      %p590 = pneg %p589
      // Predicated region
      $region107: #{swin_block_forward.1} parent=5 // pred_check
        _
      $region108: #{swin_block_forward.1} parent=5 // pred_check_branch
        %592 = sbr.rel (%p589) target = $region110
      $region109: #{swin_block_forward.1} parent=5 // pred_region
        %s593 = ssub.s32 %s20, 1
        %s594 = sand.u32 %s47, 1
        %s595 = sand.u32 %s47, 1
        %s596 = smul.addr %s595, 256
        %s597 = scalar_lea.vmem [#allocation2], %s596
        // Predicated region
        $region111: #{swin_block_forward.1} parent=109 // pred_check
          %p598 = pneg %p60
        $region112: #{swin_block_forward.1} parent=109 // pred_check_branch
          %600 = sbr.rel (%p598) target = $region114
        $region113: #{swin_block_forward.1} parent=109 // pred_region
          _
        $region114: #{swin_block_forward.1} parent=109 // pred_fallthru
          _
        %s601 = sand.u32 %s47, 1
        %s602 = sand.u32 %s47, 1
        %s603 = smul.addr %s602, 256
        %s604 = scalar_lea.vmem [#allocation2], %s603
        %p605 = pneg %p60
        %p606 = pneg %p57
        %p607 = pneg %p81
        %p608 = pneg %p78
        %p609 = pneg %p102
        %p610 = pneg %p99
        %p611 = pneg %p123
        %p612 = pneg %p120
        %p613 = pneg %p144
        %p614 = pneg %p141
        %p615 = pneg %p165
        %p616 = pneg %p162
        %p617 = pneg %p186
        %p618 = pneg %p183
        %p619 = pneg %p207
        %p620 = pneg %p204
        %p621 = pneg %p228
        %p622 = pneg %p225
        %p623 = pneg %p249
        %p624 = pneg %p246
        %p625 = pneg %p270
        %p626 = pneg %p267
        %p627 = pneg %p291
        %p628 = pneg %p288
        %p629 = pneg %p312
        %p630 = pneg %p309
        %p631 = pneg %p333
        %p632 = pneg %p330
        %p633 = pneg %p361
        %p634 = pneg %p358
        %s635 = sand.u32 %s348, 1
        %s636 = sand.u32 %s348, 1
        %s637 = smul.addr %s636, 256
        %s638 = scalar_lea.vmem [#allocation3], %s637
        %s639 = smul.u32 4, %s29
        %s640 = smul.u32 4, %s29
        %v642 = vld [vmem:[%s597] sm:$0xff]
        %v643 = vld [vmem:[%s597 + $0x8] sm:$0xff]
        %v644 = vld [vmem:[%s597 + $0x10] sm:$0xff]
        %v645 = vld [vmem:[%s597 + $0x18] sm:$0xff]
        %v646 = vld [vmem:[%s597 + $0x20] sm:$0xff]
        %v647 = vld [vmem:[%s597 + $0x28] sm:$0xff]
        %v648 = vld [vmem:[%s597 + $0x30] sm:$0xff]
        %v649 = vld [vmem:[%s597 + $0x38] sm:$0xff]
        %v650 = vld [vmem:[%s597 + $0x40] sm:$0xff]
        %v651 = vld [vmem:[%s597 + $0x48] sm:$0xff]
        %v652 = vld [vmem:[%s597 + $0x50] sm:$0xff]
        %v653 = vld [vmem:[%s597 + $0x58] sm:$0xff]
        %v654 = vld [vmem:[%s597 + $0x60] sm:$0xff]
        %v655 = vld [vmem:[%s597 + $0x68] sm:$0xff]
        %v656 = vld [vmem:[%s597 + $0x70] sm:$0xff]
        %v657 = vld [vmem:[%s597 + $0x78] sm:$0xff]
        %v658 = vld [vmem:[%s597 + $0x80] sm:$0xff]
        %v659 = vld [vmem:[%s597 + $0x88] sm:$0xff]
        %v660 = vld [vmem:[%s597 + $0x90] sm:$0xff]
        %v661 = vld [vmem:[%s597 + $0x98] sm:$0xff]
        %v662 = vld [vmem:[%s597 + $0xa0] sm:$0xff]
        %v663 = vld [vmem:[%s597 + $0xa8] sm:$0xff]
        %v664 = vld [vmem:[%s597 + $0xb0] sm:$0xff]
        %v665 = vld [vmem:[%s597 + $0xb8] sm:$0xff]
        %v666 = vld [vmem:[%s597 + $0xc0] sm:$0xff]
        %v667 = vld [vmem:[%s597 + $0xc8] sm:$0xff]
        %v668 = vld [vmem:[%s597 + $0xd0] sm:$0xff]
        %v669 = vld [vmem:[%s597 + $0xd8] sm:$0xff]
        %v670 = vld [vmem:[%s597 + $0xe0] sm:$0xff]
        %v671 = vld [vmem:[%s597 + $0xe8] sm:$0xff]
        %v672 = vld [vmem:[%s597 + $0xf0] sm:$0xff]
        %v673 = vld [vmem:[%s597 + $0xf8] sm:$0xff]
        %v674 = vld [vmem:[%s2] sm:$0x1]
        %v675 = vld [vmem:[%s3] sm:$0x1]
        %vm676 = vcmask 261120
        %v677 = vsel %vm676, %v642, 0.0
        %678 = vadd.xlane.f32.xlu0 %v677
        %v679 = vpop.xlane.xlu0 %678
        %v680 = vsel %vm676, %v643, 0.0
        %681 = vadd.xlane.f32.xlu0 %v680
        %v682 = vpop.xlane.xlu0 %681
        %v683 = vsel %vm676, %v644, 0.0
        %684 = vadd.xlane.f32.xlu0 %v683
        %v685 = vpop.xlane.xlu0 %684
        %v686 = vsel %vm676, %v645, 0.0
        %687 = vadd.xlane.f32.xlu0 %v686
        %v688 = vpop.xlane.xlu0 %687
        %v689 = vsel %vm676, %v646, 0.0
        %690 = vadd.xlane.f32.xlu0 %v689
        %v691 = vpop.xlane.xlu0 %690
        %v692 = vsel %vm676, %v647, 0.0
        %693 = vadd.xlane.f32.xlu0 %v692
        %v694 = vpop.xlane.xlu0 %693
        %v695 = vsel %vm676, %v648, 0.0
        %696 = vadd.xlane.f32.xlu0 %v695
        %v697 = vpop.xlane.xlu0 %696
        %v698 = vsel %vm676, %v649, 0.0
        %699 = vadd.xlane.f32.xlu0 %v698
        %v700 = vpop.xlane.xlu0 %699
        %v701 = vsel %vm676, %v650, 0.0
        %702 = vadd.xlane.f32.xlu0 %v701
        %v703 = vpop.xlane.xlu0 %702
        %v704 = vsel %vm676, %v651, 0.0
        %705 = vadd.xlane.f32.xlu0 %v704
        %v706 = vpop.xlane.xlu0 %705
        %v707 = vsel %vm676, %v652, 0.0
        %708 = vadd.xlane.f32.xlu0 %v707
        %v709 = vpop.xlane.xlu0 %708
        %v710 = vsel %vm676, %v653, 0.0
        %711 = vadd.xlane.f32.xlu0 %v710
        %v712 = vpop.xlane.xlu0 %711
        %v713 = vsel %vm676, %v654, 0.0
        %714 = vadd.xlane.f32.xlu0 %v713
        %v715 = vpop.xlane.xlu0 %714
        %v716 = vsel %vm676, %v655, 0.0
        %717 = vadd.xlane.f32.xlu0 %v716
        %v718 = vpop.xlane.xlu0 %717
        %v719 = vsel %vm676, %v656, 0.0
        %720 = vadd.xlane.f32.xlu0 %v719
        %v721 = vpop.xlane.xlu0 %720
        %v722 = vsel %vm676, %v657, 0.0
        %723 = vadd.xlane.f32.xlu0 %v722
        %v724 = vpop.xlane.xlu0 %723
        %v725 = vsel %vm676, %v658, 0.0
        %726 = vadd.xlane.f32.xlu0 %v725
        %v727 = vpop.xlane.xlu0 %726
        %v728 = vsel %vm676, %v659, 0.0
        %729 = vadd.xlane.f32.xlu0 %v728
        %v730 = vpop.xlane.xlu0 %729
        %v731 = vsel %vm676, %v660, 0.0
        %732 = vadd.xlane.f32.xlu0 %v731
        %v733 = vpop.xlane.xlu0 %732
        %v734 = vsel %vm676, %v661, 0.0
        %735 = vadd.xlane.f32.xlu0 %v734
        %v736 = vpop.xlane.xlu0 %735
        %v737 = vsel %vm676, %v662, 0.0
        %738 = vadd.xlane.f32.xlu0 %v737
        %v739 = vpop.xlane.xlu0 %738
        %v740 = vsel %vm676, %v663, 0.0
        %741 = vadd.xlane.f32.xlu0 %v740
        %v742 = vpop.xlane.xlu0 %741
        %v743 = vsel %vm676, %v664, 0.0
        %744 = vadd.xlane.f32.xlu0 %v743
        %v745 = vpop.xlane.xlu0 %744
        %v746 = vsel %vm676, %v665, 0.0
        %747 = vadd.xlane.f32.xlu0 %v746
        %v748 = vpop.xlane.xlu0 %747
        %v749 = vsel %vm676, %v666, 0.0
        %750 = vadd.xlane.f32.xlu0 %v749
        %v751 = vpop.xlane.xlu0 %750
        %v752 = vsel %vm676, %v667, 0.0
        %753 = vadd.xlane.f32.xlu0 %v752
        %v754 = vpop.xlane.xlu0 %753
        %v755 = vsel %vm676, %v668, 0.0
        %756 = vadd.xlane.f32.xlu0 %v755
        %v757 = vpop.xlane.xlu0 %756
        %v758 = vsel %vm676, %v669, 0.0
        %759 = vadd.xlane.f32.xlu0 %v758
        %v760 = vpop.xlane.xlu0 %759
        %v761 = vsel %vm676, %v670, 0.0
        %762 = vadd.xlane.f32.xlu0 %v761
        %v763 = vpop.xlane.xlu0 %762
        %v764 = vsel %vm676, %v671, 0.0
        %765 = vadd.xlane.f32.xlu0 %v764
        %v766 = vpop.xlane.xlu0 %765
        %v767 = vsel %vm676, %v672, 0.0
        %768 = vadd.xlane.f32.xlu0 %v767
        %v769 = vpop.xlane.xlu0 %768
        %v770 = vsel %vm676, %v673, 0.0
        %771 = vadd.xlane.f32.xlu0 %v770
        %v772 = vpop.xlane.xlu0 %771
        %v773 = vrcp.pop 32.0
        %v774 = vmul.f32 %v679, %v773
        %v775 = vmul.f32 %v682, %v773
        %v776 = vmul.f32 %v685, %v773
        %v777 = vmul.f32 %v688, %v773
        %v778 = vmul.f32 %v691, %v773
        %v779 = vmul.f32 %v694, %v773
        %v780 = vmul.f32 %v697, %v773
        %v781 = vmul.f32 %v700, %v773
        %v782 = vmul.f32 %v703, %v773
        %v783 = vmul.f32 %v706, %v773
        %v784 = vmul.f32 %v709, %v773
        %v785 = vmul.f32 %v712, %v773
        %v786 = vmul.f32 %v715, %v773
        %v787 = vmul.f32 %v718, %v773
        %v788 = vmul.f32 %v721, %v773
        %v789 = vmul.f32 %v724, %v773
        %v790 = vmul.f32 %v727, %v773
        %v791 = vmul.f32 %v730, %v773
        %v792 = vmul.f32 %v733, %v773
        %v793 = vmul.f32 %v736, %v773
        %v794 = vmul.f32 %v739, %v773
        %v795 = vmul.f32 %v742, %v773
        %v796 = vmul.f32 %v745, %v773
        %v797 = vmul.f32 %v748, %v773
        %v798 = vmul.f32 %v751, %v773
        %v799 = vmul.f32 %v754, %v773
        %v800 = vmul.f32 %v757, %v773
        %v801 = vmul.f32 %v760, %v773
        %v802 = vmul.f32 %v763, %v773
        %v803 = vmul.f32 %v766, %v773
        %v804 = vmul.f32 %v769, %v773
        %v805 = vmul.f32 %v772, %v773
        %v806 = vsub.f32 %v642, %v774
        %v807 = vsub.f32 %v643, %v775
        %v808 = vsub.f32 %v644, %v776
        %v809 = vsub.f32 %v645, %v777
        %v810 = vsub.f32 %v646, %v778
        %v811 = vsub.f32 %v647, %v779
        %v812 = vsub.f32 %v648, %v780
        %v813 = vsub.f32 %v649, %v781
        %v814 = vsub.f32 %v650, %v782
        %v815 = vsub.f32 %v651, %v783
        %v816 = vsub.f32 %v652, %v784
        %v817 = vsub.f32 %v653, %v785
        %v818 = vsub.f32 %v654, %v786
        %v819 = vsub.f32 %v655, %v787
        %v820 = vsub.f32 %v656, %v788
        %v821 = vsub.f32 %v657, %v789
        %v822 = vsub.f32 %v658, %v790
        %v823 = vsub.f32 %v659, %v791
        %v824 = vsub.f32 %v660, %v792
        %v825 = vsub.f32 %v661, %v793
        %v826 = vsub.f32 %v662, %v794
        %v827 = vsub.f32 %v663, %v795
        %v828 = vsub.f32 %v664, %v796
        %v829 = vsub.f32 %v665, %v797
        %v830 = vsub.f32 %v666, %v798
        %v831 = vsub.f32 %v667, %v799
        %v832 = vsub.f32 %v668, %v800
        %v833 = vsub.f32 %v669, %v801
        %v834 = vsub.f32 %v670, %v802
        %v835 = vsub.f32 %v671, %v803
        %v836 = vsub.f32 %v672, %v804
        %v837 = vsub.f32 %v673, %v805
        %v838 = vmul.f32 %v806, %v806
        %v839 = vmul.f32 %v807, %v807
        %v840 = vmul.f32 %v808, %v808
        %v841 = vmul.f32 %v809, %v809
        %v842 = vmul.f32 %v810, %v810
        %v843 = vmul.f32 %v811, %v811
        %v844 = vmul.f32 %v812, %v812
        %v845 = vmul.f32 %v813, %v813
        %v846 = vmul.f32 %v814, %v814
        %v847 = vmul.f32 %v815, %v815
        %v848 = vmul.f32 %v816, %v816
        %v849 = vmul.f32 %v817, %v817
        %v850 = vmul.f32 %v818, %v818
        %v851 = vmul.f32 %v819, %v819
        %v852 = vmul.f32 %v820, %v820
        %v853 = vmul.f32 %v821, %v821
        %v854 = vmul.f32 %v822, %v822
        %v855 = vmul.f32 %v823, %v823
        %v856 = vmul.f32 %v824, %v824
        %v857 = vmul.f32 %v825, %v825
        %v858 = vmul.f32 %v826, %v826
        %v859 = vmul.f32 %v827, %v827
        %v860 = vmul.f32 %v828, %v828
        %v861 = vmul.f32 %v829, %v829
        %v862 = vmul.f32 %v830, %v830
        %v863 = vmul.f32 %v831, %v831
        %v864 = vmul.f32 %v832, %v832
        %v865 = vmul.f32 %v833, %v833
        %v866 = vmul.f32 %v834, %v834
        %v867 = vmul.f32 %v835, %v835
        %v868 = vmul.f32 %v836, %v836
        %v869 = vmul.f32 %v837, %v837
        %v870 = vsel %vm676, %v838, 0.0
        %871 = vadd.xlane.f32.xlu0 %v870
        %v872 = vpop.xlane.xlu0 %871
        %v873 = vsel %vm676, %v839, 0.0
        %874 = vadd.xlane.f32.xlu0 %v873
        %v875 = vpop.xlane.xlu0 %874
        %v876 = vsel %vm676, %v840, 0.0
        %877 = vadd.xlane.f32.xlu0 %v876
        %v878 = vpop.xlane.xlu0 %877
        %v879 = vsel %vm676, %v841, 0.0
        %880 = vadd.xlane.f32.xlu0 %v879
        %v881 = vpop.xlane.xlu0 %880
        %v882 = vsel %vm676, %v842, 0.0
        %883 = vadd.xlane.f32.xlu0 %v882
        %v884 = vpop.xlane.xlu0 %883
        %v885 = vsel %vm676, %v843, 0.0
        %886 = vadd.xlane.f32.xlu0 %v885
        %v887 = vpop.xlane.xlu0 %886
        %v888 = vsel %vm676, %v844, 0.0
        %889 = vadd.xlane.f32.xlu0 %v888
        %v890 = vpop.xlane.xlu0 %889
        %v891 = vsel %vm676, %v845, 0.0
        %892 = vadd.xlane.f32.xlu0 %v891
        %v893 = vpop.xlane.xlu0 %892
        %v894 = vsel %vm676, %v846, 0.0
        %895 = vadd.xlane.f32.xlu0 %v894
        %v896 = vpop.xlane.xlu0 %895
        %v897 = vsel %vm676, %v847, 0.0
        %898 = vadd.xlane.f32.xlu0 %v897
        %v899 = vpop.xlane.xlu0 %898
        %v900 = vsel %vm676, %v848, 0.0
        %901 = vadd.xlane.f32.xlu0 %v900
        %v902 = vpop.xlane.xlu0 %901
        %v903 = vsel %vm676, %v849, 0.0
        %904 = vadd.xlane.f32.xlu0 %v903
        %v905 = vpop.xlane.xlu0 %904
        %v906 = vsel %vm676, %v850, 0.0
        %907 = vadd.xlane.f32.xlu0 %v906
        %v908 = vpop.xlane.xlu0 %907
        %v909 = vsel %vm676, %v851, 0.0
        %910 = vadd.xlane.f32.xlu0 %v909
        %v911 = vpop.xlane.xlu0 %910
        %v912 = vsel %vm676, %v852, 0.0
        %913 = vadd.xlane.f32.xlu0 %v912
        %v914 = vpop.xlane.xlu0 %913
        %v915 = vsel %vm676, %v853, 0.0
        %916 = vadd.xlane.f32.xlu0 %v915
        %v917 = vpop.xlane.xlu0 %916
        %v918 = vsel %vm676, %v854, 0.0
        %919 = vadd.xlane.f32.xlu0 %v918
        %v920 = vpop.xlane.xlu0 %919
        %v921 = vsel %vm676, %v855, 0.0
        %922 = vadd.xlane.f32.xlu0 %v921
        %v923 = vpop.xlane.xlu0 %922
        %v924 = vsel %vm676, %v856, 0.0
        %925 = vadd.xlane.f32.xlu0 %v924
        %v926 = vpop.xlane.xlu0 %925
        %v927 = vsel %vm676, %v857, 0.0
        %928 = vadd.xlane.f32.xlu0 %v927
        %v929 = vpop.xlane.xlu0 %928
        %v930 = vsel %vm676, %v858, 0.0
        %931 = vadd.xlane.f32.xlu0 %v930
        %v932 = vpop.xlane.xlu0 %931
        %v933 = vsel %vm676, %v859, 0.0
        %934 = vadd.xlane.f32.xlu0 %v933
        %v935 = vpop.xlane.xlu0 %934
        %v936 = vsel %vm676, %v860, 0.0
        %937 = vadd.xlane.f32.xlu0 %v936
        %v938 = vpop.xlane.xlu0 %937
        %v939 = vsel %vm676, %v861, 0.0
        %940 = vadd.xlane.f32.xlu0 %v939
        %v941 = vpop.xlane.xlu0 %940
        %v942 = vsel %vm676, %v862, 0.0
        %943 = vadd.xlane.f32.xlu0 %v942
        %v944 = vpop.xlane.xlu0 %943
        %v945 = vsel %vm676, %v863, 0.0
        %946 = vadd.xlane.f32.xlu0 %v945
        %v947 = vpop.xlane.xlu0 %946
        %v948 = vsel %vm676, %v864, 0.0
        %949 = vadd.xlane.f32.xlu0 %v948
        %v950 = vpop.xlane.xlu0 %949
        %v951 = vsel %vm676, %v865, 0.0
        %952 = vadd.xlane.f32.xlu0 %v951
        %v953 = vpop.xlane.xlu0 %952
        %v954 = vsel %vm676, %v866, 0.0
        %955 = vadd.xlane.f32.xlu0 %v954
        %v956 = vpop.xlane.xlu0 %955
        %v957 = vsel %vm676, %v867, 0.0
        %958 = vadd.xlane.f32.xlu0 %v957
        %v959 = vpop.xlane.xlu0 %958
        %v960 = vsel %vm676, %v868, 0.0
        %961 = vadd.xlane.f32.xlu0 %v960
        %v962 = vpop.xlane.xlu0 %961
        %v963 = vsel %vm676, %v869, 0.0
        %964 = vadd.xlane.f32.xlu0 %v963
        %v965 = vpop.xlane.xlu0 %964
        %v966 = vmul.f32 %v872, %v773
        %v967 = vmul.f32 %v875, %v773
        %v968 = vmul.f32 %v878, %v773
        %v969 = vmul.f32 %v881, %v773
        %v970 = vmul.f32 %v884, %v773
        %v971 = vmul.f32 %v887, %v773
        %v972 = vmul.f32 %v890, %v773
        %v973 = vmul.f32 %v893, %v773
        %v974 = vmul.f32 %v896, %v773
        %v975 = vmul.f32 %v899, %v773
        %v976 = vmul.f32 %v902, %v773
        %v977 = vmul.f32 %v905, %v773
        %v978 = vmul.f32 %v908, %v773
        %v979 = vmul.f32 %v911, %v773
        %v980 = vmul.f32 %v914, %v773
        %v981 = vmul.f32 %v917, %v773
        %v982 = vmul.f32 %v920, %v773
        %v983 = vmul.f32 %v923, %v773
        %v984 = vmul.f32 %v926, %v773
        %v985 = vmul.f32 %v929, %v773
        %v986 = vmul.f32 %v932, %v773
        %v987 = vmul.f32 %v935, %v773
        %v988 = vmul.f32 %v938, %v773
        %v989 = vmul.f32 %v941, %v773
        %v990 = vmul.f32 %v944, %v773
        %v991 = vmul.f32 %v947, %v773
        %v992 = vmul.f32 %v950, %v773
        %v993 = vmul.f32 %v953, %v773
        %v994 = vmul.f32 %v956, %v773
        %v995 = vmul.f32 %v959, %v773
        %v996 = vmul.f32 %v962, %v773
        %v997 = vmul.f32 %v965, %v773
        %v998 = vadd.f32 %v966, 1e-05
        %v999 = vadd.f32 %v967, 1e-05
        %v1000 = vadd.f32 %v968, 1e-05
        %v1001 = vadd.f32 %v969, 1e-05
        %v1002 = vadd.f32 %v970, 1e-05
        %v1003 = vadd.f32 %v971, 1e-05
        %v1004 = vadd.f32 %v972, 1e-05
        %v1005 = vadd.f32 %v973, 1e-05
        %v1006 = vadd.f32 %v974, 1e-05
        %v1007 = vadd.f32 %v975, 1e-05
        %v1008 = vadd.f32 %v976, 1e-05
        %v1009 = vadd.f32 %v977, 1e-05
        %v1010 = vadd.f32 %v978, 1e-05
        %v1011 = vadd.f32 %v979, 1e-05
        %v1012 = vadd.f32 %v980, 1e-05
        %v1013 = vadd.f32 %v981, 1e-05
        %v1014 = vadd.f32 %v982, 1e-05
        %v1015 = vadd.f32 %v983, 1e-05
        %v1016 = vadd.f32 %v984, 1e-05
        %v1017 = vadd.f32 %v985, 1e-05
        %v1018 = vadd.f32 %v986, 1e-05
        %v1019 = vadd.f32 %v987, 1e-05
        %v1020 = vadd.f32 %v988, 1e-05
        %v1021 = vadd.f32 %v989, 1e-05
        %v1022 = vadd.f32 %v990, 1e-05
        %v1023 = vadd.f32 %v991, 1e-05
        %v1024 = vadd.f32 %v992, 1e-05
        %v1025 = vadd.f32 %v993, 1e-05
        %v1026 = vadd.f32 %v994, 1e-05
        %v1027 = vadd.f32 %v995, 1e-05
        %v1028 = vadd.f32 %v996, 1e-05
        %v1029 = vadd.f32 %v997, 1e-05
        %v1030 = vrsqrt.pop %v998
        %v1031 = vrsqrt.pop %v999
        %v1032 = vrsqrt.pop %v1000
        %v1033 = vrsqrt.pop %v1001
        %v1034 = vrsqrt.pop %v1002
        %v1035 = vrsqrt.pop %v1003
        %v1036 = vrsqrt.pop %v1004
        %v1037 = vrsqrt.pop %v1005
        %v1038 = vrsqrt.pop %v1006
        %v1039 = vrsqrt.pop %v1007
        %v1040 = vrsqrt.pop %v1008
        %v1041 = vrsqrt.pop %v1009
        %v1042 = vrsqrt.pop %v1010
        %v1043 = vrsqrt.pop %v1011
        %v1044 = vrsqrt.pop %v1012
        %v1045 = vrsqrt.pop %v1013
        %v1046 = vrsqrt.pop %v1014
        %v1047 = vrsqrt.pop %v1015
        %v1048 = vrsqrt.pop %v1016
        %v1049 = vrsqrt.pop %v1017
        %v1050 = vrsqrt.pop %v1018
        %v1051 = vrsqrt.pop %v1019
        %v1052 = vrsqrt.pop %v1020
        %v1053 = vrsqrt.pop %v1021
        %v1054 = vrsqrt.pop %v1022
        %v1055 = vrsqrt.pop %v1023
        %v1056 = vrsqrt.pop %v1024
        %v1057 = vrsqrt.pop %v1025
        %v1058 = vrsqrt.pop %v1026
        %v1059 = vrsqrt.pop %v1027
        %v1060 = vrsqrt.pop %v1028
        %v1061 = vrsqrt.pop %v1029
        %v1062 = vmul.f32 %v806, %v1030
        %v1063 = vmul.f32 %v807, %v1031
        %v1064 = vmul.f32 %v808, %v1032
        %v1065 = vmul.f32 %v809, %v1033
        %v1066 = vmul.f32 %v810, %v1034
        %v1067 = vmul.f32 %v811, %v1035
        %v1068 = vmul.f32 %v812, %v1036
        %v1069 = vmul.f32 %v813, %v1037
        %v1070 = vmul.f32 %v814, %v1038
        %v1071 = vmul.f32 %v815, %v1039
        %v1072 = vmul.f32 %v816, %v1040
        %v1073 = vmul.f32 %v817, %v1041
        %v1074 = vmul.f32 %v818, %v1042
        %v1075 = vmul.f32 %v819, %v1043
        %v1076 = vmul.f32 %v820, %v1044
        %v1077 = vmul.f32 %v821, %v1045
        %v1078 = vmul.f32 %v822, %v1046
        %v1079 = vmul.f32 %v823, %v1047
        %v1080 = vmul.f32 %v824, %v1048
        %v1081 = vmul.f32 %v825, %v1049
        %v1082 = vmul.f32 %v826, %v1050
        %v1083 = vmul.f32 %v827, %v1051
        %v1084 = vmul.f32 %v828, %v1052
        %v1085 = vmul.f32 %v829, %v1053
        %v1086 = vmul.f32 %v830, %v1054
        %v1087 = vmul.f32 %v831, %v1055
        %v1088 = vmul.f32 %v832, %v1056
        %v1089 = vmul.f32 %v833, %v1057
        %v1090 = vmul.f32 %v834, %v1058
        %v1091 = vmul.f32 %v835, %v1059
        %v1092 = vmul.f32 %v836, %v1060
        %v1093 = vmul.f32 %v837, %v1061
        %v1095 = vlaneseq
        %v1096 = vshrl.u32 %v1095, 7
        %v1097 = vsub.s32 0, %v1096
        %v1098 = vrot.slane %v674, %v1097
        %v1100 = vmul.f32 %v1062, %v1098
        %v1101 = vmul.f32 %v1063, %v1098
        %v1102 = vmul.f32 %v1064, %v1098
        %v1103 = vmul.f32 %v1065, %v1098
        %v1104 = vmul.f32 %v1066, %v1098
        %v1105 = vmul.f32 %v1067, %v1098
        %v1106 = vmul.f32 %v1068, %v1098
        %v1107 = vmul.f32 %v1069, %v1098
        %v1108 = vmul.f32 %v1070, %v1098
        %v1109 = vmul.f32 %v1071, %v1098
        %v1110 = vmul.f32 %v1072, %v1098
        %v1111 = vmul.f32 %v1073, %v1098
        %v1112 = vmul.f32 %v1074, %v1098
        %v1113 = vmul.f32 %v1075, %v1098
        %v1114 = vmul.f32 %v1076, %v1098
        %v1115 = vmul.f32 %v1077, %v1098
        %v1116 = vmul.f32 %v1078, %v1098
        %v1117 = vmul.f32 %v1079, %v1098
        %v1118 = vmul.f32 %v1080, %v1098
        %v1119 = vmul.f32 %v1081, %v1098
        %v1120 = vmul.f32 %v1082, %v1098
        %v1121 = vmul.f32 %v1083, %v1098
        %v1122 = vmul.f32 %v1084, %v1098
        %v1123 = vmul.f32 %v1085, %v1098
        %v1124 = vmul.f32 %v1086, %v1098
        %v1125 = vmul.f32 %v1087, %v1098
        %v1126 = vmul.f32 %v1088, %v1098
        %v1127 = vmul.f32 %v1089, %v1098
        %v1128 = vmul.f32 %v1090, %v1098
        %v1129 = vmul.f32 %v1091, %v1098
        %v1130 = vmul.f32 %v1092, %v1098
        %v1131 = vmul.f32 %v1093, %v1098
        %v1133 = vlaneseq
        %v1134 = vshrl.u32 %v1133, 7
        %v1135 = vsub.s32 0, %v1134
        %v1136 = vrot.slane %v675, %v1135
        %v1138 = vadd.f32 %v1100, %v1136
        %v1139 = vadd.f32 %v1101, %v1136
        %v1140 = vadd.f32 %v1102, %v1136
        %v1141 = vadd.f32 %v1103, %v1136
        %v1142 = vadd.f32 %v1104, %v1136
        %v1143 = vadd.f32 %v1105, %v1136
        %v1144 = vadd.f32 %v1106, %v1136
        %v1145 = vadd.f32 %v1107, %v1136
        %v1146 = vadd.f32 %v1108, %v1136
        %v1147 = vadd.f32 %v1109, %v1136
        %v1148 = vadd.f32 %v1110, %v1136
        %v1149 = vadd.f32 %v1111, %v1136
        %v1150 = vadd.f32 %v1112, %v1136
        %v1151 = vadd.f32 %v1113, %v1136
        %v1152 = vadd.f32 %v1114, %v1136
        %v1153 = vadd.f32 %v1115, %v1136
        %v1154 = vadd.f32 %v1116, %v1136
        %v1155 = vadd.f32 %v1117, %v1136
        %v1156 = vadd.f32 %v1118, %v1136
        %v1157 = vadd.f32 %v1119, %v1136
        %v1158 = vadd.f32 %v1120, %v1136
        %v1159 = vadd.f32 %v1121, %v1136
        %v1160 = vadd.f32 %v1122, %v1136
        %v1161 = vadd.f32 %v1123, %v1136
        %v1162 = vadd.f32 %v1124, %v1136
        %v1163 = vadd.f32 %v1125, %v1136
        %v1164 = vadd.f32 %v1126, %v1136
        %v1165 = vadd.f32 %v1127, %v1136
        %v1166 = vadd.f32 %v1128, %v1136
        %v1167 = vadd.f32 %v1129, %v1136
        %v1168 = vadd.f32 %v1130, %v1136
        %v1169 = vadd.f32 %v1131, %v1136
        %v1170 = vld [vmem:[%s1] sm:$0xff]
        %v1171 = vld [vmem:[%s1 + $0x8] sm:$0xff]
        %v1172 = vld [vmem:[%s1 + $0x10] sm:$0xff]
        %v1173 = vld [vmem:[%s1 + $0x18] sm:$0xff]
        %v1174 = vld [vmem:[%s1 + $0x20] sm:$0xff]
        %v1175 = vld [vmem:[%s1 + $0x28] sm:$0xff]
        %v1176 = vld [vmem:[%s1 + $0x30] sm:$0xff]
        %v1177 = vld [vmem:[%s1 + $0x38] sm:$0xff]
        %v1178 = vld [vmem:[%s1 + $0x40] sm:$0xff]
        %v1179 = vld [vmem:[%s1 + $0x48] sm:$0xff]
        %v1180 = vld [vmem:[%s1 + $0x50] sm:$0xff]
        %v1181 = vld [vmem:[%s1 + $0x58] sm:$0xff]
        %v1182 = vld [vmem:[%s1 + $0x60] sm:$0xff]
        %v1183 = vld [vmem:[%s1 + $0x68] sm:$0xff]
        %v1184 = vld [vmem:[%s1 + $0x70] sm:$0xff]
        %v1185 = vld [vmem:[%s1 + $0x78] sm:$0xff]
        %v1186 = vpack.c.bf16 %v1139, %v1138
        %v1187 = vpack.c.bf16 %v1141, %v1140
        %v1188 = vpack.c.bf16 %v1143, %v1142
        %v1189 = vpack.c.bf16 %v1145, %v1144
        %v1190 = vpack.c.bf16 %v1147, %v1146
        %v1191 = vpack.c.bf16 %v1149, %v1148
        %v1192 = vpack.c.bf16 %v1151, %v1150
        %v1193 = vpack.c.bf16 %v1153, %v1152
        %v1194 = vpack.c.bf16 %v1155, %v1154
        %v1195 = vpack.c.bf16 %v1157, %v1156
        %v1196 = vpack.c.bf16 %v1159, %v1158
        %v1197 = vpack.c.bf16 %v1161, %v1160
        %v1198 = vpack.c.bf16 %v1163, %v1162
        %v1199 = vpack.c.bf16 %v1165, %v1164
        %v1200 = vpack.c.bf16 %v1167, %v1166
        %v1201 = vpack.c.bf16 %v1169, %v1168
        %v1202 = vld [vmem:[%s4] sm:$0xf]
        %v1203 = vld [vmem:[%s4 + $0x4] sm:$0xf]
        %v1204 = vld [vmem:[%s4 + $0x8] sm:$0xf]
        %v1205 = vld [vmem:[%s4 + $0xc] sm:$0xf]
        %v1206 = vld [vmem:[%s5] sm:$0x1]
        %v1208 = vlaneseq
        %v1209 = vshrl.u32 %v1208, 7
        %v1210 = vsub.s32 0, %v1209
        %v1211 = vrot.slane %v1206, %v1210
        %v1217 = vunpack.c.l.b16 %v1202
        %v1218 = vunpack.c.l.b16 %v1203
        %v1219 = vunpack.c.l.b16 %v1204
        %v1220 = vunpack.c.l.b16 %v1205
        %v1221 = vpack.c.b16 %v1218, %v1217
        %v1222 = vpack.c.b16 %v1220, %v1219
        %v1226 = vsel %vm676, %v1186, 0
        %v1229 = vsel %vm676, %v1187, 0
        %v1232 = vsel %vm676, %v1188, 0
        %v1235 = vsel %vm676, %v1189, 0
        %v1238 = vsel %vm676, %v1190, 0
        %v1241 = vsel %vm676, %v1191, 0
        %v1244 = vsel %vm676, %v1192, 0
        %v1247 = vsel %vm676, %v1193, 0
        %v1250 = vsel %vm676, %v1194, 0
        %v1253 = vsel %vm676, %v1195, 0
        %v1256 = vsel %vm676, %v1196, 0
        %v1259 = vsel %vm676, %v1197, 0
        %v1262 = vsel %vm676, %v1198, 0
        %v1265 = vsel %vm676, %v1199, 0
        %v1268 = vsel %vm676, %v1200, 0
        %v1271 = vsel %vm676, %v1201, 0
        %1273 = vmatprep.subr.bf16.mxu0 0
        %1274 = vmatpush1.bf16.msra.mxu0 %v1221
        %1275 = vmatprep.subr.bf16.mxu0 0
        %1276 = vmatpush1.bf16.msra.mxu0 %v1222
        %1277 = vmatprep.subr.bf16.mxu0 0
        %1278 = vmatpush1.bf16.msra.mxu0 0
        %1279 = vmatprep.subr.bf16.mxu0 0
        %1280 = vmatpush1.bf16.msra.mxu0 0
        %1281 = vmatprep.subr.bf16.mxu0 0
        %1282 = vmatpush1.bf16.msra.mxu0 0
        %1283 = vmatprep.subr.bf16.mxu0 0
        %1284 = vmatpush1.bf16.msra.mxu0 0
        %1285 = vmatprep.subr.bf16.mxu0 0
        %1286 = vmatpush1.bf16.msra.mxu0 0
        %1287 = vmatprep.subr.bf16.mxu0 0
        %1288 = vmatpush1.bf16.msra.mxu0 0
        %1289 = vmatprep.subr.bf16.mxu0 0
        %1290 = vmatpush1.bf16.msra.mxu0 0
        %1291 = vmatprep.subr.bf16.mxu0 0
        %1292 = vmatpush1.bf16.msra.mxu0 0
        %1293 = vmatprep.subr.bf16.mxu0 0
        %1294 = vmatpush1.bf16.msra.mxu0 0
        %1295 = vmatprep.subr.bf16.mxu0 0
        %1296 = vmatpush1.bf16.msra.mxu0 0
        %1297 = vmatprep.subr.bf16.mxu0 0
        %1298 = vmatpush1.bf16.msra.mxu0 0
        %1299 = vmatprep.subr.bf16.mxu0 0
        %1300 = vmatpush1.bf16.msra.mxu0 0
        %1301 = vmatprep.subr.bf16.mxu0 0
        %1302 = vmatpush1.bf16.msra.mxu0 0
        %1303 = vmatprep.subr.bf16.mxu0 0
        %1304 = vmatpush1.bf16.msra.mxu0 0
        %1305 = vmatprep.mubr.bf16.mxu0 0
        %1306 = vmatmul.mubr.bf16.gmra.mrb[0].mxu0 %v1226
        %v1307 = vpop.f32.mrb[0].mxu0
        %v1308 = vadd.f32 %v1211, %v1307
        %v1309 = vpop.f32.mrb[0].mxu0
        %v1310 = vpop.f32.mrb[0].mxu0
        %v1311 = vadd.f32 %v1211, %v1310
        %v1312 = vpop.f32.mrb[0].mxu0
        %1313 = vmatprep.mubr.bf16.mxu0 0
        %1314 = vmatmul.mubr.bf16.gmra.mrb[0].mxu0 %v1229
        %v1315 = vpop.f32.mrb[0].mxu0
        %v1316 = vadd.f32 %v1211, %v1315
        %v1317 = vpop.f32.mrb[0].mxu0
        %v1318 = vpop.f32.mrb[0].mxu0
        %v1319 = vadd.f32 %v1211, %v1318
        %v1320 = vpop.f32.mrb[0].mxu0
        %1321 = vmatprep.mubr.bf16.mxu0 0
        %1322 = vmatmul.mubr.bf16.gmra.mrb[0].mxu0 %v1232
        %v1323 = vpop.f32.mrb[0].mxu0
        %v1324 = vadd.f32 %v1211, %v1323
        %v1325 = vpop.f32.mrb[0].mxu0
        %v1326 = vpop.f32.mrb[0].mxu0
        %v1327 = vadd.f32 %v1211, %v1326
        %v1328 = vpop.f32.mrb[0].mxu0
        %1329 = vmatprep.mubr.bf16.mxu0 0
        %1330 = vmatmul.mubr.bf16.gmra.mrb[0].mxu0 %v1235
        %v1331 = vpop.f32.mrb[0].mxu0
        %v1332 = vadd.f32 %v1211, %v1331
        %v1333 = vpop.f32.mrb[0].mxu0
        %v1334 = vpop.f32.mrb[0].mxu0
        %v1335 = vadd.f32 %v1211, %v1334
        %v1336 = vpop.f32.mrb[0].mxu0
        %1337 = vmatprep.mubr.bf16.mxu0 0
        %1338 = vmatmul.mubr.bf16.gmra.mrb[0].mxu0 %v1238
        %v1339 = vpop.f32.mrb[0].mxu0
        %v1340 = vadd.f32 %v1211, %v1339
        %v1341 = vpop.f32.mrb[0].mxu0
        %v1342 = vpop.f32.mrb[0].mxu0
        %v1343 = vadd.f32 %v1211, %v1342
        %v1344 = vpop.f32.mrb[0].mxu0
        %1345 = vmatprep.mubr.bf16.mxu0 0
        %1346 = vmatmul.mubr.bf16.gmra.mrb[0].mxu0 %v1241
        %v1347 = vpop.f32.mrb[0].mxu0
        %v1348 = vadd.f32 %v1211, %v1347
        %v1349 = vpop.f32.mrb[0].mxu0
        %v1350 = vpop.f32.mrb[0].mxu0
        %v1351 = vadd.f32 %v1211, %v1350
        %v1352 = vpop.f32.mrb[0].mxu0
        %1353 = vmatprep.mubr.bf16.mxu0 0
        %1354 = vmatmul.mubr.bf16.gmra.mrb[0].mxu0 %v1244
        %v1355 = vpop.f32.mrb[0].mxu0
        %v1356 = vadd.f32 %v1211, %v1355
        %v1357 = vpop.f32.mrb[0].mxu0
        %v1358 = vpop.f32.mrb[0].mxu0
        %v1359 = vadd.f32 %v1211, %v1358
        %v1360 = vpop.f32.mrb[0].mxu0
        %1361 = vmatprep.mubr.bf16.mxu0 0
        %1362 = vmatmul.mubr.bf16.gmra.mrb[0].mxu0 %v1247
        %v1363 = vpop.f32.mrb[0].mxu0
        %v1364 = vadd.f32 %v1211, %v1363
        %v1365 = vpop.f32.mrb[0].mxu0
        %v1366 = vpop.f32.mrb[0].mxu0
        %v1367 = vadd.f32 %v1211, %v1366
        %v1368 = vpop.f32.mrb[0].mxu0
        %1369 = vmatprep.mubr.bf16.mxu0 0
        %1370 = vmatmul.mubr.bf16.gmra.mrb[0].mxu0 %v1250
        %v1371 = vpop.f32.mrb[0].mxu0
        %v1372 = vadd.f32 %v1211, %v1371
        %v1373 = vpop.f32.mrb[0].mxu0
        %v1374 = vpop.f32.mrb[0].mxu0
        %v1375 = vadd.f32 %v1211, %v1374
        %v1376 = vpop.f32.mrb[0].mxu0
        %1377 = vmatprep.mubr.bf16.mxu0 0
        %1378 = vmatmul.mubr.bf16.gmra.mrb[0].mxu0 %v1253
        %v1379 = vpop.f32.mrb[0].mxu0
        %v1380 = vadd.f32 %v1211, %v1379
        %v1381 = vpop.f32.mrb[0].mxu0
        %v1382 = vpop.f32.mrb[0].mxu0
        %v1383 = vadd.f32 %v1211, %v1382
        %v1384 = vpop.f32.mrb[0].mxu0
        %1385 = vmatprep.mubr.bf16.mxu0 0
        %1386 = vmatmul.mubr.bf16.gmra.mrb[0].mxu0 %v1256
        %v1387 = vpop.f32.mrb[0].mxu0
        %v1388 = vadd.f32 %v1211, %v1387
        %v1389 = vpop.f32.mrb[0].mxu0
        %v1390 = vpop.f32.mrb[0].mxu0
        %v1391 = vadd.f32 %v1211, %v1390
        %v1392 = vpop.f32.mrb[0].mxu0
        %1393 = vmatprep.mubr.bf16.mxu0 0
        %1394 = vmatmul.mubr.bf16.gmra.mrb[0].mxu0 %v1259
        %v1395 = vpop.f32.mrb[0].mxu0
        %v1396 = vadd.f32 %v1211, %v1395
        %v1397 = vpop.f32.mrb[0].mxu0
        %v1398 = vpop.f32.mrb[0].mxu0
        %v1399 = vadd.f32 %v1211, %v1398
        %v1400 = vpop.f32.mrb[0].mxu0
        %1401 = vmatprep.mubr.bf16.mxu0 0
        %1402 = vmatmul.mubr.bf16.gmra.mrb[0].mxu0 %v1262
        %v1403 = vpop.f32.mrb[0].mxu0
        %v1404 = vadd.f32 %v1211, %v1403
        %v1405 = vpop.f32.mrb[0].mxu0
        %v1406 = vpop.f32.mrb[0].mxu0
        %v1407 = vadd.f32 %v1211, %v1406
        %v1408 = vpop.f32.mrb[0].mxu0
        %1409 = vmatprep.mubr.bf16.mxu0 0
        %1410 = vmatmul.mubr.bf16.gmra.mrb[0].mxu0 %v1265
        %v1411 = vpop.f32.mrb[0].mxu0
        %v1412 = vadd.f32 %v1211, %v1411
        %v1413 = vpop.f32.mrb[0].mxu0
        %v1414 = vpop.f32.mrb[0].mxu0
        %v1415 = vadd.f32 %v1211, %v1414
        %v1416 = vpop.f32.mrb[0].mxu0
        %1417 = vmatprep.mubr.bf16.mxu0 0
        %1418 = vmatmul.mubr.bf16.gmra.mrb[0].mxu0 %v1268
        %v1419 = vpop.f32.mrb[0].mxu0
        %v1420 = vadd.f32 %v1211, %v1419
        %v1421 = vpop.f32.mrb[0].mxu0
        %v1422 = vpop.f32.mrb[0].mxu0
        %v1423 = vadd.f32 %v1211, %v1422
        %v1424 = vpop.f32.mrb[0].mxu0
        %1425 = vmatprep.mubr.bf16.mxu0 0
        %1426 = vmatmul.mubr.bf16.gmra.mrb[0].mxu0 %v1271
        %v1427 = vpop.f32.mrb[0].mxu0
        %v1428 = vadd.f32 %v1211, %v1427
        %v1429 = vpop.f32.mrb[0].mxu0
        %v1430 = vpop.f32.mrb[0].mxu0
        %v1431 = vadd.f32 %v1211, %v1430
        %v1432 = vpop.f32.mrb[0].mxu0
        %1433 = vdwg.mxu0
        %1466 = vrot.lane.b32.xlu0 %v1308, 112
        %v1467 = vpop.permute.xlu0 %1466
        %1468 = vrot.lane.b32.xlu0 %v1311, 112
        %v1469 = vpop.permute.xlu0 %1468
        %1470 = vrot.lane.b32.xlu0 %v1316, 112
        %v1471 = vpop.permute.xlu0 %1470
        %1472 = vrot.lane.b32.xlu0 %v1319, 112
        %v1473 = vpop.permute.xlu0 %1472
        %1474 = vrot.lane.b32.xlu0 %v1324, 112
        %v1475 = vpop.permute.xlu0 %1474
        %1476 = vrot.lane.b32.xlu0 %v1327, 112
        %v1477 = vpop.permute.xlu0 %1476
        %1478 = vrot.lane.b32.xlu0 %v1332, 112
        %v1479 = vpop.permute.xlu0 %1478
        %1480 = vrot.lane.b32.xlu0 %v1335, 112
        %v1481 = vpop.permute.xlu0 %1480
        %1482 = vrot.lane.b32.xlu0 %v1340, 112
        %v1483 = vpop.permute.xlu0 %1482
        %1484 = vrot.lane.b32.xlu0 %v1343, 112
        %v1485 = vpop.permute.xlu0 %1484
        %1486 = vrot.lane.b32.xlu0 %v1348, 112
        %v1487 = vpop.permute.xlu0 %1486
        %1488 = vrot.lane.b32.xlu0 %v1351, 112
        %v1489 = vpop.permute.xlu0 %1488
        %1490 = vrot.lane.b32.xlu0 %v1356, 112
        %v1491 = vpop.permute.xlu0 %1490
        %1492 = vrot.lane.b32.xlu0 %v1359, 112
        %v1493 = vpop.permute.xlu0 %1492
        %1494 = vrot.lane.b32.xlu0 %v1364, 112
        %v1495 = vpop.permute.xlu0 %1494
        %1496 = vrot.lane.b32.xlu0 %v1367, 112
        %v1497 = vpop.permute.xlu0 %1496
        %1498 = vrot.lane.b32.xlu0 %v1372, 112
        %v1499 = vpop.permute.xlu0 %1498
        %1500 = vrot.lane.b32.xlu0 %v1375, 112
        %v1501 = vpop.permute.xlu0 %1500
        %1502 = vrot.lane.b32.xlu0 %v1380, 112
        %v1503 = vpop.permute.xlu0 %1502
        %1504 = vrot.lane.b32.xlu0 %v1383, 112
        %v1505 = vpop.permute.xlu0 %1504
        %1506 = vrot.lane.b32.xlu0 %v1388, 112
        %v1507 = vpop.permute.xlu0 %1506
        %1508 = vrot.lane.b32.xlu0 %v1391, 112
        %v1509 = vpop.permute.xlu0 %1508
        %1510 = vrot.lane.b32.xlu0 %v1396, 112
        %v1511 = vpop.permute.xlu0 %1510
        %1512 = vrot.lane.b32.xlu0 %v1399, 112
        %v1513 = vpop.permute.xlu0 %1512
        %1514 = vrot.lane.b32.xlu0 %v1404, 112
        %v1515 = vpop.permute.xlu0 %1514
        %1516 = vrot.lane.b32.xlu0 %v1407, 112
        %v1517 = vpop.permute.xlu0 %1516
        %1518 = vrot.lane.b32.xlu0 %v1412, 112
        %v1519 = vpop.permute.xlu0 %1518
        %1520 = vrot.lane.b32.xlu0 %v1415, 112
        %v1521 = vpop.permute.xlu0 %1520
        %1522 = vrot.lane.b32.xlu0 %v1420, 112
        %v1523 = vpop.permute.xlu0 %1522
        %1524 = vrot.lane.b32.xlu0 %v1423, 112
        %v1525 = vpop.permute.xlu0 %1524
        %1526 = vrot.lane.b32.xlu0 %v1428, 112
        %v1527 = vpop.permute.xlu0 %1526
        %1528 = vrot.lane.b32.xlu0 %v1431, 112
        %v1529 = vpop.permute.xlu0 %1528
        %v1562 = vpack.c.bf16 %v1311, %v1308
        %v1563 = vpack.c.bf16 %v1319, %v1316
        %v1564 = vpack.c.bf16 %v1327, %v1324
        %v1565 = vpack.c.bf16 %v1335, %v1332
        %v1566 = vpack.c.bf16 %v1343, %v1340
        %v1567 = vpack.c.bf16 %v1351, %v1348
        %v1568 = vpack.c.bf16 %v1359, %v1356
        %v1569 = vpack.c.bf16 %v1367, %v1364
        %v1570 = vpack.c.bf16 %v1375, %v1372
        %v1571 = vpack.c.bf16 %v1383, %v1380
        %v1572 = vpack.c.bf16 %v1391, %v1388
        %v1573 = vpack.c.bf16 %v1399, %v1396
        %v1574 = vpack.c.bf16 %v1407, %v1404
        %v1575 = vpack.c.bf16 %v1415, %v1412
        %v1576 = vpack.c.bf16 %v1423, %v1420
        %v1577 = vpack.c.bf16 %v1431, %v1428
        %v1578 = vpack.c.bf16 %v1469, %v1467
        %v1579 = vpack.c.bf16 %v1473, %v1471
        %v1580 = vpack.c.bf16 %v1477, %v1475
        %v1581 = vpack.c.bf16 %v1481, %v1479
        %v1582 = vpack.c.bf16 %v1485, %v1483
        %v1583 = vpack.c.bf16 %v1489, %v1487
        %v1584 = vpack.c.bf16 %v1493, %v1491
        %v1585 = vpack.c.bf16 %v1497, %v1495
        %v1586 = vpack.c.bf16 %v1501, %v1499
        %v1587 = vpack.c.bf16 %v1505, %v1503
        %v1588 = vpack.c.bf16 %v1509, %v1507
        %v1589 = vpack.c.bf16 %v1513, %v1511
        %v1590 = vpack.c.bf16 %v1517, %v1515
        %v1591 = vpack.c.bf16 %v1521, %v1519
        %v1592 = vpack.c.bf16 %v1525, %v1523
        %v1593 = vpack.c.bf16 %v1529, %v1527
        %1598 = vrot.lane.b32.xlu0 %v1562, 96
        %v1599 = vpop.permute.xlu0 %1598
        %1600 = vrot.lane.b32.xlu0 %v1563, 96
        %v1601 = vpop.permute.xlu0 %1600
        %1602 = vrot.lane.b32.xlu0 %v1564, 96
        %v1603 = vpop.permute.xlu0 %1602
        %1604 = vrot.lane.b32.xlu0 %v1565, 96
        %v1605 = vpop.permute.xlu0 %1604
        %vm1606 = vcmask 130048
        %v1608 = vsel %vm1606, %v1562, 0
        %v1611 = vsel %vm1606, %v1563, 0
        %v1614 = vsel %vm1606, %v1564, 0
        %v1617 = vsel %vm1606, %v1565, 0
        %v1620 = vsel %vm1606, %v1599, 0
        %v1623 = vsel %vm1606, %v1601, 0
        %v1626 = vsel %vm1606, %v1603, 0
        %v1629 = vsel %vm1606, %v1605, 0
        %1631 = vmatprep.subr.bf16.mxu0 0
        %1632 = vmatpush1.bf16.xpose.msra.mxu0 %v1620
        %1633 = vmatprep.subr.bf16.mxu0 0
        %1634 = vmatpush1.bf16.xpose.msra.mxu0 %v1623
        %1635 = vmatprep.subr.bf16.mxu0 0
        %1636 = vmatpush1.bf16.xpose.msra.mxu0 %v1626
        %1637 = vmatprep.subr.bf16.mxu0 0
        %1638 = vmatpush1.bf16.xpose.msra.mxu0 %v1629
        %1639 = vmatprep.subr.bf16.mxu0 0
        %1640 = vmatpush1.bf16.xpose.msra.mxu0 0
        %1641 = vmatprep.subr.bf16.mxu0 0
        %1642 = vmatpush1.bf16.xpose.msra.mxu0 0
        %1643 = vmatprep.subr.bf16.mxu0 0
        %1644 = vmatpush1.bf16.xpose.msra.mxu0 0
        %1645 = vmatprep.subr.bf16.mxu0 0
        %1646 = vmatpush1.bf16.xpose.msra.mxu0 0
        %1647 = vmatprep.subr.bf16.mxu0 0
        %1648 = vmatpush1.bf16.xpose.msra.mxu0 0
        %1649 = vmatprep.subr.bf16.mxu0 0
        %1650 = vmatpush1.bf16.xpose.msra.mxu0 0
        %1651 = vmatprep.subr.bf16.mxu0 0
        %1652 = vmatpush1.bf16.xpose.msra.mxu0 0
        %1653 = vmatprep.subr.bf16.mxu0 0
        %1654 = vmatpush1.bf16.xpose.msra.mxu0 0
        %1655 = vmatprep.subr.bf16.mxu0 0
        %1656 = vmatpush1.bf16.xpose.msra.mxu0 0
        %1657 = vmatprep.subr.bf16.mxu0 0
        %1658 = vmatpush1.bf16.xpose.msra.mxu0 0
        %1659 = vmatprep.subr.bf16.mxu0 0
        %1660 = vmatpush1.bf16.xpose.msra.mxu0 0
        %1661 = vmatprep.subr.bf16.mxu0 0
        %1662 = vmatpush1.bf16.xpose.msra.mxu0 0
        %1663 = vmatprep.mubr.bf16.mxu0 0
        %1664 = vmatmul.mubr.bf16.gmra.mrb[0].mxu0 %v1608
        %v1665 = vpop.f32.mrb[0].mxu0
        %v1666 = vadd.f32 0.0, %v1665
        %v1667 = vpop.f32.mrb[0].mxu0
        %v1668 = vpop.f32.mrb[0].mxu0
        %v1669 = vadd.f32 0.0, %v1668
        %v1670 = vpop.f32.mrb[0].mxu0
        %1671 = vmatprep.mubr.bf16.mxu0 0
        %1672 = vmatmul.mubr.bf16.gmra.mrb[0].mxu0 %v1611
        %v1673 = vpop.f32.mrb[0].mxu0
        %v1674 = vadd.f32 0.0, %v1673
        %v1675 = vpop.f32.mrb[0].mxu0
        %v1676 = vpop.f32.mrb[0].mxu0
        %v1677 = vadd.f32 0.0, %v1676
        %v1678 = vpop.f32.mrb[0].mxu0
        %1679 = vmatprep.mubr.bf16.mxu0 0
        %1680 = vmatmul.mubr.bf16.gmra.mrb[0].mxu0 %v1614
        %v1681 = vpop.f32.mrb[0].mxu0
        %v1682 = vadd.f32 0.0, %v1681
        %v1683 = vpop.f32.mrb[0].mxu0
        %v1684 = vpop.f32.mrb[0].mxu0
        %v1685 = vadd.f32 0.0, %v1684
        %v1686 = vpop.f32.mrb[0].mxu0
        %1687 = vmatprep.mubr.bf16.mxu0 0
        %1688 = vmatmul.mubr.bf16.gmra.mrb[0].mxu0 %v1617
        %v1689 = vpop.f32.mrb[0].mxu0
        %v1690 = vadd.f32 0.0, %v1689
        %v1691 = vpop.f32.mrb[0].mxu0
        %v1692 = vpop.f32.mrb[0].mxu0
        %v1693 = vadd.f32 0.0, %v1692
        %v1694 = vpop.f32.mrb[0].mxu0
        %1695 = vdwg.mxu0
        %1700 = vrot.lane.b32.xlu0 %v1566, 96
        %v1701 = vpop.permute.xlu0 %1700
        %1702 = vrot.lane.b32.xlu0 %v1567, 96
        %v1703 = vpop.permute.xlu0 %1702
        %1704 = vrot.lane.b32.xlu0 %v1568, 96
        %v1705 = vpop.permute.xlu0 %1704
        %1706 = vrot.lane.b32.xlu0 %v1569, 96
        %v1707 = vpop.permute.xlu0 %1706
        %v1709 = vsel %vm1606, %v1566, 0
        %v1712 = vsel %vm1606, %v1567, 0
        %v1715 = vsel %vm1606, %v1568, 0
        %v1718 = vsel %vm1606, %v1569, 0
        %v1721 = vsel %vm1606, %v1701, 0
        %v1724 = vsel %vm1606, %v1703, 0
        %v1727 = vsel %vm1606, %v1705, 0
        %v1730 = vsel %vm1606, %v1707, 0
        %1732 = vmatprep.subr.bf16.mxu0 0
        %1733 = vmatpush1.bf16.xpose.msra.mxu0 %v1721
        %1734 = vmatprep.subr.bf16.mxu0 0
        %1735 = vmatpush1.bf16.xpose.msra.mxu0 %v1724
        %1736 = vmatprep.subr.bf16.mxu0 0
        %1737 = vmatpush1.bf16.xpose.msra.mxu0 %v1727
        %1738 = vmatprep.subr.bf16.mxu0 0
        %1739 = vmatpush1.bf16.xpose.msra.mxu0 %v1730
        %1740 = vmatprep.subr.bf16.mxu0 0
        %1741 = vmatpush1.bf16.xpose.msra.mxu0 0
        %1742 = vmatprep.subr.bf16.mxu0 0
        %1743 = vmatpush1.bf16.xpose.msra.mxu0 0
        %1744 = vmatprep.subr.bf16.mxu0 0
        %1745 = vmatpush1.bf16.xpose.msra.mxu0 0
        %1746 = vmatprep.subr.bf16.mxu0 0
        %1747 = vmatpush1.bf16.xpose.msra.mxu0 0
        %1748 = vmatprep.subr.bf16.mxu0 0
        %1749 = vmatpush1.bf16.xpose.msra.mxu0 0
        %1750 = vmatprep.subr.bf16.mxu0 0
        %1751 = vmatpush1.bf16.xpose.msra.mxu0 0
        %1752 = vmatprep.subr.bf16.mxu0 0
        %1753 = vmatpush1.bf16.xpose.msra.mxu0 0
        %1754 = vmatprep.subr.bf16.mxu0 0
        %1755 = vmatpush1.bf16.xpose.msra.mxu0 0
        %1756 = vmatprep.subr.bf16.mxu0 0
        %1757 = vmatpush1.bf16.xpose.msra.mxu0 0
        %1758 = vmatprep.subr.bf16.mxu0 0
        %1759 = vmatpush1.bf16.xpose.msra.mxu0 0
        %1760 = vmatprep.subr.bf16.mxu0 0
        %1761 = vmatpush1.bf16.xpose.msra.mxu0 0
        %1762 = vmatprep.subr.bf16.mxu0 0
        %1763 = vmatpush1.bf16.xpose.msra.mxu0 0
        %1764 = vmatprep.mubr.bf16.mxu0 0
        %1765 = vmatmul.mubr.bf16.gmra.mrb[0].mxu0 %v1709
        %v1766 = vpop.f32.mrb[0].mxu0
        %v1767 = vadd.f32 0.0, %v1766
        %v1768 = vpop.f32.mrb[0].mxu0
        %v1769 = vpop.f32.mrb[0].mxu0
        %v1770 = vadd.f32 0.0, %v1769
        %v1771 = vpop.f32.mrb[0].mxu0
        %1772 = vmatprep.mubr.bf16.mxu0 0
        %1773 = vmatmul.mubr.bf16.gmra.mrb[0].mxu0 %v1712
        %v1774 = vpop.f32.mrb[0].mxu0
        %v1775 = vadd.f32 0.0, %v1774
        %v1776 = vpop.f32.mrb[0].mxu0
        %v1777 = vpop.f32.mrb[0].mxu0
        %v1778 = vadd.f32 0.0, %v1777
        %v1779 = vpop.f32.mrb[0].mxu0
        %1780 = vmatprep.mubr.bf16.mxu0 0
        %1781 = vmatmul.mubr.bf16.gmra.mrb[0].mxu0 %v1715
        %v1782 = vpop.f32.mrb[0].mxu0
        %v1783 = vadd.f32 0.0, %v1782
        %v1784 = vpop.f32.mrb[0].mxu0
        %v1785 = vpop.f32.mrb[0].mxu0
        %v1786 = vadd.f32 0.0, %v1785
        %v1787 = vpop.f32.mrb[0].mxu0
        %1788 = vmatprep.mubr.bf16.mxu0 0
        %1789 = vmatmul.mubr.bf16.gmra.mrb[0].mxu0 %v1718
        %v1790 = vpop.f32.mrb[0].mxu0
        %v1791 = vadd.f32 0.0, %v1790
        %v1792 = vpop.f32.mrb[0].mxu0
        %v1793 = vpop.f32.mrb[0].mxu0
        %v1794 = vadd.f32 0.0, %v1793
        %v1795 = vpop.f32.mrb[0].mxu0
        %1796 = vdwg.mxu0
        %1801 = vrot.lane.b32.xlu0 %v1570, 96
        %v1802 = vpop.permute.xlu0 %1801
        %1803 = vrot.lane.b32.xlu0 %v1571, 96
        %v1804 = vpop.permute.xlu0 %1803
        %1805 = vrot.lane.b32.xlu0 %v1572, 96
        %v1806 = vpop.permute.xlu0 %1805
        %1807 = vrot.lane.b32.xlu0 %v1573, 96
        %v1808 = vpop.permute.xlu0 %1807
        %v1810 = vsel %vm1606, %v1570, 0
        %v1813 = vsel %vm1606, %v1571, 0
        %v1816 = vsel %vm1606, %v1572, 0
        %v1819 = vsel %vm1606, %v1573, 0
        %v1822 = vsel %vm1606, %v1802, 0
        %v1825 = vsel %vm1606, %v1804, 0
        %v1828 = vsel %vm1606, %v1806, 0
        %v1831 = vsel %vm1606, %v1808, 0
        %1833 = vmatprep.subr.bf16.mxu0 0
        %1834 = vmatpush1.bf16.xpose.msra.mxu0 %v1822
        %1835 = vmatprep.subr.bf16.mxu0 0
        %1836 = vmatpush1.bf16.xpose.msra.mxu0 %v1825
        %1837 = vmatprep.subr.bf16.mxu0 0
        %1838 = vmatpush1.bf16.xpose.msra.mxu0 %v1828
        %1839 = vmatprep.subr.bf16.mxu0 0
        %1840 = vmatpush1.bf16.xpose.msra.mxu0 %v1831
        %1841 = vmatprep.subr.bf16.mxu0 0
        %1842 = vmatpush1.bf16.xpose.msra.mxu0 0
        %1843 = vmatprep.subr.bf16.mxu0 0
        %1844 = vmatpush1.bf16.xpose.msra.mxu0 0
        %1845 = vmatprep.subr.bf16.mxu0 0
        %1846 = vmatpush1.bf16.xpose.msra.mxu0 0
        %1847 = vmatprep.subr.bf16.mxu0 0
        %1848 = vmatpush1.bf16.xpose.msra.mxu0 0
        %1849 = vmatprep.subr.bf16.mxu0 0
        %1850 = vmatpush1.bf16.xpose.msra.mxu0 0
        %1851 = vmatprep.subr.bf16.mxu0 0
        %1852 = vmatpush1.bf16.xpose.msra.mxu0 0
        %1853 = vmatprep.subr.bf16.mxu0 0
        %1854 = vmatpush1.bf16.xpose.msra.mxu0 0
        %1855 = vmatprep.subr.bf16.mxu0 0
        %1856 = vmatpush1.bf16.xpose.msra.mxu0 0
        %1857 = vmatprep.subr.bf16.mxu0 0
        %1858 = vmatpush1.bf16.xpose.msra.mxu0 0
        %1859 = vmatprep.subr.bf16.mxu0 0
        %1860 = vmatpush1.bf16.xpose.msra.mxu0 0
        %1861 = vmatprep.subr.bf16.mxu0 0
        %1862 = vmatpush1.bf16.xpose.msra.mxu0 0
        %1863 = vmatprep.subr.bf16.mxu0 0
        %1864 = vmatpush1.bf16.xpose.msra.mxu0 0
        %1865 = vmatprep.mubr.bf16.mxu0 0
        %1866 = vmatmul.mubr.bf16.gmra.mrb[0].mxu0 %v1810
        %v1867 = vpop.f32.mrb[0].mxu0
        %v1868 = vadd.f32 0.0, %v1867
        %v1869 = vpop.f32.mrb[0].mxu0
        %v1870 = vpop.f32.mrb[0].mxu0
        %v1871 = vadd.f32 0.0, %v1870
        %v1872 = vpop.f32.mrb[0].mxu0
        %1873 = vmatprep.mubr.bf16.mxu0 0
        %1874 = vmatmul.mubr.bf16.gmra.mrb[0].mxu0 %v1813
        %v1875 = vpop.f32.mrb[0].mxu0
        %v1876 = vadd.f32 0.0, %v1875
        %v1877 = vpop.f32.mrb[0].mxu0
        %v1878 = vpop.f32.mrb[0].mxu0
        %v1879 = vadd.f32 0.0, %v1878
        %v1880 = vpop.f32.mrb[0].mxu0
        %1881 = vmatprep.mubr.bf16.mxu0 0
        %1882 = vmatmul.mubr.bf16.gmra.mrb[0].mxu0 %v1816
        %v1883 = vpop.f32.mrb[0].mxu0
        %v1884 = vadd.f32 0.0, %v1883
        %v1885 = vpop.f32.mrb[0].mxu0
        %v1886 = vpop.f32.mrb[0].mxu0
        %v1887 = vadd.f32 0.0, %v1886
        %v1888 = vpop.f32.mrb[0].mxu0
        %1889 = vmatprep.mubr.bf16.mxu0 0
        %1890 = vmatmul.mubr.bf16.gmra.mrb[0].mxu0 %v1819
        %v1891 = vpop.f32.mrb[0].mxu0
        %v1892 = vadd.f32 0.0, %v1891
        %v1893 = vpop.f32.mrb[0].mxu0
        %v1894 = vpop.f32.mrb[0].mxu0
        %v1895 = vadd.f32 0.0, %v1894
        %v1896 = vpop.f32.mrb[0].mxu0
        %1897 = vdwg.mxu0
        %1902 = vrot.lane.b32.xlu0 %v1574, 96
        %v1903 = vpop.permute.xlu0 %1902
        %1904 = vrot.lane.b32.xlu0 %v1575, 96
        %v1905 = vpop.permute.xlu0 %1904
        %1906 = vrot.lane.b32.xlu0 %v1576, 96
        %v1907 = vpop.permute.xlu0 %1906
        %1908 = vrot.lane.b32.xlu0 %v1577, 96
        %v1909 = vpop.permute.xlu0 %1908
        %v1911 = vsel %vm1606, %v1574, 0
        %v1914 = vsel %vm1606, %v1575, 0
        %v1917 = vsel %vm1606, %v1576, 0
        %v1920 = vsel %vm1606, %v1577, 0
        %v1923 = vsel %vm1606, %v1903, 0
        %v1926 = vsel %vm1606, %v1905, 0
        %v1929 = vsel %vm1606, %v1907, 0
        %v1932 = vsel %vm1606, %v1909, 0
        %1934 = vmatprep.subr.bf16.mxu0 0
        %1935 = vmatpush1.bf16.xpose.msra.mxu0 %v1923
        %1936 = vmatprep.subr.bf16.mxu0 0
        %1937 = vmatpush1.bf16.xpose.msra.mxu0 %v1926
        %1938 = vmatprep.subr.bf16.mxu0 0
        %1939 = vmatpush1.bf16.xpose.msra.mxu0 %v1929
        %1940 = vmatprep.subr.bf16.mxu0 0
        %1941 = vmatpush1.bf16.xpose.msra.mxu0 %v1932
        %1942 = vmatprep.subr.bf16.mxu0 0
        %1943 = vmatpush1.bf16.xpose.msra.mxu0 0
        %1944 = vmatprep.subr.bf16.mxu0 0
        %1945 = vmatpush1.bf16.xpose.msra.mxu0 0
        %1946 = vmatprep.subr.bf16.mxu0 0
        %1947 = vmatpush1.bf16.xpose.msra.mxu0 0
        %1948 = vmatprep.subr.bf16.mxu0 0
        %1949 = vmatpush1.bf16.xpose.msra.mxu0 0
        %1950 = vmatprep.subr.bf16.mxu0 0
        %1951 = vmatpush1.bf16.xpose.msra.mxu0 0
        %1952 = vmatprep.subr.bf16.mxu0 0
        %1953 = vmatpush1.bf16.xpose.msra.mxu0 0
        %1954 = vmatprep.subr.bf16.mxu0 0
        %1955 = vmatpush1.bf16.xpose.msra.mxu0 0
        %1956 = vmatprep.subr.bf16.mxu0 0
        %1957 = vmatpush1.bf16.xpose.msra.mxu0 0
        %1958 = vmatprep.subr.bf16.mxu0 0
        %1959 = vmatpush1.bf16.xpose.msra.mxu0 0
        %1960 = vmatprep.subr.bf16.mxu0 0
        %1961 = vmatpush1.bf16.xpose.msra.mxu0 0
        %1962 = vmatprep.subr.bf16.mxu0 0
        %1963 = vmatpush1.bf16.xpose.msra.mxu0 0
        %1964 = vmatprep.subr.bf16.mxu0 0
        %1965 = vmatpush1.bf16.xpose.msra.mxu0 0
        %1966 = vmatprep.mubr.bf16.mxu0 0
        %1967 = vmatmul.mubr.bf16.gmra.mrb[0].mxu0 %v1911
        %v1968 = vpop.f32.mrb[0].mxu0
        %v1969 = vadd.f32 0.0, %v1968
        %v1970 = vpop.f32.mrb[0].mxu0
        %v1971 = vpop.f32.mrb[0].mxu0
        %v1972 = vadd.f32 0.0, %v1971
        %v1973 = vpop.f32.mrb[0].mxu0
        %1974 = vmatprep.mubr.bf16.mxu0 0
        %1975 = vmatmul.mubr.bf16.gmra.mrb[0].mxu0 %v1914
        %v1976 = vpop.f32.mrb[0].mxu0
        %v1977 = vadd.f32 0.0, %v1976
        %v1978 = vpop.f32.mrb[0].mxu0
        %v1979 = vpop.f32.mrb[0].mxu0
        %v1980 = vadd.f32 0.0, %v1979
        %v1981 = vpop.f32.mrb[0].mxu0
        %1982 = vmatprep.mubr.bf16.mxu0 0
        %1983 = vmatmul.mubr.bf16.gmra.mrb[0].mxu0 %v1917
        %v1984 = vpop.f32.mrb[0].mxu0
        %v1985 = vadd.f32 0.0, %v1984
        %v1986 = vpop.f32.mrb[0].mxu0
        %v1987 = vpop.f32.mrb[0].mxu0
        %v1988 = vadd.f32 0.0, %v1987
        %v1989 = vpop.f32.mrb[0].mxu0
        %1990 = vmatprep.mubr.bf16.mxu0 0
        %1991 = vmatmul.mubr.bf16.gmra.mrb[0].mxu0 %v1920
        %v1992 = vpop.f32.mrb[0].mxu0
        %v1993 = vadd.f32 0.0, %v1992
        %v1994 = vpop.f32.mrb[0].mxu0
        %v1995 = vpop.f32.mrb[0].mxu0
        %v1996 = vadd.f32 0.0, %v1995
        %v1997 = vpop.f32.mrb[0].mxu0
        %1998 = vdwg.mxu0
        %2003 = vrot.lane.b32.xlu0 %v1578, 96
        %v2004 = vpop.permute.xlu0 %2003
        %2005 = vrot.lane.b32.xlu0 %v1579, 96
        %v2006 = vpop.permute.xlu0 %2005
        %2007 = vrot.lane.b32.xlu0 %v1580, 96
        %v2008 = vpop.permute.xlu0 %2007
        %2009 = vrot.lane.b32.xlu0 %v1581, 96
        %v2010 = vpop.permute.xlu0 %2009
        %v2012 = vsel %vm1606, %v1578, 0
        %v2015 = vsel %vm1606, %v1579, 0
        %v2018 = vsel %vm1606, %v1580, 0
        %v2021 = vsel %vm1606, %v1581, 0
        %v2024 = vsel %vm1606, %v2004, 0
        %v2027 = vsel %vm1606, %v2006, 0
        %v2030 = vsel %vm1606, %v2008, 0
        %v2033 = vsel %vm1606, %v2010, 0
        %2035 = vmatprep.subr.bf16.mxu0 0
        %2036 = vmatpush1.bf16.xpose.msra.mxu0 %v2024
        %2037 = vmatprep.subr.bf16.mxu0 0
        %2038 = vmatpush1.bf16.xpose.msra.mxu0 %v2027
        %2039 = vmatprep.subr.bf16.mxu0 0
        %2040 = vmatpush1.bf16.xpose.msra.mxu0 %v2030
        %2041 = vmatprep.subr.bf16.mxu0 0
        %2042 = vmatpush1.bf16.xpose.msra.mxu0 %v2033
        %2043 = vmatprep.subr.bf16.mxu0 0
        %2044 = vmatpush1.bf16.xpose.msra.mxu0 0
        %2045 = vmatprep.subr.bf16.mxu0 0
        %2046 = vmatpush1.bf16.xpose.msra.mxu0 0
        %2047 = vmatprep.subr.bf16.mxu0 0
        %2048 = vmatpush1.bf16.xpose.msra.mxu0 0
        %2049 = vmatprep.subr.bf16.mxu0 0
        %2050 = vmatpush1.bf16.xpose.msra.mxu0 0
        %2051 = vmatprep.subr.bf16.mxu0 0
        %2052 = vmatpush1.bf16.xpose.msra.mxu0 0
        %2053 = vmatprep.subr.bf16.mxu0 0
        %2054 = vmatpush1.bf16.xpose.msra.mxu0 0
        %2055 = vmatprep.subr.bf16.mxu0 0
        %2056 = vmatpush1.bf16.xpose.msra.mxu0 0
        %2057 = vmatprep.subr.bf16.mxu0 0
        %2058 = vmatpush1.bf16.xpose.msra.mxu0 0
        %2059 = vmatprep.subr.bf16.mxu0 0
        %2060 = vmatpush1.bf16.xpose.msra.mxu0 0
        %2061 = vmatprep.subr.bf16.mxu0 0
        %2062 = vmatpush1.bf16.xpose.msra.mxu0 0
        %2063 = vmatprep.subr.bf16.mxu0 0
        %2064 = vmatpush1.bf16.xpose.msra.mxu0 0
        %2065 = vmatprep.subr.bf16.mxu0 0
        %2066 = vmatpush1.bf16.xpose.msra.mxu0 0
        %2067 = vmatprep.mubr.bf16.mxu0 0
        %2068 = vmatmul.mubr.bf16.gmra.mrb[0].mxu0 %v2012
        %v2069 = vpop.f32.mrb[0].mxu0
        %v2070 = vadd.f32 0.0, %v2069
        %v2071 = vpop.f32.mrb[0].mxu0
        %v2072 = vpop.f32.mrb[0].mxu0
        %v2073 = vadd.f32 0.0, %v2072
        %v2074 = vpop.f32.mrb[0].mxu0
        %2075 = vmatprep.mubr.bf16.mxu0 0
        %2076 = vmatmul.mubr.bf16.gmra.mrb[0].mxu0 %v2015
        %v2077 = vpop.f32.mrb[0].mxu0
        %v2078 = vadd.f32 0.0, %v2077
        %v2079 = vpop.f32.mrb[0].mxu0
        %v2080 = vpop.f32.mrb[0].mxu0
        %v2081 = vadd.f32 0.0, %v2080
        %v2082 = vpop.f32.mrb[0].mxu0
        %2083 = vmatprep.mubr.bf16.mxu0 0
        %2084 = vmatmul.mubr.bf16.gmra.mrb[0].mxu0 %v2018
        %v2085 = vpop.f32.mrb[0].mxu0
        %v2086 = vadd.f32 0.0, %v2085
        %v2087 = vpop.f32.mrb[0].mxu0
        %v2088 = vpop.f32.mrb[0].mxu0
        %v2089 = vadd.f32 0.0, %v2088
        %v2090 = vpop.f32.mrb[0].mxu0
        %2091 = vmatprep.mubr.bf16.mxu0 0
        %2092 = vmatmul.mubr.bf16.gmra.mrb[0].mxu0 %v2021
        %v2093 = vpop.f32.mrb[0].mxu0
        %v2094 = vadd.f32 0.0, %v2093
        %v2095 = vpop.f32.mrb[0].mxu0
        %v2096 = vpop.f32.mrb[0].mxu0
        %v2097 = vadd.f32 0.0, %v2096
        %v2098 = vpop.f32.mrb[0].mxu0
        %2099 = vdwg.mxu0
        %2104 = vrot.lane.b32.xlu0 %v1582, 96
        %v2105 = vpop.permute.xlu0 %2104
        %2106 = vrot.lane.b32.xlu0 %v1583, 96
        %v2107 = vpop.permute.xlu0 %2106
        %2108 = vrot.lane.b32.xlu0 %v1584, 96
        %v2109 = vpop.permute.xlu0 %2108
        %2110 = vrot.lane.b32.xlu0 %v1585, 96
        %v2111 = vpop.permute.xlu0 %2110
        %v2113 = vsel %vm1606, %v1582, 0
        %v2116 = vsel %vm1606, %v1583, 0
        %v2119 = vsel %vm1606, %v1584, 0
        %v2122 = vsel %vm1606, %v1585, 0
        %v2125 = vsel %vm1606, %v2105, 0
        %v2128 = vsel %vm1606, %v2107, 0
        %v2131 = vsel %vm1606, %v2109, 0
        %v2134 = vsel %vm1606, %v2111, 0
        %2136 = vmatprep.subr.bf16.mxu0 0
        %2137 = vmatpush1.bf16.xpose.msra.mxu0 %v2125
        %2138 = vmatprep.subr.bf16.mxu0 0
        %2139 = vmatpush1.bf16.xpose.msra.mxu0 %v2128
        %2140 = vmatprep.subr.bf16.mxu0 0
        %2141 = vmatpush1.bf16.xpose.msra.mxu0 %v2131
        %2142 = vmatprep.subr.bf16.mxu0 0
        %2143 = vmatpush1.bf16.xpose.msra.mxu0 %v2134
        %2144 = vmatprep.subr.bf16.mxu0 0
        %2145 = vmatpush1.bf16.xpose.msra.mxu0 0
        %2146 = vmatprep.subr.bf16.mxu0 0
        %2147 = vmatpush1.bf16.xpose.msra.mxu0 0
        %2148 = vmatprep.subr.bf16.mxu0 0
        %2149 = vmatpush1.bf16.xpose.msra.mxu0 0
        %2150 = vmatprep.subr.bf16.mxu0 0
        %2151 = vmatpush1.bf16.xpose.msra.mxu0 0
        %2152 = vmatprep.subr.bf16.mxu0 0
        %2153 = vmatpush1.bf16.xpose.msra.mxu0 0
        %2154 = vmatprep.subr.bf16.mxu0 0
        %2155 = vmatpush1.bf16.xpose.msra.mxu0 0
        %2156 = vmatprep.subr.bf16.mxu0 0
        %2157 = vmatpush1.bf16.xpose.msra.mxu0 0
        %2158 = vmatprep.subr.bf16.mxu0 0
        %2159 = vmatpush1.bf16.xpose.msra.mxu0 0
        %2160 = vmatprep.subr.bf16.mxu0 0
        %2161 = vmatpush1.bf16.xpose.msra.mxu0 0
        %2162 = vmatprep.subr.bf16.mxu0 0
        %2163 = vmatpush1.bf16.xpose.msra.mxu0 0
        %2164 = vmatprep.subr.bf16.mxu0 0
        %2165 = vmatpush1.bf16.xpose.msra.mxu0 0
        %2166 = vmatprep.subr.bf16.mxu0 0
        %2167 = vmatpush1.bf16.xpose.msra.mxu0 0
        %2168 = vmatprep.mubr.bf16.mxu0 0
        %2169 = vmatmul.mubr.bf16.gmra.mrb[0].mxu0 %v2113
        %v2170 = vpop.f32.mrb[0].mxu0
        %v2171 = vadd.f32 0.0, %v2170
        %v2172 = vpop.f32.mrb[0].mxu0
        %v2173 = vpop.f32.mrb[0].mxu0
        %v2174 = vadd.f32 0.0, %v2173
        %v2175 = vpop.f32.mrb[0].mxu0
        %2176 = vmatprep.mubr.bf16.mxu0 0
        %2177 = vmatmul.mubr.bf16.gmra.mrb[0].mxu0 %v2116
        %v2178 = vpop.f32.mrb[0].mxu0
        %v2179 = vadd.f32 0.0, %v2178
        %v2180 = vpop.f32.mrb[0].mxu0
        %v2181 = vpop.f32.mrb[0].mxu0
        %v2182 = vadd.f32 0.0, %v2181
        %v2183 = vpop.f32.mrb[0].mxu0
        %2184 = vmatprep.mubr.bf16.mxu0 0
        %2185 = vmatmul.mubr.bf16.gmra.mrb[0].mxu0 %v2119
        %v2186 = vpop.f32.mrb[0].mxu0
        %v2187 = vadd.f32 0.0, %v2186
        %v2188 = vpop.f32.mrb[0].mxu0
        %v2189 = vpop.f32.mrb[0].mxu0
        %v2190 = vadd.f32 0.0, %v2189
        %v2191 = vpop.f32.mrb[0].mxu0
        %2192 = vmatprep.mubr.bf16.mxu0 0
        %2193 = vmatmul.mubr.bf16.gmra.mrb[0].mxu0 %v2122
        %v2194 = vpop.f32.mrb[0].mxu0
        %v2195 = vadd.f32 0.0, %v2194
        %v2196 = vpop.f32.mrb[0].mxu0
        %v2197 = vpop.f32.mrb[0].mxu0
        %v2198 = vadd.f32 0.0, %v2197
        %v2199 = vpop.f32.mrb[0].mxu0
        %2200 = vdwg.mxu0
        %2205 = vrot.lane.b32.xlu0 %v1586, 96
        %v2206 = vpop.permute.xlu0 %2205
        %2207 = vrot.lane.b32.xlu0 %v1587, 96
        %v2208 = vpop.permute.xlu0 %2207
        %2209 = vrot.lane.b32.xlu0 %v1588, 96
        %v2210 = vpop.permute.xlu0 %2209
        %2211 = vrot.lane.b32.xlu0 %v1589, 96
        %v2212 = vpop.permute.xlu0 %2211
        %v2214 = vsel %vm1606, %v1586, 0
        %v2217 = vsel %vm1606, %v1587, 0
        %v2220 = vsel %vm1606, %v1588, 0
        %v2223 = vsel %vm1606, %v1589, 0
        %v2226 = vsel %vm1606, %v2206, 0
        %v2229 = vsel %vm1606, %v2208, 0
        %v2232 = vsel %vm1606, %v2210, 0
        %v2235 = vsel %vm1606, %v2212, 0
        %2237 = vmatprep.subr.bf16.mxu0 0
        %2238 = vmatpush1.bf16.xpose.msra.mxu0 %v2226
        %2239 = vmatprep.subr.bf16.mxu0 0
        %2240 = vmatpush1.bf16.xpose.msra.mxu0 %v2229
        %2241 = vmatprep.subr.bf16.mxu0 0
        %2242 = vmatpush1.bf16.xpose.msra.mxu0 %v2232
        %2243 = vmatprep.subr.bf16.mxu0 0
        %2244 = vmatpush1.bf16.xpose.msra.mxu0 %v2235
        %2245 = vmatprep.subr.bf16.mxu0 0
        %2246 = vmatpush1.bf16.xpose.msra.mxu0 0
        %2247 = vmatprep.subr.bf16.mxu0 0
        %2248 = vmatpush1.bf16.xpose.msra.mxu0 0
        %2249 = vmatprep.subr.bf16.mxu0 0
        %2250 = vmatpush1.bf16.xpose.msra.mxu0 0
        %2251 = vmatprep.subr.bf16.mxu0 0
        %2252 = vmatpush1.bf16.xpose.msra.mxu0 0
        %2253 = vmatprep.subr.bf16.mxu0 0
        %2254 = vmatpush1.bf16.xpose.msra.mxu0 0
        %2255 = vmatprep.subr.bf16.mxu0 0
        %2256 = vmatpush1.bf16.xpose.msra.mxu0 0
        %2257 = vmatprep.subr.bf16.mxu0 0
        %2258 = vmatpush1.bf16.xpose.msra.mxu0 0
        %2259 = vmatprep.subr.bf16.mxu0 0
        %2260 = vmatpush1.bf16.xpose.msra.mxu0 0
        %2261 = vmatprep.subr.bf16.mxu0 0
        %2262 = vmatpush1.bf16.xpose.msra.mxu0 0
        %2263 = vmatprep.subr.bf16.mxu0 0
        %2264 = vmatpush1.bf16.xpose.msra.mxu0 0
        %2265 = vmatprep.subr.bf16.mxu0 0
        %2266 = vmatpush1.bf16.xpose.msra.mxu0 0
        %2267 = vmatprep.subr.bf16.mxu0 0
        %2268 = vmatpush1.bf16.xpose.msra.mxu0 0
        %2269 = vmatprep.mubr.bf16.mxu0 0
        %2270 = vmatmul.mubr.bf16.gmra.mrb[0].mxu0 %v2214
        %v2271 = vpop.f32.mrb[0].mxu0
        %v2272 = vadd.f32 0.0, %v2271
        %v2273 = vpop.f32.mrb[0].mxu0
        %v2274 = vpop.f32.mrb[0].mxu0
        %v2275 = vadd.f32 0.0, %v2274
        %v2276 = vpop.f32.mrb[0].mxu0
        %2277 = vmatprep.mubr.bf16.mxu0 0
        %2278 = vmatmul.mubr.bf16.gmra.mrb[0].mxu0 %v2217
        %v2279 = vpop.f32.mrb[0].mxu0
        %v2280 = vadd.f32 0.0, %v2279
        %v2281 = vpop.f32.mrb[0].mxu0
        %v2282 = vpop.f32.mrb[0].mxu0
        %v2283 = vadd.f32 0.0, %v2282
        %v2284 = vpop.f32.mrb[0].mxu0
        %2285 = vmatprep.mubr.bf16.mxu0 0
        %2286 = vmatmul.mubr.bf16.gmra.mrb[0].mxu0 %v2220
        %v2287 = vpop.f32.mrb[0].mxu0
        %v2288 = vadd.f32 0.0, %v2287
        %v2289 = vpop.f32.mrb[0].mxu0
        %v2290 = vpop.f32.mrb[0].mxu0
        %v2291 = vadd.f32 0.0, %v2290
        %v2292 = vpop.f32.mrb[0].mxu0
        %2293 = vmatprep.mubr.bf16.mxu0 0
        %2294 = vmatmul.mubr.bf16.gmra.mrb[0].mxu0 %v2223
        %v2295 = vpop.f32.mrb[0].mxu0
        %v2296 = vadd.f32 0.0, %v2295
        %v2297 = vpop.f32.mrb[0].mxu0
        %v2298 = vpop.f32.mrb[0].mxu0
        %v2299 = vadd.f32 0.0, %v2298
        %v2300 = vpop.f32.mrb[0].mxu0
        %2301 = vdwg.mxu0
        %2306 = vrot.lane.b32.xlu0 %v1590, 96
        %v2307 = vpop.permute.xlu0 %2306
        %2308 = vrot.lane.b32.xlu0 %v1591, 96
        %v2309 = vpop.permute.xlu0 %2308
        %2310 = vrot.lane.b32.xlu0 %v1592, 96
        %v2311 = vpop.permute.xlu0 %2310
        %2312 = vrot.lane.b32.xlu0 %v1593, 96
        %v2313 = vpop.permute.xlu0 %2312
        %v2315 = vsel %vm1606, %v1590, 0
        %v2318 = vsel %vm1606, %v1591, 0
        %v2321 = vsel %vm1606, %v1592, 0
        %v2324 = vsel %vm1606, %v1593, 0
        %v2327 = vsel %vm1606, %v2307, 0
        %v2330 = vsel %vm1606, %v2309, 0
        %v2333 = vsel %vm1606, %v2311, 0
        %v2336 = vsel %vm1606, %v2313, 0
        %2338 = vmatprep.subr.bf16.mxu0 0
        %2339 = vmatpush1.bf16.xpose.msra.mxu0 %v2327
        %2340 = vmatprep.subr.bf16.mxu0 0
        %2341 = vmatpush1.bf16.xpose.msra.mxu0 %v2330
        %2342 = vmatprep.subr.bf16.mxu0 0
        %2343 = vmatpush1.bf16.xpose.msra.mxu0 %v2333
        %2344 = vmatprep.subr.bf16.mxu0 0
        %2345 = vmatpush1.bf16.xpose.msra.mxu0 %v2336
        %2346 = vmatprep.subr.bf16.mxu0 0
        %2347 = vmatpush1.bf16.xpose.msra.mxu0 0
        %2348 = vmatprep.subr.bf16.mxu0 0
        %2349 = vmatpush1.bf16.xpose.msra.mxu0 0
        %2350 = vmatprep.subr.bf16.mxu0 0
        %2351 = vmatpush1.bf16.xpose.msra.mxu0 0
        %2352 = vmatprep.subr.bf16.mxu0 0
        %2353 = vmatpush1.bf16.xpose.msra.mxu0 0
        %2354 = vmatprep.subr.bf16.mxu0 0
        %2355 = vmatpush1.bf16.xpose.msra.mxu0 0
        %2356 = vmatprep.subr.bf16.mxu0 0
        %2357 = vmatpush1.bf16.xpose.msra.mxu0 0
        %2358 = vmatprep.subr.bf16.mxu0 0
        %2359 = vmatpush1.bf16.xpose.msra.mxu0 0
        %2360 = vmatprep.subr.bf16.mxu0 0
        %2361 = vmatpush1.bf16.xpose.msra.mxu0 0
        %2362 = vmatprep.subr.bf16.mxu0 0
        %2363 = vmatpush1.bf16.xpose.msra.mxu0 0
        %2364 = vmatprep.subr.bf16.mxu0 0
        %2365 = vmatpush1.bf16.xpose.msra.mxu0 0
        %2366 = vmatprep.subr.bf16.mxu0 0
        %2367 = vmatpush1.bf16.xpose.msra.mxu0 0
        %2368 = vmatprep.subr.bf16.mxu0 0
        %2369 = vmatpush1.bf16.xpose.msra.mxu0 0
        %2370 = vmatprep.mubr.bf16.mxu0 0
        %2371 = vmatmul.mubr.bf16.gmra.mrb[0].mxu0 %v2315
        %v2372 = vpop.f32.mrb[0].mxu0
        %v2373 = vadd.f32 0.0, %v2372
        %v2374 = vpop.f32.mrb[0].mxu0
        %v2375 = vpop.f32.mrb[0].mxu0
        %v2376 = vadd.f32 0.0, %v2375
        %v2377 = vpop.f32.mrb[0].mxu0
        %2378 = vmatprep.mubr.bf16.mxu0 0
        %2379 = vmatmul.mubr.bf16.gmra.mrb[0].mxu0 %v2318
        %v2380 = vpop.f32.mrb[0].mxu0
        %v2381 = vadd.f32 0.0, %v2380
        %v2382 = vpop.f32.mrb[0].mxu0
        %v2383 = vpop.f32.mrb[0].mxu0
        %v2384 = vadd.f32 0.0, %v2383
        %v2385 = vpop.f32.mrb[0].mxu0
        %2386 = vmatprep.mubr.bf16.mxu0 0
        %2387 = vmatmul.mubr.bf16.gmra.mrb[0].mxu0 %v2321
        %v2388 = vpop.f32.mrb[0].mxu0
        %v2389 = vadd.f32 0.0, %v2388
        %v2390 = vpop.f32.mrb[0].mxu0
        %v2391 = vpop.f32.mrb[0].mxu0
        %v2392 = vadd.f32 0.0, %v2391
        %v2393 = vpop.f32.mrb[0].mxu0
        %2394 = vmatprep.mubr.bf16.mxu0 0
        %2395 = vmatmul.mubr.bf16.gmra.mrb[0].mxu0 %v2324
        %v2396 = vpop.f32.mrb[0].mxu0
        %v2397 = vadd.f32 0.0, %v2396
        %v2398 = vpop.f32.mrb[0].mxu0
        %v2399 = vpop.f32.mrb[0].mxu0
        %v2400 = vadd.f32 0.0, %v2399
        %v2401 = vpop.f32.mrb[0].mxu0
        %2402 = vdwg.mxu0
        %v2403 = vadd.f32 %v1666, %v1170
        %v2404 = vadd.f32 %v1669, %v1171
        %v2405 = vadd.f32 %v1674, %v1172
        %v2406 = vadd.f32 %v1677, %v1173
        %v2407 = vadd.f32 %v1682, %v1174
        %v2408 = vadd.f32 %v1685, %v1175
        %v2409 = vadd.f32 %v1690, %v1176
        %v2410 = vadd.f32 %v1693, %v1177
        %v2411 = vadd.f32 %v1767, %v1170
        %v2412 = vadd.f32 %v1770, %v1171
        %v2413 = vadd.f32 %v1775, %v1172
        %v2414 = vadd.f32 %v1778, %v1173
        %v2415 = vadd.f32 %v1783, %v1174
        %v2416 = vadd.f32 %v1786, %v1175
        %v2417 = vadd.f32 %v1791, %v1176
        %v2418 = vadd.f32 %v1794, %v1177
        %v2419 = vadd.f32 %v1868, %v1170
        %v2420 = vadd.f32 %v1871, %v1171
        %v2421 = vadd.f32 %v1876, %v1172
        %v2422 = vadd.f32 %v1879, %v1173
        %v2423 = vadd.f32 %v1884, %v1174
        %v2424 = vadd.f32 %v1887, %v1175
        %v2425 = vadd.f32 %v1892, %v1176
        %v2426 = vadd.f32 %v1895, %v1177
        %v2427 = vadd.f32 %v1969, %v1170
        %v2428 = vadd.f32 %v1972, %v1171
        %v2429 = vadd.f32 %v1977, %v1172
        %v2430 = vadd.f32 %v1980, %v1173
        %v2431 = vadd.f32 %v1985, %v1174
        %v2432 = vadd.f32 %v1988, %v1175
        %v2433 = vadd.f32 %v1993, %v1176
        %v2434 = vadd.f32 %v1996, %v1177
        %v2435 = vadd.f32 %v2070, %v1178
        %v2436 = vadd.f32 %v2073, %v1179
        %v2437 = vadd.f32 %v2078, %v1180
        %v2438 = vadd.f32 %v2081, %v1181
        %v2439 = vadd.f32 %v2086, %v1182
        %v2440 = vadd.f32 %v2089, %v1183
        %v2441 = vadd.f32 %v2094, %v1184
        %v2442 = vadd.f32 %v2097, %v1185
        %v2443 = vadd.f32 %v2171, %v1178
        %v2444 = vadd.f32 %v2174, %v1179
        %v2445 = vadd.f32 %v2179, %v1180
        %v2446 = vadd.f32 %v2182, %v1181
        %v2447 = vadd.f32 %v2187, %v1182
        %v2448 = vadd.f32 %v2190, %v1183
        %v2449 = vadd.f32 %v2195, %v1184
        %v2450 = vadd.f32 %v2198, %v1185
        %v2451 = vadd.f32 %v2272, %v1178
        %v2452 = vadd.f32 %v2275, %v1179
        %v2453 = vadd.f32 %v2280, %v1180
        %v2454 = vadd.f32 %v2283, %v1181
        %v2455 = vadd.f32 %v2288, %v1182
        %v2456 = vadd.f32 %v2291, %v1183
        %v2457 = vadd.f32 %v2296, %v1184
        %v2458 = vadd.f32 %v2299, %v1185
        %v2459 = vadd.f32 %v2373, %v1178
        %v2460 = vadd.f32 %v2376, %v1179
        %v2461 = vadd.f32 %v2381, %v1180
        %v2462 = vadd.f32 %v2384, %v1181
        %v2463 = vadd.f32 %v2389, %v1182
        %v2464 = vadd.f32 %v2392, %v1183
        %v2465 = vadd.f32 %v2397, %v1184
        %v2466 = vadd.f32 %v2400, %v1185
        %vm2467 = vcmask 523264
        %v2468 = vsel %vm2467, %v2403, -inf
        %2469 = vmax.xlane.f32.xlu0 %v2468
        %v2470 = vpop.xlane.xlu0 %2469
        %v2471 = vsel %vm2467, %v2404, -inf
        %2472 = vmax.xlane.f32.xlu0 %v2471
        %v2473 = vpop.xlane.xlu0 %2472
        %v2474 = vsel %vm2467, %v2405, -inf
        %2475 = vmax.xlane.f32.xlu0 %v2474
        %v2476 = vpop.xlane.xlu0 %2475
        %v2477 = vsel %vm2467, %v2406, -inf
        %2478 = vmax.xlane.f32.xlu0 %v2477
        %v2479 = vpop.xlane.xlu0 %2478
        %v2480 = vsel %vm2467, %v2407, -inf
        %2481 = vmax.xlane.f32.xlu0 %v2480
        %v2482 = vpop.xlane.xlu0 %2481
        %v2483 = vsel %vm2467, %v2408, -inf
        %2484 = vmax.xlane.f32.xlu0 %v2483
        %v2485 = vpop.xlane.xlu0 %2484
        %v2486 = vsel %vm2467, %v2409, -inf
        %2487 = vmax.xlane.f32.xlu0 %v2486
        %v2488 = vpop.xlane.xlu0 %2487
        %v2489 = vsel %vm2467, %v2410, -inf
        %2490 = vmax.xlane.f32.xlu0 %v2489
        %v2491 = vpop.xlane.xlu0 %2490
        %v2492 = vsel %vm2467, %v2411, -inf
        %2493 = vmax.xlane.f32.xlu0 %v2492
        %v2494 = vpop.xlane.xlu0 %2493
        %v2495 = vsel %vm2467, %v2412, -inf
        %2496 = vmax.xlane.f32.xlu0 %v2495
        %v2497 = vpop.xlane.xlu0 %2496
        %v2498 = vsel %vm2467, %v2413, -inf
        %2499 = vmax.xlane.f32.xlu0 %v2498
        %v2500 = vpop.xlane.xlu0 %2499
        %v2501 = vsel %vm2467, %v2414, -inf
        %2502 = vmax.xlane.f32.xlu0 %v2501
        %v2503 = vpop.xlane.xlu0 %2502
        %v2504 = vsel %vm2467, %v2415, -inf
        %2505 = vmax.xlane.f32.xlu0 %v2504
        %v2506 = vpop.xlane.xlu0 %2505
        %v2507 = vsel %vm2467, %v2416, -inf
        %2508 = vmax.xlane.f32.xlu0 %v2507
        %v2509 = vpop.xlane.xlu0 %2508
        %v2510 = vsel %vm2467, %v2417, -inf
        %2511 = vmax.xlane.f32.xlu0 %v2510
        %v2512 = vpop.xlane.xlu0 %2511
        %v2513 = vsel %vm2467, %v2418, -inf
        %2514 = vmax.xlane.f32.xlu0 %v2513
        %v2515 = vpop.xlane.xlu0 %2514
        %v2516 = vsel %vm2467, %v2419, -inf
        %2517 = vmax.xlane.f32.xlu0 %v2516
        %v2518 = vpop.xlane.xlu0 %2517
        %v2519 = vsel %vm2467, %v2420, -inf
        %2520 = vmax.xlane.f32.xlu0 %v2519
        %v2521 = vpop.xlane.xlu0 %2520
        %v2522 = vsel %vm2467, %v2421, -inf
        %2523 = vmax.xlane.f32.xlu0 %v2522
        %v2524 = vpop.xlane.xlu0 %2523
        %v2525 = vsel %vm2467, %v2422, -inf
        %2526 = vmax.xlane.f32.xlu0 %v2525
        %v2527 = vpop.xlane.xlu0 %2526
        %v2528 = vsel %vm2467, %v2423, -inf
        %2529 = vmax.xlane.f32.xlu0 %v2528
        %v2530 = vpop.xlane.xlu0 %2529
        %v2531 = vsel %vm2467, %v2424, -inf
        %2532 = vmax.xlane.f32.xlu0 %v2531
        %v2533 = vpop.xlane.xlu0 %2532
        %v2534 = vsel %vm2467, %v2425, -inf
        %2535 = vmax.xlane.f32.xlu0 %v2534
        %v2536 = vpop.xlane.xlu0 %2535
        %v2537 = vsel %vm2467, %v2426, -inf
        %2538 = vmax.xlane.f32.xlu0 %v2537
        %v2539 = vpop.xlane.xlu0 %2538
        %v2540 = vsel %vm2467, %v2427, -inf
        %2541 = vmax.xlane.f32.xlu0 %v2540
        %v2542 = vpop.xlane.xlu0 %2541
        %v2543 = vsel %vm2467, %v2428, -inf
        %2544 = vmax.xlane.f32.xlu0 %v2543
        %v2545 = vpop.xlane.xlu0 %2544
        %v2546 = vsel %vm2467, %v2429, -inf
        %2547 = vmax.xlane.f32.xlu0 %v2546
        %v2548 = vpop.xlane.xlu0 %2547
        %v2549 = vsel %vm2467, %v2430, -inf
        %2550 = vmax.xlane.f32.xlu0 %v2549
        %v2551 = vpop.xlane.xlu0 %2550
        %v2552 = vsel %vm2467, %v2431, -inf
        %2553 = vmax.xlane.f32.xlu0 %v2552
        %v2554 = vpop.xlane.xlu0 %2553
        %v2555 = vsel %vm2467, %v2432, -inf
        %2556 = vmax.xlane.f32.xlu0 %v2555
        %v2557 = vpop.xlane.xlu0 %2556
        %v2558 = vsel %vm2467, %v2433, -inf
        %2559 = vmax.xlane.f32.xlu0 %v2558
        %v2560 = vpop.xlane.xlu0 %2559
        %v2561 = vsel %vm2467, %v2434, -inf
        %2562 = vmax.xlane.f32.xlu0 %v2561
        %v2563 = vpop.xlane.xlu0 %2562
        %v2564 = vsel %vm2467, %v2435, -inf
        %2565 = vmax.xlane.f32.xlu0 %v2564
        %v2566 = vpop.xlane.xlu0 %2565
        %v2567 = vsel %vm2467, %v2436, -inf
        %2568 = vmax.xlane.f32.xlu0 %v2567
        %v2569 = vpop.xlane.xlu0 %2568
        %v2570 = vsel %vm2467, %v2437, -inf
        %2571 = vmax.xlane.f32.xlu0 %v2570
        %v2572 = vpop.xlane.xlu0 %2571
        %v2573 = vsel %vm2467, %v2438, -inf
        %2574 = vmax.xlane.f32.xlu0 %v2573
        %v2575 = vpop.xlane.xlu0 %2574
        %v2576 = vsel %vm2467, %v2439, -inf
        %2577 = vmax.xlane.f32.xlu0 %v2576
        %v2578 = vpop.xlane.xlu0 %2577
        %v2579 = vsel %vm2467, %v2440, -inf
        %2580 = vmax.xlane.f32.xlu0 %v2579
        %v2581 = vpop.xlane.xlu0 %2580
        %v2582 = vsel %vm2467, %v2441, -inf
        %2583 = vmax.xlane.f32.xlu0 %v2582
        %v2584 = vpop.xlane.xlu0 %2583
        %v2585 = vsel %vm2467, %v2442, -inf
        %2586 = vmax.xlane.f32.xlu0 %v2585
        %v2587 = vpop.xlane.xlu0 %2586
        %v2588 = vsel %vm2467, %v2443, -inf
        %2589 = vmax.xlane.f32.xlu0 %v2588
        %v2590 = vpop.xlane.xlu0 %2589
        %v2591 = vsel %vm2467, %v2444, -inf
        %2592 = vmax.xlane.f32.xlu0 %v2591
        %v2593 = vpop.xlane.xlu0 %2592
        %v2594 = vsel %vm2467, %v2445, -inf
        %2595 = vmax.xlane.f32.xlu0 %v2594
        %v2596 = vpop.xlane.xlu0 %2595
        %v2597 = vsel %vm2467, %v2446, -inf
        %2598 = vmax.xlane.f32.xlu0 %v2597
        %v2599 = vpop.xlane.xlu0 %2598
        %v2600 = vsel %vm2467, %v2447, -inf
        %2601 = vmax.xlane.f32.xlu0 %v2600
        %v2602 = vpop.xlane.xlu0 %2601
        %v2603 = vsel %vm2467, %v2448, -inf
        %2604 = vmax.xlane.f32.xlu0 %v2603
        %v2605 = vpop.xlane.xlu0 %2604
        %v2606 = vsel %vm2467, %v2449, -inf
        %2607 = vmax.xlane.f32.xlu0 %v2606
        %v2608 = vpop.xlane.xlu0 %2607
        %v2609 = vsel %vm2467, %v2450, -inf
        %2610 = vmax.xlane.f32.xlu0 %v2609
        %v2611 = vpop.xlane.xlu0 %2610
        %v2612 = vsel %vm2467, %v2451, -inf
        %2613 = vmax.xlane.f32.xlu0 %v2612
        %v2614 = vpop.xlane.xlu0 %2613
        %v2615 = vsel %vm2467, %v2452, -inf
        %2616 = vmax.xlane.f32.xlu0 %v2615
        %v2617 = vpop.xlane.xlu0 %2616
        %v2618 = vsel %vm2467, %v2453, -inf
        %2619 = vmax.xlane.f32.xlu0 %v2618
        %v2620 = vpop.xlane.xlu0 %2619
        %v2621 = vsel %vm2467, %v2454, -inf
        %2622 = vmax.xlane.f32.xlu0 %v2621
        %v2623 = vpop.xlane.xlu0 %2622
        %v2624 = vsel %vm2467, %v2455, -inf
        %2625 = vmax.xlane.f32.xlu0 %v2624
        %v2626 = vpop.xlane.xlu0 %2625
        %v2627 = vsel %vm2467, %v2456, -inf
        %2628 = vmax.xlane.f32.xlu0 %v2627
        %v2629 = vpop.xlane.xlu0 %2628
        %v2630 = vsel %vm2467, %v2457, -inf
        %2631 = vmax.xlane.f32.xlu0 %v2630
        %v2632 = vpop.xlane.xlu0 %2631
        %v2633 = vsel %vm2467, %v2458, -inf
        %2634 = vmax.xlane.f32.xlu0 %v2633
        %v2635 = vpop.xlane.xlu0 %2634
        %v2636 = vsel %vm2467, %v2459, -inf
        %2637 = vmax.xlane.f32.xlu0 %v2636
        %v2638 = vpop.xlane.xlu0 %2637
        %v2639 = vsel %vm2467, %v2460, -inf
        %2640 = vmax.xlane.f32.xlu0 %v2639
        %v2641 = vpop.xlane.xlu0 %2640
        %v2642 = vsel %vm2467, %v2461, -inf
        %2643 = vmax.xlane.f32.xlu0 %v2642
        %v2644 = vpop.xlane.xlu0 %2643
        %v2645 = vsel %vm2467, %v2462, -inf
        %2646 = vmax.xlane.f32.xlu0 %v2645
        %v2647 = vpop.xlane.xlu0 %2646
        %v2648 = vsel %vm2467, %v2463, -inf
        %2649 = vmax.xlane.f32.xlu0 %v2648
        %v2650 = vpop.xlane.xlu0 %2649
        %v2651 = vsel %vm2467, %v2464, -inf
        %2652 = vmax.xlane.f32.xlu0 %v2651
        %v2653 = vpop.xlane.xlu0 %2652
        %v2654 = vsel %vm2467, %v2465, -inf
        %2655 = vmax.xlane.f32.xlu0 %v2654
        %v2656 = vpop.xlane.xlu0 %2655
        %v2657 = vsel %vm2467, %v2466, -inf
        %2658 = vmax.xlane.f32.xlu0 %v2657
        %v2659 = vpop.xlane.xlu0 %2658
        %v2660 = vsub.f32 %v2403, %v2470
        %v2661 = vsub.f32 %v2404, %v2473
        %v2662 = vsub.f32 %v2405, %v2476
        %v2663 = vsub.f32 %v2406, %v2479
        %v2664 = vsub.f32 %v2407, %v2482
        %v2665 = vsub.f32 %v2408, %v2485
        %v2666 = vsub.f32 %v2409, %v2488
        %v2667 = vsub.f32 %v2410, %v2491
        %v2668 = vsub.f32 %v2411, %v2494
        %v2669 = vsub.f32 %v2412, %v2497
        %v2670 = vsub.f32 %v2413, %v2500
        %v2671 = vsub.f32 %v2414, %v2503
        %v2672 = vsub.f32 %v2415, %v2506
        %v2673 = vsub.f32 %v2416, %v2509
        %v2674 = vsub.f32 %v2417, %v2512
        %v2675 = vsub.f32 %v2418, %v2515
        %v2676 = vsub.f32 %v2419, %v2518
        %v2677 = vsub.f32 %v2420, %v2521
        %v2678 = vsub.f32 %v2421, %v2524
        %v2679 = vsub.f32 %v2422, %v2527
        %v2680 = vsub.f32 %v2423, %v2530
        %v2681 = vsub.f32 %v2424, %v2533
        %v2682 = vsub.f32 %v2425, %v2536
        %v2683 = vsub.f32 %v2426, %v2539
        %v2684 = vsub.f32 %v2427, %v2542
        %v2685 = vsub.f32 %v2428, %v2545
        %v2686 = vsub.f32 %v2429, %v2548
        %v2687 = vsub.f32 %v2430, %v2551
        %v2688 = vsub.f32 %v2431, %v2554
        %v2689 = vsub.f32 %v2432, %v2557
        %v2690 = vsub.f32 %v2433, %v2560
        %v2691 = vsub.f32 %v2434, %v2563
        %v2692 = vsub.f32 %v2435, %v2566
        %v2693 = vsub.f32 %v2436, %v2569
        %v2694 = vsub.f32 %v2437, %v2572
        %v2695 = vsub.f32 %v2438, %v2575
        %v2696 = vsub.f32 %v2439, %v2578
        %v2697 = vsub.f32 %v2440, %v2581
        %v2698 = vsub.f32 %v2441, %v2584
        %v2699 = vsub.f32 %v2442, %v2587
        %v2700 = vsub.f32 %v2443, %v2590
        %v2701 = vsub.f32 %v2444, %v2593
        %v2702 = vsub.f32 %v2445, %v2596
        %v2703 = vsub.f32 %v2446, %v2599
        %v2704 = vsub.f32 %v2447, %v2602
        %v2705 = vsub.f32 %v2448, %v2605
        %v2706 = vsub.f32 %v2449, %v2608
        %v2707 = vsub.f32 %v2450, %v2611
        %v2708 = vsub.f32 %v2451, %v2614
        %v2709 = vsub.f32 %v2452, %v2617
        %v2710 = vsub.f32 %v2453, %v2620
        %v2711 = vsub.f32 %v2454, %v2623
        %v2712 = vsub.f32 %v2455, %v2626
        %v2713 = vsub.f32 %v2456, %v2629
        %v2714 = vsub.f32 %v2457, %v2632
        %v2715 = vsub.f32 %v2458, %v2635
        %v2716 = vsub.f32 %v2459, %v2638
        %v2717 = vsub.f32 %v2460, %v2641
        %v2718 = vsub.f32 %v2461, %v2644
        %v2719 = vsub.f32 %v2462, %v2647
        %v2720 = vsub.f32 %v2463, %v2650
        %v2721 = vsub.f32 %v2464, %v2653
        %v2722 = vsub.f32 %v2465, %v2656
        %v2723 = vsub.f32 %v2466, %v2659
        %v2724 = vmul.f32 %v2660, 1.442695
        %v2725 = vpow.pop %v2724
        %v2726 = vmul.f32 %v2661, 1.442695
        %v2727 = vpow.pop %v2726
        %v2728 = vmul.f32 %v2662, 1.442695
        %v2729 = vpow.pop %v2728
        %v2730 = vmul.f32 %v2663, 1.442695
        %v2731 = vpow.pop %v2730
        %v2732 = vmul.f32 %v2664, 1.442695
        %v2733 = vpow.pop %v2732
        %v2734 = vmul.f32 %v2665, 1.442695
        %v2735 = vpow.pop %v2734
        %v2736 = vmul.f32 %v2666, 1.442695
        %v2737 = vpow.pop %v2736
        %v2738 = vmul.f32 %v2667, 1.442695
        %v2739 = vpow.pop %v2738
        %v2740 = vmul.f32 %v2668, 1.442695
        %v2741 = vpow.pop %v2740
        %v2742 = vmul.f32 %v2669, 1.442695
        %v2743 = vpow.pop %v2742
        %v2744 = vmul.f32 %v2670, 1.442695
        %v2745 = vpow.pop %v2744
        %v2746 = vmul.f32 %v2671, 1.442695
        %v2747 = vpow.pop %v2746
        %v2748 = vmul.f32 %v2672, 1.442695
        %v2749 = vpow.pop %v2748
        %v2750 = vmul.f32 %v2673, 1.442695
        %v2751 = vpow.pop %v2750
        %v2752 = vmul.f32 %v2674, 1.442695
        %v2753 = vpow.pop %v2752
        %v2754 = vmul.f32 %v2675, 1.442695
        %v2755 = vpow.pop %v2754
        %v2756 = vmul.f32 %v2676, 1.442695
        %v2757 = vpow.pop %v2756
        %v2758 = vmul.f32 %v2677, 1.442695
        %v2759 = vpow.pop %v2758
        %v2760 = vmul.f32 %v2678, 1.442695
        %v2761 = vpow.pop %v2760
        %v2762 = vmul.f32 %v2679, 1.442695
        %v2763 = vpow.pop %v2762
        %v2764 = vmul.f32 %v2680, 1.442695
        %v2765 = vpow.pop %v2764
        %v2766 = vmul.f32 %v2681, 1.442695
        %v2767 = vpow.pop %v2766
        %v2768 = vmul.f32 %v2682, 1.442695
        %v2769 = vpow.pop %v2768
        %v2770 = vmul.f32 %v2683, 1.442695
        %v2771 = vpow.pop %v2770
        %v2772 = vmul.f32 %v2684, 1.442695
        %v2773 = vpow.pop %v2772
        %v2774 = vmul.f32 %v2685, 1.442695
        %v2775 = vpow.pop %v2774
        %v2776 = vmul.f32 %v2686, 1.442695
        %v2777 = vpow.pop %v2776
        %v2778 = vmul.f32 %v2687, 1.442695
        %v2779 = vpow.pop %v2778
        %v2780 = vmul.f32 %v2688, 1.442695
        %v2781 = vpow.pop %v2780
        %v2782 = vmul.f32 %v2689, 1.442695
        %v2783 = vpow.pop %v2782
        %v2784 = vmul.f32 %v2690, 1.442695
        %v2785 = vpow.pop %v2784
        %v2786 = vmul.f32 %v2691, 1.442695
        %v2787 = vpow.pop %v2786
        %v2788 = vmul.f32 %v2692, 1.442695
        %v2789 = vpow.pop %v2788
        %v2790 = vmul.f32 %v2693, 1.442695
        %v2791 = vpow.pop %v2790
        %v2792 = vmul.f32 %v2694, 1.442695
        %v2793 = vpow.pop %v2792
        %v2794 = vmul.f32 %v2695, 1.442695
        %v2795 = vpow.pop %v2794
        %v2796 = vmul.f32 %v2696, 1.442695
        %v2797 = vpow.pop %v2796
        %v2798 = vmul.f32 %v2697, 1.442695
        %v2799 = vpow.pop %v2798
        %v2800 = vmul.f32 %v2698, 1.442695
        %v2801 = vpow.pop %v2800
        %v2802 = vmul.f32 %v2699, 1.442695
        %v2803 = vpow.pop %v2802
        %v2804 = vmul.f32 %v2700, 1.442695
        %v2805 = vpow.pop %v2804
        %v2806 = vmul.f32 %v2701, 1.442695
        %v2807 = vpow.pop %v2806
        %v2808 = vmul.f32 %v2702, 1.442695
        %v2809 = vpow.pop %v2808
        %v2810 = vmul.f32 %v2703, 1.442695
        %v2811 = vpow.pop %v2810
        %v2812 = vmul.f32 %v2704, 1.442695
        %v2813 = vpow.pop %v2812
        %v2814 = vmul.f32 %v2705, 1.442695
        %v2815 = vpow.pop %v2814
        %v2816 = vmul.f32 %v2706, 1.442695
        %v2817 = vpow.pop %v2816
        %v2818 = vmul.f32 %v2707, 1.442695
        %v2819 = vpow.pop %v2818
        %v2820 = vmul.f32 %v2708, 1.442695
        %v2821 = vpow.pop %v2820
        %v2822 = vmul.f32 %v2709, 1.442695
        %v2823 = vpow.pop %v2822
        %v2824 = vmul.f32 %v2710, 1.442695
        %v2825 = vpow.pop %v2824
        %v2826 = vmul.f32 %v2711, 1.442695
        %v2827 = vpow.pop %v2826
        %v2828 = vmul.f32 %v2712, 1.442695
        %v2829 = vpow.pop %v2828
        %v2830 = vmul.f32 %v2713, 1.442695
        %v2831 = vpow.pop %v2830
        %v2832 = vmul.f32 %v2714, 1.442695
        %v2833 = vpow.pop %v2832
        %v2834 = vmul.f32 %v2715, 1.442695
        %v2835 = vpow.pop %v2834
        %v2836 = vmul.f32 %v2716, 1.442695
        %v2837 = vpow.pop %v2836
        %v2838 = vmul.f32 %v2717, 1.442695
        %v2839 = vpow.pop %v2838
        %v2840 = vmul.f32 %v2718, 1.442695
        %v2841 = vpow.pop %v2840
        %v2842 = vmul.f32 %v2719, 1.442695
        %v2843 = vpow.pop %v2842
        %v2844 = vmul.f32 %v2720, 1.442695
        %v2845 = vpow.pop %v2844
        %v2846 = vmul.f32 %v2721, 1.442695
        %v2847 = vpow.pop %v2846
        %v2848 = vmul.f32 %v2722, 1.442695
        %v2849 = vpow.pop %v2848
        %v2850 = vmul.f32 %v2723, 1.442695
        %v2851 = vpow.pop %v2850
        %v2852 = vsel %vm2467, %v2725, 0.0
        %2853 = vadd.xlane.f32.xlu0 %v2852
        %v2854 = vpop.xlane.xlu0 %2853
        %v2855 = vsel %vm2467, %v2727, 0.0
        %2856 = vadd.xlane.f32.xlu0 %v2855
        %v2857 = vpop.xlane.xlu0 %2856
        %v2858 = vsel %vm2467, %v2729, 0.0
        %2859 = vadd.xlane.f32.xlu0 %v2858
        %v2860 = vpop.xlane.xlu0 %2859
        %v2861 = vsel %vm2467, %v2731, 0.0
        %2862 = vadd.xlane.f32.xlu0 %v2861
        %v2863 = vpop.xlane.xlu0 %2862
        %v2864 = vsel %vm2467, %v2733, 0.0
        %2865 = vadd.xlane.f32.xlu0 %v2864
        %v2866 = vpop.xlane.xlu0 %2865
        %v2867 = vsel %vm2467, %v2735, 0.0
        %2868 = vadd.xlane.f32.xlu0 %v2867
        %v2869 = vpop.xlane.xlu0 %2868
        %v2870 = vsel %vm2467, %v2737, 0.0
        %2871 = vadd.xlane.f32.xlu0 %v2870
        %v2872 = vpop.xlane.xlu0 %2871
        %v2873 = vsel %vm2467, %v2739, 0.0
        %2874 = vadd.xlane.f32.xlu0 %v2873
        %v2875 = vpop.xlane.xlu0 %2874
        %v2876 = vsel %vm2467, %v2741, 0.0
        %2877 = vadd.xlane.f32.xlu0 %v2876
        %v2878 = vpop.xlane.xlu0 %2877
        %v2879 = vsel %vm2467, %v2743, 0.0
        %2880 = vadd.xlane.f32.xlu0 %v2879
        %v2881 = vpop.xlane.xlu0 %2880
        %v2882 = vsel %vm2467, %v2745, 0.0
        %2883 = vadd.xlane.f32.xlu0 %v2882
        %v2884 = vpop.xlane.xlu0 %2883
        %v2885 = vsel %vm2467, %v2747, 0.0
        %2886 = vadd.xlane.f32.xlu0 %v2885
        %v2887 = vpop.xlane.xlu0 %2886
        %v2888 = vsel %vm2467, %v2749, 0.0
        %2889 = vadd.xlane.f32.xlu0 %v2888
        %v2890 = vpop.xlane.xlu0 %2889
        %v2891 = vsel %vm2467, %v2751, 0.0
        %2892 = vadd.xlane.f32.xlu0 %v2891
        %v2893 = vpop.xlane.xlu0 %2892
        %v2894 = vsel %vm2467, %v2753, 0.0
        %2895 = vadd.xlane.f32.xlu0 %v2894
        %v2896 = vpop.xlane.xlu0 %2895
        %v2897 = vsel %vm2467, %v2755, 0.0
        %2898 = vadd.xlane.f32.xlu0 %v2897
        %v2899 = vpop.xlane.xlu0 %2898
        %v2900 = vsel %vm2467, %v2757, 0.0
        %2901 = vadd.xlane.f32.xlu0 %v2900
        %v2902 = vpop.xlane.xlu0 %2901
        %v2903 = vsel %vm2467, %v2759, 0.0
        %2904 = vadd.xlane.f32.xlu0 %v2903
        %v2905 = vpop.xlane.xlu0 %2904
        %v2906 = vsel %vm2467, %v2761, 0.0
        %2907 = vadd.xlane.f32.xlu0 %v2906
        %v2908 = vpop.xlane.xlu0 %2907
        %v2909 = vsel %vm2467, %v2763, 0.0
        %2910 = vadd.xlane.f32.xlu0 %v2909
        %v2911 = vpop.xlane.xlu0 %2910
        %v2912 = vsel %vm2467, %v2765, 0.0
        %2913 = vadd.xlane.f32.xlu0 %v2912
        %v2914 = vpop.xlane.xlu0 %2913
        %v2915 = vsel %vm2467, %v2767, 0.0
        %2916 = vadd.xlane.f32.xlu0 %v2915
        %v2917 = vpop.xlane.xlu0 %2916
        %v2918 = vsel %vm2467, %v2769, 0.0
        %2919 = vadd.xlane.f32.xlu0 %v2918
        %v2920 = vpop.xlane.xlu0 %2919
        %v2921 = vsel %vm2467, %v2771, 0.0
        %2922 = vadd.xlane.f32.xlu0 %v2921
        %v2923 = vpop.xlane.xlu0 %2922
        %v2924 = vsel %vm2467, %v2773, 0.0
        %2925 = vadd.xlane.f32.xlu0 %v2924
        %v2926 = vpop.xlane.xlu0 %2925
        %v2927 = vsel %vm2467, %v2775, 0.0
        %2928 = vadd.xlane.f32.xlu0 %v2927
        %v2929 = vpop.xlane.xlu0 %2928
        %v2930 = vsel %vm2467, %v2777, 0.0
        %2931 = vadd.xlane.f32.xlu0 %v2930
        %v2932 = vpop.xlane.xlu0 %2931
        %v2933 = vsel %vm2467, %v2779, 0.0
        %2934 = vadd.xlane.f32.xlu0 %v2933
        %v2935 = vpop.xlane.xlu0 %2934
        %v2936 = vsel %vm2467, %v2781, 0.0
        %2937 = vadd.xlane.f32.xlu0 %v2936
        %v2938 = vpop.xlane.xlu0 %2937
        %v2939 = vsel %vm2467, %v2783, 0.0
        %2940 = vadd.xlane.f32.xlu0 %v2939
        %v2941 = vpop.xlane.xlu0 %2940
        %v2942 = vsel %vm2467, %v2785, 0.0
        %2943 = vadd.xlane.f32.xlu0 %v2942
        %v2944 = vpop.xlane.xlu0 %2943
        %v2945 = vsel %vm2467, %v2787, 0.0
        %2946 = vadd.xlane.f32.xlu0 %v2945
        %v2947 = vpop.xlane.xlu0 %2946
        %v2948 = vsel %vm2467, %v2789, 0.0
        %2949 = vadd.xlane.f32.xlu0 %v2948
        %v2950 = vpop.xlane.xlu0 %2949
        %v2951 = vsel %vm2467, %v2791, 0.0
        %2952 = vadd.xlane.f32.xlu0 %v2951
        %v2953 = vpop.xlane.xlu0 %2952
        %v2954 = vsel %vm2467, %v2793, 0.0
        %2955 = vadd.xlane.f32.xlu0 %v2954
        %v2956 = vpop.xlane.xlu0 %2955
        %v2957 = vsel %vm2467, %v2795, 0.0
        %2958 = vadd.xlane.f32.xlu0 %v2957
        %v2959 = vpop.xlane.xlu0 %2958
        %v2960 = vsel %vm2467, %v2797, 0.0
        %2961 = vadd.xlane.f32.xlu0 %v2960
        %v2962 = vpop.xlane.xlu0 %2961
        %v2963 = vsel %vm2467, %v2799, 0.0
        %2964 = vadd.xlane.f32.xlu0 %v2963
        %v2965 = vpop.xlane.xlu0 %2964
        %v2966 = vsel %vm2467, %v2801, 0.0
        %2967 = vadd.xlane.f32.xlu0 %v2966
        %v2968 = vpop.xlane.xlu0 %2967
        %v2969 = vsel %vm2467, %v2803, 0.0
        %2970 = vadd.xlane.f32.xlu0 %v2969
        %v2971 = vpop.xlane.xlu0 %2970
        %v2972 = vsel %vm2467, %v2805, 0.0
        %2973 = vadd.xlane.f32.xlu0 %v2972
        %v2974 = vpop.xlane.xlu0 %2973
        %v2975 = vsel %vm2467, %v2807, 0.0
        %2976 = vadd.xlane.f32.xlu0 %v2975
        %v2977 = vpop.xlane.xlu0 %2976
        %v2978 = vsel %vm2467, %v2809, 0.0
        %2979 = vadd.xlane.f32.xlu0 %v2978
        %v2980 = vpop.xlane.xlu0 %2979
        %v2981 = vsel %vm2467, %v2811, 0.0
        %2982 = vadd.xlane.f32.xlu0 %v2981
        %v2983 = vpop.xlane.xlu0 %2982
        %v2984 = vsel %vm2467, %v2813, 0.0
        %2985 = vadd.xlane.f32.xlu0 %v2984
        %v2986 = vpop.xlane.xlu0 %2985
        %v2987 = vsel %vm2467, %v2815, 0.0
        %2988 = vadd.xlane.f32.xlu0 %v2987
        %v2989 = vpop.xlane.xlu0 %2988
        %v2990 = vsel %vm2467, %v2817, 0.0
        %2991 = vadd.xlane.f32.xlu0 %v2990
        %v2992 = vpop.xlane.xlu0 %2991
        %v2993 = vsel %vm2467, %v2819, 0.0
        %2994 = vadd.xlane.f32.xlu0 %v2993
        %v2995 = vpop.xlane.xlu0 %2994
        %v2996 = vsel %vm2467, %v2821, 0.0
        %2997 = vadd.xlane.f32.xlu0 %v2996
        %v2998 = vpop.xlane.xlu0 %2997
        %v2999 = vsel %vm2467, %v2823, 0.0
        %3000 = vadd.xlane.f32.xlu0 %v2999
        %v3001 = vpop.xlane.xlu0 %3000
        %v3002 = vsel %vm2467, %v2825, 0.0
        %3003 = vadd.xlane.f32.xlu0 %v3002
        %v3004 = vpop.xlane.xlu0 %3003
        %v3005 = vsel %vm2467, %v2827, 0.0
        %3006 = vadd.xlane.f32.xlu0 %v3005
        %v3007 = vpop.xlane.xlu0 %3006
        %v3008 = vsel %vm2467, %v2829, 0.0
        %3009 = vadd.xlane.f32.xlu0 %v3008
        %v3010 = vpop.xlane.xlu0 %3009
        %v3011 = vsel %vm2467, %v2831, 0.0
        %3012 = vadd.xlane.f32.xlu0 %v3011
        %v3013 = vpop.xlane.xlu0 %3012
        %v3014 = vsel %vm2467, %v2833, 0.0
        %3015 = vadd.xlane.f32.xlu0 %v3014
        %v3016 = vpop.xlane.xlu0 %3015
        %v3017 = vsel %vm2467, %v2835, 0.0
        %3018 = vadd.xlane.f32.xlu0 %v3017
        %v3019 = vpop.xlane.xlu0 %3018
        %v3020 = vsel %vm2467, %v2837, 0.0
        %3021 = vadd.xlane.f32.xlu0 %v3020
        %v3022 = vpop.xlane.xlu0 %3021
        %v3023 = vsel %vm2467, %v2839, 0.0
        %3024 = vadd.xlane.f32.xlu0 %v3023
        %v3025 = vpop.xlane.xlu0 %3024
        %v3026 = vsel %vm2467, %v2841, 0.0
        %3027 = vadd.xlane.f32.xlu0 %v3026
        %v3028 = vpop.xlane.xlu0 %3027
        %v3029 = vsel %vm2467, %v2843, 0.0
        %3030 = vadd.xlane.f32.xlu0 %v3029
        %v3031 = vpop.xlane.xlu0 %3030
        %v3032 = vsel %vm2467, %v2845, 0.0
        %3033 = vadd.xlane.f32.xlu0 %v3032
        %v3034 = vpop.xlane.xlu0 %3033
        %v3035 = vsel %vm2467, %v2847, 0.0
        %3036 = vadd.xlane.f32.xlu0 %v3035
        %v3037 = vpop.xlane.xlu0 %3036
        %v3038 = vsel %vm2467, %v2849, 0.0
        %3039 = vadd.xlane.f32.xlu0 %v3038
        %v3040 = vpop.xlane.xlu0 %3039
        %v3041 = vsel %vm2467, %v2851, 0.0
        %3042 = vadd.xlane.f32.xlu0 %v3041
        %v3043 = vpop.xlane.xlu0 %3042
        %v3044 = vrcp.pop %v2854
        %v3045 = vrcp.pop %v2857
        %v3046 = vrcp.pop %v2860
        %v3047 = vrcp.pop %v2863
        %v3048 = vrcp.pop %v2866
        %v3049 = vrcp.pop %v2869
        %v3050 = vrcp.pop %v2872
        %v3051 = vrcp.pop %v2875
        %v3052 = vrcp.pop %v2878
        %v3053 = vrcp.pop %v2881
        %v3054 = vrcp.pop %v2884
        %v3055 = vrcp.pop %v2887
        %v3056 = vrcp.pop %v2890
        %v3057 = vrcp.pop %v2893
        %v3058 = vrcp.pop %v2896
        %v3059 = vrcp.pop %v2899
        %v3060 = vrcp.pop %v2902
        %v3061 = vrcp.pop %v2905
        %v3062 = vrcp.pop %v2908
        %v3063 = vrcp.pop %v2911
        %v3064 = vrcp.pop %v2914
        %v3065 = vrcp.pop %v2917
        %v3066 = vrcp.pop %v2920
        %v3067 = vrcp.pop %v2923
        %v3068 = vrcp.pop %v2926
        %v3069 = vrcp.pop %v2929
        %v3070 = vrcp.pop %v2932
        %v3071 = vrcp.pop %v2935
        %v3072 = vrcp.pop %v2938
        %v3073 = vrcp.pop %v2941
        %v3074 = vrcp.pop %v2944
        %v3075 = vrcp.pop %v2947
        %v3076 = vrcp.pop %v2950
        %v3077 = vrcp.pop %v2953
        %v3078 = vrcp.pop %v2956
        %v3079 = vrcp.pop %v2959
        %v3080 = vrcp.pop %v2962
        %v3081 = vrcp.pop %v2965
        %v3082 = vrcp.pop %v2968
        %v3083 = vrcp.pop %v2971
        %v3084 = vrcp.pop %v2974
        %v3085 = vrcp.pop %v2977
        %v3086 = vrcp.pop %v2980
        %v3087 = vrcp.pop %v2983
        %v3088 = vrcp.pop %v2986
        %v3089 = vrcp.pop %v2989
        %v3090 = vrcp.pop %v2992
        %v3091 = vrcp.pop %v2995
        %v3092 = vrcp.pop %v2998
        %v3093 = vrcp.pop %v3001
        %v3094 = vrcp.pop %v3004
        %v3095 = vrcp.pop %v3007
        %v3096 = vrcp.pop %v3010
        %v3097 = vrcp.pop %v3013
        %v3098 = vrcp.pop %v3016
        %v3099 = vrcp.pop %v3019
        %v3100 = vrcp.pop %v3022
        %v3101 = vrcp.pop %v3025
        %v3102 = vrcp.pop %v3028
        %v3103 = vrcp.pop %v3031
        %v3104 = vrcp.pop %v3034
        %v3105 = vrcp.pop %v3037
        %v3106 = vrcp.pop %v3040
        %v3107 = vrcp.pop %v3043
        %v3108 = vmul.f32 %v2725, %v3044
        %v3109 = vmul.f32 %v2727, %v3045
        %v3110 = vmul.f32 %v2729, %v3046
        %v3111 = vmul.f32 %v2731, %v3047
        %v3112 = vmul.f32 %v2733, %v3048
        %v3113 = vmul.f32 %v2735, %v3049
        %v3114 = vmul.f32 %v2737, %v3050
        %v3115 = vmul.f32 %v2739, %v3051
        %v3116 = vmul.f32 %v2741, %v3052
        %v3117 = vmul.f32 %v2743, %v3053
        %v3118 = vmul.f32 %v2745, %v3054
        %v3119 = vmul.f32 %v2747, %v3055
        %v3120 = vmul.f32 %v2749, %v3056
        %v3121 = vmul.f32 %v2751, %v3057
        %v3122 = vmul.f32 %v2753, %v3058
        %v3123 = vmul.f32 %v2755, %v3059
        %v3124 = vmul.f32 %v2757, %v3060
        %v3125 = vmul.f32 %v2759, %v3061
        %v3126 = vmul.f32 %v2761, %v3062
        %v3127 = vmul.f32 %v2763, %v3063
        %v3128 = vmul.f32 %v2765, %v3064
        %v3129 = vmul.f32 %v2767, %v3065
        %v3130 = vmul.f32 %v2769, %v3066
        %v3131 = vmul.f32 %v2771, %v3067
        %v3132 = vmul.f32 %v2773, %v3068
        %v3133 = vmul.f32 %v2775, %v3069
        %v3134 = vmul.f32 %v2777, %v3070
        %v3135 = vmul.f32 %v2779, %v3071
        %v3136 = vmul.f32 %v2781, %v3072
        %v3137 = vmul.f32 %v2783, %v3073
        %v3138 = vmul.f32 %v2785, %v3074
        %v3139 = vmul.f32 %v2787, %v3075
        %v3140 = vmul.f32 %v2789, %v3076
        %v3141 = vmul.f32 %v2791, %v3077
        %v3142 = vmul.f32 %v2793, %v3078
        %v3143 = vmul.f32 %v2795, %v3079
        %v3144 = vmul.f32 %v2797, %v3080
        %v3145 = vmul.f32 %v2799, %v3081
        %v3146 = vmul.f32 %v2801, %v3082
        %v3147 = vmul.f32 %v2803, %v3083
        %v3148 = vmul.f32 %v2805, %v3084
        %v3149 = vmul.f32 %v2807, %v3085
        %v3150 = vmul.f32 %v2809, %v3086
        %v3151 = vmul.f32 %v2811, %v3087
        %v3152 = vmul.f32 %v2813, %v3088
        %v3153 = vmul.f32 %v2815, %v3089
        %v3154 = vmul.f32 %v2817, %v3090
        %v3155 = vmul.f32 %v2819, %v3091
        %v3156 = vmul.f32 %v2821, %v3092
        %v3157 = vmul.f32 %v2823, %v3093
        %v3158 = vmul.f32 %v2825, %v3094
        %v3159 = vmul.f32 %v2827, %v3095
        %v3160 = vmul.f32 %v2829, %v3096
        %v3161 = vmul.f32 %v2831, %v3097
        %v3162 = vmul.f32 %v2833, %v3098
        %v3163 = vmul.f32 %v2835, %v3099
        %v3164 = vmul.f32 %v2837, %v3100
        %v3165 = vmul.f32 %v2839, %v3101
        %v3166 = vmul.f32 %v2841, %v3102
        %v3167 = vmul.f32 %v2843, %v3103
        %v3168 = vmul.f32 %v2845, %v3104
        %v3169 = vmul.f32 %v2847, %v3105
        %v3170 = vmul.f32 %v2849, %v3106
        %v3171 = vmul.f32 %v2851, %v3107
        %v3172 = vpack.c.bf16 %v3109, %v3108
        %v3173 = vpack.c.bf16 %v3111, %v3110
        %v3174 = vpack.c.bf16 %v3113, %v3112
        %v3175 = vpack.c.bf16 %v3115, %v3114
        %v3176 = vpack.c.bf16 %v3117, %v3116
        %v3177 = vpack.c.bf16 %v3119, %v3118
        %v3178 = vpack.c.bf16 %v3121, %v3120
        %v3179 = vpack.c.bf16 %v3123, %v3122
        %v3180 = vpack.c.bf16 %v3125, %v3124
        %v3181 = vpack.c.bf16 %v3127, %v3126
        %v3182 = vpack.c.bf16 %v3129, %v3128
        %v3183 = vpack.c.bf16 %v3131, %v3130
        %v3184 = vpack.c.bf16 %v3133, %v3132
        %v3185 = vpack.c.bf16 %v3135, %v3134
        %v3186 = vpack.c.bf16 %v3137, %v3136
        %v3187 = vpack.c.bf16 %v3139, %v3138
        %v3188 = vpack.c.bf16 %v3141, %v3140
        %v3189 = vpack.c.bf16 %v3143, %v3142
        %v3190 = vpack.c.bf16 %v3145, %v3144
        %v3191 = vpack.c.bf16 %v3147, %v3146
        %v3192 = vpack.c.bf16 %v3149, %v3148
        %v3193 = vpack.c.bf16 %v3151, %v3150
        %v3194 = vpack.c.bf16 %v3153, %v3152
        %v3195 = vpack.c.bf16 %v3155, %v3154
        %v3196 = vpack.c.bf16 %v3157, %v3156
        %v3197 = vpack.c.bf16 %v3159, %v3158
        %v3198 = vpack.c.bf16 %v3161, %v3160
        %v3199 = vpack.c.bf16 %v3163, %v3162
        %v3200 = vpack.c.bf16 %v3165, %v3164
        %v3201 = vpack.c.bf16 %v3167, %v3166
        %v3202 = vpack.c.bf16 %v3169, %v3168
        %v3203 = vpack.c.bf16 %v3171, %v3170
        %3204 = vrot.lane.b32.xlu0 %v1562, 64
        %v3205 = vpop.permute.xlu0 %3204
        %3206 = vrot.lane.b32.xlu0 %v1563, 64
        %v3207 = vpop.permute.xlu0 %3206
        %3208 = vrot.lane.b32.xlu0 %v1564, 64
        %v3209 = vpop.permute.xlu0 %3208
        %3210 = vrot.lane.b32.xlu0 %v1565, 64
        %v3211 = vpop.permute.xlu0 %3210
        %v3217 = vsel %vm2467, %v3172, 0
        %v3220 = vsel %vm2467, %v3173, 0
        %v3223 = vsel %vm2467, %v3174, 0
        %v3226 = vsel %vm2467, %v3175, 0
        %3228 = vmatprep.subr.bf16.mxu0 0
        %3229 = vmatpush1.bf16.msra.mxu0 %v3205
        %3230 = vmatprep.subr.bf16.mxu0 0
        %3231 = vmatpush1.bf16.msra.mxu0 %v3207
        %3232 = vmatprep.subr.bf16.mxu0 0
        %3233 = vmatpush1.bf16.msra.mxu0 %v3209
        %3234 = vmatprep.subr.bf16.mxu0 0
        %3235 = vmatpush1.bf16.msra.mxu0 %v3211
        %3236 = vmatprep.subr.bf16.mxu0 0
        %3237 = vmatpush1.bf16.msra.mxu0 0
        %3238 = vmatprep.subr.bf16.mxu0 0
        %3239 = vmatpush1.bf16.msra.mxu0 0
        %3240 = vmatprep.subr.bf16.mxu0 0
        %3241 = vmatpush1.bf16.msra.mxu0 0
        %3242 = vmatprep.subr.bf16.mxu0 0
        %3243 = vmatpush1.bf16.msra.mxu0 0
        %3244 = vmatprep.subr.bf16.mxu0 0
        %3245 = vmatpush1.bf16.msra.mxu0 0
        %3246 = vmatprep.subr.bf16.mxu0 0
        %3247 = vmatpush1.bf16.msra.mxu0 0
        %3248 = vmatprep.subr.bf16.mxu0 0
        %3249 = vmatpush1.bf16.msra.mxu0 0
        %3250 = vmatprep.subr.bf16.mxu0 0
        %3251 = vmatpush1.bf16.msra.mxu0 0
        %3252 = vmatprep.subr.bf16.mxu0 0
        %3253 = vmatpush1.bf16.msra.mxu0 0
        %3254 = vmatprep.subr.bf16.mxu0 0
        %3255 = vmatpush1.bf16.msra.mxu0 0
        %3256 = vmatprep.subr.bf16.mxu0 0
        %3257 = vmatpush1.bf16.msra.mxu0 0
        %3258 = vmatprep.subr.bf16.mxu0 0
        %3259 = vmatpush1.bf16.msra.mxu0 0
        %3260 = vmatprep.mubr.bf16.mxu0 0
        %3261 = vmatmul.mubr.bf16.gmra.mrb[0].mxu0 %v3217
        %v3262 = vpop.f32.mrb[0].mxu0
        %v3263 = vadd.f32 0.0, %v3262
        %v3264 = vpop.f32.mrb[0].mxu0
        %v3265 = vpop.f32.mrb[0].mxu0
        %v3266 = vadd.f32 0.0, %v3265
        %v3267 = vpop.f32.mrb[0].mxu0
        %3268 = vmatprep.mubr.bf16.mxu0 0
        %3269 = vmatmul.mubr.bf16.gmra.mrb[0].mxu0 %v3220
        %v3270 = vpop.f32.mrb[0].mxu0
        %v3271 = vadd.f32 0.0, %v3270
        %v3272 = vpop.f32.mrb[0].mxu0
        %v3273 = vpop.f32.mrb[0].mxu0
        %v3274 = vadd.f32 0.0, %v3273
        %v3275 = vpop.f32.mrb[0].mxu0
        %3276 = vmatprep.mubr.bf16.mxu0 0
        %3277 = vmatmul.mubr.bf16.gmra.mrb[0].mxu0 %v3223
        %v3278 = vpop.f32.mrb[0].mxu0
        %v3279 = vadd.f32 0.0, %v3278
        %v3280 = vpop.f32.mrb[0].mxu0
        %v3281 = vpop.f32.mrb[0].mxu0
        %v3282 = vadd.f32 0.0, %v3281
        %v3283 = vpop.f32.mrb[0].mxu0
        %3284 = vmatprep.mubr.bf16.mxu0 0
        %3285 = vmatmul.mubr.bf16.gmra.mrb[0].mxu0 %v3226
        %v3286 = vpop.f32.mrb[0].mxu0
        %v3287 = vadd.f32 0.0, %v3286
        %v3288 = vpop.f32.mrb[0].mxu0
        %v3289 = vpop.f32.mrb[0].mxu0
        %v3290 = vadd.f32 0.0, %v3289
        %v3291 = vpop.f32.mrb[0].mxu0
        %3292 = vdwg.mxu0
        %3293 = vrot.lane.b32.xlu0 %v1566, 64
        %v3294 = vpop.permute.xlu0 %3293
        %3295 = vrot.lane.b32.xlu0 %v1567, 64
        %v3296 = vpop.permute.xlu0 %3295
        %3297 = vrot.lane.b32.xlu0 %v1568, 64
        %v3298 = vpop.permute.xlu0 %3297
        %3299 = vrot.lane.b32.xlu0 %v1569, 64
        %v3300 = vpop.permute.xlu0 %3299
        %v3306 = vsel %vm2467, %v3176, 0
        %v3309 = vsel %vm2467, %v3177, 0
        %v3312 = vsel %vm2467, %v3178, 0
        %v3315 = vsel %vm2467, %v3179, 0
        %3317 = vmatprep.subr.bf16.mxu0 0
        %3318 = vmatpush1.bf16.msra.mxu0 %v3294
        %3319 = vmatprep.subr.bf16.mxu0 0
        %3320 = vmatpush1.bf16.msra.mxu0 %v3296
        %3321 = vmatprep.subr.bf16.mxu0 0
        %3322 = vmatpush1.bf16.msra.mxu0 %v3298
        %3323 = vmatprep.subr.bf16.mxu0 0
        %3324 = vmatpush1.bf16.msra.mxu0 %v3300
        %3325 = vmatprep.subr.bf16.mxu0 0
        %3326 = vmatpush1.bf16.msra.mxu0 0
        %3327 = vmatprep.subr.bf16.mxu0 0
        %3328 = vmatpush1.bf16.msra.mxu0 0
        %3329 = vmatprep.subr.bf16.mxu0 0
        %3330 = vmatpush1.bf16.msra.mxu0 0
        %3331 = vmatprep.subr.bf16.mxu0 0
        %3332 = vmatpush1.bf16.msra.mxu0 0
        %3333 = vmatprep.subr.bf16.mxu0 0
        %3334 = vmatpush1.bf16.msra.mxu0 0
        %3335 = vmatprep.subr.bf16.mxu0 0
        %3336 = vmatpush1.bf16.msra.mxu0 0
        %3337 = vmatprep.subr.bf16.mxu0 0
        %3338 = vmatpush1.bf16.msra.mxu0 0
        %3339 = vmatprep.subr.bf16.mxu0 0
        %3340 = vmatpush1.bf16.msra.mxu0 0
        %3341 = vmatprep.subr.bf16.mxu0 0
        %3342 = vmatpush1.bf16.msra.mxu0 0
        %3343 = vmatprep.subr.bf16.mxu0 0
        %3344 = vmatpush1.bf16.msra.mxu0 0
        %3345 = vmatprep.subr.bf16.mxu0 0
        %3346 = vmatpush1.bf16.msra.mxu0 0
        %3347 = vmatprep.subr.bf16.mxu0 0
        %3348 = vmatpush1.bf16.msra.mxu0 0
        %3349 = vmatprep.mubr.bf16.mxu0 0
        %3350 = vmatmul.mubr.bf16.gmra.mrb[0].mxu0 %v3306
        %v3351 = vpop.f32.mrb[0].mxu0
        %v3352 = vadd.f32 0.0, %v3351
        %v3353 = vpop.f32.mrb[0].mxu0
        %v3354 = vpop.f32.mrb[0].mxu0
        %v3355 = vadd.f32 0.0, %v3354
        %v3356 = vpop.f32.mrb[0].mxu0
        %3357 = vmatprep.mubr.bf16.mxu0 0
        %3358 = vmatmul.mubr.bf16.gmra.mrb[0].mxu0 %v3309
        %v3359 = vpop.f32.mrb[0].mxu0
        %v3360 = vadd.f32 0.0, %v3359
        %v3361 = vpop.f32.mrb[0].mxu0
        %v3362 = vpop.f32.mrb[0].mxu0
        %v3363 = vadd.f32 0.0, %v3362
        %v3364 = vpop.f32.mrb[0].mxu0
        %3365 = vmatprep.mubr.bf16.mxu0 0
        %3366 = vmatmul.mubr.bf16.gmra.mrb[0].mxu0 %v3312
        %v3367 = vpop.f32.mrb[0].mxu0
        %v3368 = vadd.f32 0.0, %v3367
        %v3369 = vpop.f32.mrb[0].mxu0
        %v3370 = vpop.f32.mrb[0].mxu0
        %v3371 = vadd.f32 0.0, %v3370
        %v3372 = vpop.f32.mrb[0].mxu0
        %3373 = vmatprep.mubr.bf16.mxu0 0
        %3374 = vmatmul.mubr.bf16.gmra.mrb[0].mxu0 %v3315
        %v3375 = vpop.f32.mrb[0].mxu0
        %v3376 = vadd.f32 0.0, %v3375
        %v3377 = vpop.f32.mrb[0].mxu0
        %v3378 = vpop.f32.mrb[0].mxu0
        %v3379 = vadd.f32 0.0, %v3378
        %v3380 = vpop.f32.mrb[0].mxu0
        %3381 = vdwg.mxu0
        %3382 = vrot.lane.b32.xlu0 %v1570, 64
        %v3383 = vpop.permute.xlu0 %3382
        %3384 = vrot.lane.b32.xlu0 %v1571, 64
        %v3385 = vpop.permute.xlu0 %3384
        %3386 = vrot.lane.b32.xlu0 %v1572, 64
        %v3387 = vpop.permute.xlu0 %3386
        %3388 = vrot.lane.b32.xlu0 %v1573, 64
        %v3389 = vpop.permute.xlu0 %3388
        %v3395 = vsel %vm2467, %v3180, 0
        %v3398 = vsel %vm2467, %v3181, 0
        %v3401 = vsel %vm2467, %v3182, 0
        %v3404 = vsel %vm2467, %v3183, 0
        %3406 = vmatprep.subr.bf16.mxu0 0
        %3407 = vmatpush1.bf16.msra.mxu0 %v3383
        %3408 = vmatprep.subr.bf16.mxu0 0
        %3409 = vmatpush1.bf16.msra.mxu0 %v3385
        %3410 = vmatprep.subr.bf16.mxu0 0
        %3411 = vmatpush1.bf16.msra.mxu0 %v3387
        %3412 = vmatprep.subr.bf16.mxu0 0
        %3413 = vmatpush1.bf16.msra.mxu0 %v3389
        %3414 = vmatprep.subr.bf16.mxu0 0
        %3415 = vmatpush1.bf16.msra.mxu0 0
        %3416 = vmatprep.subr.bf16.mxu0 0
        %3417 = vmatpush1.bf16.msra.mxu0 0
        %3418 = vmatprep.subr.bf16.mxu0 0
        %3419 = vmatpush1.bf16.msra.mxu0 0
        %3420 = vmatprep.subr.bf16.mxu0 0
        %3421 = vmatpush1.bf16.msra.mxu0 0
        %3422 = vmatprep.subr.bf16.mxu0 0
        %3423 = vmatpush1.bf16.msra.mxu0 0
        %3424 = vmatprep.subr.bf16.mxu0 0
        %3425 = vmatpush1.bf16.msra.mxu0 0
        %3426 = vmatprep.subr.bf16.mxu0 0
        %3427 = vmatpush1.bf16.msra.mxu0 0
        %3428 = vmatprep.subr.bf16.mxu0 0
        %3429 = vmatpush1.bf16.msra.mxu0 0
        %3430 = vmatprep.subr.bf16.mxu0 0
        %3431 = vmatpush1.bf16.msra.mxu0 0
        %3432 = vmatprep.subr.bf16.mxu0 0
        %3433 = vmatpush1.bf16.msra.mxu0 0
        %3434 = vmatprep.subr.bf16.mxu0 0
        %3435 = vmatpush1.bf16.msra.mxu0 0
        %3436 = vmatprep.subr.bf16.mxu0 0
        %3437 = vmatpush1.bf16.msra.mxu0 0
        %3438 = vmatprep.mubr.bf16.mxu0 0
        %3439 = vmatmul.mubr.bf16.gmra.mrb[0].mxu0 %v3395
        %v3440 = vpop.f32.mrb[0].mxu0
        %v3441 = vadd.f32 0.0, %v3440
        %v3442 = vpop.f32.mrb[0].mxu0
        %v3443 = vpop.f32.mrb[0].mxu0
        %v3444 = vadd.f32 0.0, %v3443
        %v3445 = vpop.f32.mrb[0].mxu0
        %3446 = vmatprep.mubr.bf16.mxu0 0
        %3447 = vmatmul.mubr.bf16.gmra.mrb[0].mxu0 %v3398
        %v3448 = vpop.f32.mrb[0].mxu0
        %v3449 = vadd.f32 0.0, %v3448
        %v3450 = vpop.f32.mrb[0].mxu0
        %v3451 = vpop.f32.mrb[0].mxu0
        %v3452 = vadd.f32 0.0, %v3451
        %v3453 = vpop.f32.mrb[0].mxu0
        %3454 = vmatprep.mubr.bf16.mxu0 0
        %3455 = vmatmul.mubr.bf16.gmra.mrb[0].mxu0 %v3401
        %v3456 = vpop.f32.mrb[0].mxu0
        %v3457 = vadd.f32 0.0, %v3456
        %v3458 = vpop.f32.mrb[0].mxu0
        %v3459 = vpop.f32.mrb[0].mxu0
        %v3460 = vadd.f32 0.0, %v3459
        %v3461 = vpop.f32.mrb[0].mxu0
        %3462 = vmatprep.mubr.bf16.mxu0 0
        %3463 = vmatmul.mubr.bf16.gmra.mrb[0].mxu0 %v3404
        %v3464 = vpop.f32.mrb[0].mxu0
        %v3465 = vadd.f32 0.0, %v3464
        %v3466 = vpop.f32.mrb[0].mxu0
        %v3467 = vpop.f32.mrb[0].mxu0
        %v3468 = vadd.f32 0.0, %v3467
        %v3469 = vpop.f32.mrb[0].mxu0
        %3470 = vdwg.mxu0
        %3471 = vrot.lane.b32.xlu0 %v1574, 64
        %v3472 = vpop.permute.xlu0 %3471
        %3473 = vrot.lane.b32.xlu0 %v1575, 64
        %v3474 = vpop.permute.xlu0 %3473
        %3475 = vrot.lane.b32.xlu0 %v1576, 64
        %v3476 = vpop.permute.xlu0 %3475
        %3477 = vrot.lane.b32.xlu0 %v1577, 64
        %v3478 = vpop.permute.xlu0 %3477
        %v3484 = vsel %vm2467, %v3184, 0
        %v3487 = vsel %vm2467, %v3185, 0
        %v3490 = vsel %vm2467, %v3186, 0
        %v3493 = vsel %vm2467, %v3187, 0
        %3495 = vmatprep.subr.bf16.mxu0 0
        %3496 = vmatpush1.bf16.msra.mxu0 %v3472
        %3497 = vmatprep.subr.bf16.mxu0 0
        %3498 = vmatpush1.bf16.msra.mxu0 %v3474
        %3499 = vmatprep.subr.bf16.mxu0 0
        %3500 = vmatpush1.bf16.msra.mxu0 %v3476
        %3501 = vmatprep.subr.bf16.mxu0 0
        %3502 = vmatpush1.bf16.msra.mxu0 %v3478
        %3503 = vmatprep.subr.bf16.mxu0 0
        %3504 = vmatpush1.bf16.msra.mxu0 0
        %3505 = vmatprep.subr.bf16.mxu0 0
        %3506 = vmatpush1.bf16.msra.mxu0 0
        %3507 = vmatprep.subr.bf16.mxu0 0
        %3508 = vmatpush1.bf16.msra.mxu0 0
        %3509 = vmatprep.subr.bf16.mxu0 0
        %3510 = vmatpush1.bf16.msra.mxu0 0
        %3511 = vmatprep.subr.bf16.mxu0 0
        %3512 = vmatpush1.bf16.msra.mxu0 0
        %3513 = vmatprep.subr.bf16.mxu0 0
        %3514 = vmatpush1.bf16.msra.mxu0 0
        %3515 = vmatprep.subr.bf16.mxu0 0
        %3516 = vmatpush1.bf16.msra.mxu0 0
        %3517 = vmatprep.subr.bf16.mxu0 0
        %3518 = vmatpush1.bf16.msra.mxu0 0
        %3519 = vmatprep.subr.bf16.mxu0 0
        %3520 = vmatpush1.bf16.msra.mxu0 0
        %3521 = vmatprep.subr.bf16.mxu0 0
        %3522 = vmatpush1.bf16.msra.mxu0 0
        %3523 = vmatprep.subr.bf16.mxu0 0
        %3524 = vmatpush1.bf16.msra.mxu0 0
        %3525 = vmatprep.subr.bf16.mxu0 0
        %3526 = vmatpush1.bf16.msra.mxu0 0
        %3527 = vmatprep.mubr.bf16.mxu0 0
        %3528 = vmatmul.mubr.bf16.gmra.mrb[0].mxu0 %v3484
        %v3529 = vpop.f32.mrb[0].mxu0
        %v3530 = vadd.f32 0.0, %v3529
        %v3531 = vpop.f32.mrb[0].mxu0
        %v3532 = vpop.f32.mrb[0].mxu0
        %v3533 = vadd.f32 0.0, %v3532
        %v3534 = vpop.f32.mrb[0].mxu0
        %3535 = vmatprep.mubr.bf16.mxu0 0
        %3536 = vmatmul.mubr.bf16.gmra.mrb[0].mxu0 %v3487
        %v3537 = vpop.f32.mrb[0].mxu0
        %v3538 = vadd.f32 0.0, %v3537
        %v3539 = vpop.f32.mrb[0].mxu0
        %v3540 = vpop.f32.mrb[0].mxu0
        %v3541 = vadd.f32 0.0, %v3540
        %v3542 = vpop.f32.mrb[0].mxu0
        %3543 = vmatprep.mubr.bf16.mxu0 0
        %3544 = vmatmul.mubr.bf16.gmra.mrb[0].mxu0 %v3490
        %v3545 = vpop.f32.mrb[0].mxu0
        %v3546 = vadd.f32 0.0, %v3545
        %v3547 = vpop.f32.mrb[0].mxu0
        %v3548 = vpop.f32.mrb[0].mxu0
        %v3549 = vadd.f32 0.0, %v3548
        %v3550 = vpop.f32.mrb[0].mxu0
        %3551 = vmatprep.mubr.bf16.mxu0 0
        %3552 = vmatmul.mubr.bf16.gmra.mrb[0].mxu0 %v3493
        %v3553 = vpop.f32.mrb[0].mxu0
        %v3554 = vadd.f32 0.0, %v3553
        %v3555 = vpop.f32.mrb[0].mxu0
        %v3556 = vpop.f32.mrb[0].mxu0
        %v3557 = vadd.f32 0.0, %v3556
        %v3558 = vpop.f32.mrb[0].mxu0
        %3559 = vdwg.mxu0
        %3560 = vrot.lane.b32.xlu0 %v1578, 64
        %v3561 = vpop.permute.xlu0 %3560
        %3562 = vrot.lane.b32.xlu0 %v1579, 64
        %v3563 = vpop.permute.xlu0 %3562
        %3564 = vrot.lane.b32.xlu0 %v1580, 64
        %v3565 = vpop.permute.xlu0 %3564
        %3566 = vrot.lane.b32.xlu0 %v1581, 64
        %v3567 = vpop.permute.xlu0 %3566
        %v3573 = vsel %vm2467, %v3188, 0
        %v3576 = vsel %vm2467, %v3189, 0
        %v3579 = vsel %vm2467, %v3190, 0
        %v3582 = vsel %vm2467, %v3191, 0
        %3584 = vmatprep.subr.bf16.mxu0 0
        %3585 = vmatpush1.bf16.msra.mxu0 %v3561
        %3586 = vmatprep.subr.bf16.mxu0 0
        %3587 = vmatpush1.bf16.msra.mxu0 %v3563
        %3588 = vmatprep.subr.bf16.mxu0 0
        %3589 = vmatpush1.bf16.msra.mxu0 %v3565
        %3590 = vmatprep.subr.bf16.mxu0 0
        %3591 = vmatpush1.bf16.msra.mxu0 %v3567
        %3592 = vmatprep.subr.bf16.mxu0 0
        %3593 = vmatpush1.bf16.msra.mxu0 0
        %3594 = vmatprep.subr.bf16.mxu0 0
        %3595 = vmatpush1.bf16.msra.mxu0 0
        %3596 = vmatprep.subr.bf16.mxu0 0
        %3597 = vmatpush1.bf16.msra.mxu0 0
        %3598 = vmatprep.subr.bf16.mxu0 0
        %3599 = vmatpush1.bf16.msra.mxu0 0
        %3600 = vmatprep.subr.bf16.mxu0 0
        %3601 = vmatpush1.bf16.msra.mxu0 0
        %3602 = vmatprep.subr.bf16.mxu0 0
        %3603 = vmatpush1.bf16.msra.mxu0 0
        %3604 = vmatprep.subr.bf16.mxu0 0
        %3605 = vmatpush1.bf16.msra.mxu0 0
        %3606 = vmatprep.subr.bf16.mxu0 0
        %3607 = vmatpush1.bf16.msra.mxu0 0
        %3608 = vmatprep.subr.bf16.mxu0 0
        %3609 = vmatpush1.bf16.msra.mxu0 0
        %3610 = vmatprep.subr.bf16.mxu0 0
        %3611 = vmatpush1.bf16.msra.mxu0 0
        %3612 = vmatprep.subr.bf16.mxu0 0
        %3613 = vmatpush1.bf16.msra.mxu0 0
        %3614 = vmatprep.subr.bf16.mxu0 0
        %3615 = vmatpush1.bf16.msra.mxu0 0
        %3616 = vmatprep.mubr.bf16.mxu0 0
        %3617 = vmatmul.mubr.bf16.gmra.mrb[0].mxu0 %v3573
        %v3618 = vpop.f32.mrb[0].mxu0
        %v3619 = vadd.f32 0.0, %v3618
        %v3620 = vpop.f32.mrb[0].mxu0
        %v3621 = vpop.f32.mrb[0].mxu0
        %v3622 = vadd.f32 0.0, %v3621
        %v3623 = vpop.f32.mrb[0].mxu0
        %3624 = vmatprep.mubr.bf16.mxu0 0
        %3625 = vmatmul.mubr.bf16.gmra.mrb[0].mxu0 %v3576
        %v3626 = vpop.f32.mrb[0].mxu0
        %v3627 = vadd.f32 0.0, %v3626
        %v3628 = vpop.f32.mrb[0].mxu0
        %v3629 = vpop.f32.mrb[0].mxu0
        %v3630 = vadd.f32 0.0, %v3629
        %v3631 = vpop.f32.mrb[0].mxu0
        %3632 = vmatprep.mubr.bf16.mxu0 0
        %3633 = vmatmul.mubr.bf16.gmra.mrb[0].mxu0 %v3579
        %v3634 = vpop.f32.mrb[0].mxu0
        %v3635 = vadd.f32 0.0, %v3634
        %v3636 = vpop.f32.mrb[0].mxu0
        %v3637 = vpop.f32.mrb[0].mxu0
        %v3638 = vadd.f32 0.0, %v3637
        %v3639 = vpop.f32.mrb[0].mxu0
        %3640 = vmatprep.mubr.bf16.mxu0 0
        %3641 = vmatmul.mubr.bf16.gmra.mrb[0].mxu0 %v3582
        %v3642 = vpop.f32.mrb[0].mxu0
        %v3643 = vadd.f32 0.0, %v3642
        %v3644 = vpop.f32.mrb[0].mxu0
        %v3645 = vpop.f32.mrb[0].mxu0
        %v3646 = vadd.f32 0.0, %v3645
        %v3647 = vpop.f32.mrb[0].mxu0
        %3648 = vdwg.mxu0
        %3649 = vrot.lane.b32.xlu0 %v1582, 64
        %v3650 = vpop.permute.xlu0 %3649
        %3651 = vrot.lane.b32.xlu0 %v1583, 64
        %v3652 = vpop.permute.xlu0 %3651
        %3653 = vrot.lane.b32.xlu0 %v1584, 64
        %v3654 = vpop.permute.xlu0 %3653
        %3655 = vrot.lane.b32.xlu0 %v1585, 64
        %v3656 = vpop.permute.xlu0 %3655
        %v3662 = vsel %vm2467, %v3192, 0
        %v3665 = vsel %vm2467, %v3193, 0
        %v3668 = vsel %vm2467, %v3194, 0
        %v3671 = vsel %vm2467, %v3195, 0
        %3673 = vmatprep.subr.bf16.mxu0 0
        %3674 = vmatpush1.bf16.msra.mxu0 %v3650
        %3675 = vmatprep.subr.bf16.mxu0 0
        %3676 = vmatpush1.bf16.msra.mxu0 %v3652
        %3677 = vmatprep.subr.bf16.mxu0 0
        %3678 = vmatpush1.bf16.msra.mxu0 %v3654
        %3679 = vmatprep.subr.bf16.mxu0 0
        %3680 = vmatpush1.bf16.msra.mxu0 %v3656
        %3681 = vmatprep.subr.bf16.mxu0 0
        %3682 = vmatpush1.bf16.msra.mxu0 0
        %3683 = vmatprep.subr.bf16.mxu0 0
        %3684 = vmatpush1.bf16.msra.mxu0 0
        %3685 = vmatprep.subr.bf16.mxu0 0
        %3686 = vmatpush1.bf16.msra.mxu0 0
        %3687 = vmatprep.subr.bf16.mxu0 0
        %3688 = vmatpush1.bf16.msra.mxu0 0
        %3689 = vmatprep.subr.bf16.mxu0 0
        %3690 = vmatpush1.bf16.msra.mxu0 0
        %3691 = vmatprep.subr.bf16.mxu0 0
        %3692 = vmatpush1.bf16.msra.mxu0 0
        %3693 = vmatprep.subr.bf16.mxu0 0
        %3694 = vmatpush1.bf16.msra.mxu0 0
        %3695 = vmatprep.subr.bf16.mxu0 0
        %3696 = vmatpush1.bf16.msra.mxu0 0
        %3697 = vmatprep.subr.bf16.mxu0 0
        %3698 = vmatpush1.bf16.msra.mxu0 0
        %3699 = vmatprep.subr.bf16.mxu0 0
        %3700 = vmatpush1.bf16.msra.mxu0 0
        %3701 = vmatprep.subr.bf16.mxu0 0
        %3702 = vmatpush1.bf16.msra.mxu0 0
        %3703 = vmatprep.subr.bf16.mxu0 0
        %3704 = vmatpush1.bf16.msra.mxu0 0
        %3705 = vmatprep.mubr.bf16.mxu0 0
        %3706 = vmatmul.mubr.bf16.gmra.mrb[0].mxu0 %v3662
        %v3707 = vpop.f32.mrb[0].mxu0
        %v3708 = vadd.f32 0.0, %v3707
        %v3709 = vpop.f32.mrb[0].mxu0
        %v3710 = vpop.f32.mrb[0].mxu0
        %v3711 = vadd.f32 0.0, %v3710
        %v3712 = vpop.f32.mrb[0].mxu0
        %3713 = vmatprep.mubr.bf16.mxu0 0
        %3714 = vmatmul.mubr.bf16.gmra.mrb[0].mxu0 %v3665
        %v3715 = vpop.f32.mrb[0].mxu0
        %v3716 = vadd.f32 0.0, %v3715
        %v3717 = vpop.f32.mrb[0].mxu0
        %v3718 = vpop.f32.mrb[0].mxu0
        %v3719 = vadd.f32 0.0, %v3718
        %v3720 = vpop.f32.mrb[0].mxu0
        %3721 = vmatprep.mubr.bf16.mxu0 0
        %3722 = vmatmul.mubr.bf16.gmra.mrb[0].mxu0 %v3668
        %v3723 = vpop.f32.mrb[0].mxu0
        %v3724 = vadd.f32 0.0, %v3723
        %v3725 = vpop.f32.mrb[0].mxu0
        %v3726 = vpop.f32.mrb[0].mxu0
        %v3727 = vadd.f32 0.0, %v3726
        %v3728 = vpop.f32.mrb[0].mxu0
        %3729 = vmatprep.mubr.bf16.mxu0 0
        %3730 = vmatmul.mubr.bf16.gmra.mrb[0].mxu0 %v3671
        %v3731 = vpop.f32.mrb[0].mxu0
        %v3732 = vadd.f32 0.0, %v3731
        %v3733 = vpop.f32.mrb[0].mxu0
        %v3734 = vpop.f32.mrb[0].mxu0
        %v3735 = vadd.f32 0.0, %v3734
        %v3736 = vpop.f32.mrb[0].mxu0
        %3737 = vdwg.mxu0
        %3738 = vrot.lane.b32.xlu0 %v1586, 64
        %v3739 = vpop.permute.xlu0 %3738
        %3740 = vrot.lane.b32.xlu0 %v1587, 64
        %v3741 = vpop.permute.xlu0 %3740
        %3742 = vrot.lane.b32.xlu0 %v1588, 64
        %v3743 = vpop.permute.xlu0 %3742
        %3744 = vrot.lane.b32.xlu0 %v1589, 64
        %v3745 = vpop.permute.xlu0 %3744
        %v3751 = vsel %vm2467, %v3196, 0
        %v3754 = vsel %vm2467, %v3197, 0
        %v3757 = vsel %vm2467, %v3198, 0
        %v3760 = vsel %vm2467, %v3199, 0
        %3762 = vmatprep.subr.bf16.mxu0 0
        %3763 = vmatpush1.bf16.msra.mxu0 %v3739
        %3764 = vmatprep.subr.bf16.mxu0 0
        %3765 = vmatpush1.bf16.msra.mxu0 %v3741
        %3766 = vmatprep.subr.bf16.mxu0 0
        %3767 = vmatpush1.bf16.msra.mxu0 %v3743
        %3768 = vmatprep.subr.bf16.mxu0 0
        %3769 = vmatpush1.bf16.msra.mxu0 %v3745
        %3770 = vmatprep.subr.bf16.mxu0 0
        %3771 = vmatpush1.bf16.msra.mxu0 0
        %3772 = vmatprep.subr.bf16.mxu0 0
        %3773 = vmatpush1.bf16.msra.mxu0 0
        %3774 = vmatprep.subr.bf16.mxu0 0
        %3775 = vmatpush1.bf16.msra.mxu0 0
        %3776 = vmatprep.subr.bf16.mxu0 0
        %3777 = vmatpush1.bf16.msra.mxu0 0
        %3778 = vmatprep.subr.bf16.mxu0 0
        %3779 = vmatpush1.bf16.msra.mxu0 0
        %3780 = vmatprep.subr.bf16.mxu0 0
        %3781 = vmatpush1.bf16.msra.mxu0 0
        %3782 = vmatprep.subr.bf16.mxu0 0
        %3783 = vmatpush1.bf16.msra.mxu0 0
        %3784 = vmatprep.subr.bf16.mxu0 0
        %3785 = vmatpush1.bf16.msra.mxu0 0
        %3786 = vmatprep.subr.bf16.mxu0 0
        %3787 = vmatpush1.bf16.msra.mxu0 0
        %3788 = vmatprep.subr.bf16.mxu0 0
        %3789 = vmatpush1.bf16.msra.mxu0 0
        %3790 = vmatprep.subr.bf16.mxu0 0
        %3791 = vmatpush1.bf16.msra.mxu0 0
        %3792 = vmatprep.subr.bf16.mxu0 0
        %3793 = vmatpush1.bf16.msra.mxu0 0
        %3794 = vmatprep.mubr.bf16.mxu0 0
        %3795 = vmatmul.mubr.bf16.gmra.mrb[0].mxu0 %v3751
        %v3796 = vpop.f32.mrb[0].mxu0
        %v3797 = vadd.f32 0.0, %v3796
        %v3798 = vpop.f32.mrb[0].mxu0
        %v3799 = vpop.f32.mrb[0].mxu0
        %v3800 = vadd.f32 0.0, %v3799
        %v3801 = vpop.f32.mrb[0].mxu0
        %3802 = vmatprep.mubr.bf16.mxu0 0
        %3803 = vmatmul.mubr.bf16.gmra.mrb[0].mxu0 %v3754
        %v3804 = vpop.f32.mrb[0].mxu0
        %v3805 = vadd.f32 0.0, %v3804
        %v3806 = vpop.f32.mrb[0].mxu0
        %v3807 = vpop.f32.mrb[0].mxu0
        %v3808 = vadd.f32 0.0, %v3807
        %v3809 = vpop.f32.mrb[0].mxu0
        %3810 = vmatprep.mubr.bf16.mxu0 0
        %3811 = vmatmul.mubr.bf16.gmra.mrb[0].mxu0 %v3757
        %v3812 = vpop.f32.mrb[0].mxu0
        %v3813 = vadd.f32 0.0, %v3812
        %v3814 = vpop.f32.mrb[0].mxu0
        %v3815 = vpop.f32.mrb[0].mxu0
        %v3816 = vadd.f32 0.0, %v3815
        %v3817 = vpop.f32.mrb[0].mxu0
        %3818 = vmatprep.mubr.bf16.mxu0 0
        %3819 = vmatmul.mubr.bf16.gmra.mrb[0].mxu0 %v3760
        %v3820 = vpop.f32.mrb[0].mxu0
        %v3821 = vadd.f32 0.0, %v3820
        %v3822 = vpop.f32.mrb[0].mxu0
        %v3823 = vpop.f32.mrb[0].mxu0
        %v3824 = vadd.f32 0.0, %v3823
        %v3825 = vpop.f32.mrb[0].mxu0
        %3826 = vdwg.mxu0
        %3827 = vrot.lane.b32.xlu0 %v1590, 64
        %v3828 = vpop.permute.xlu0 %3827
        %3829 = vrot.lane.b32.xlu0 %v1591, 64
        %v3830 = vpop.permute.xlu0 %3829
        %3831 = vrot.lane.b32.xlu0 %v1592, 64
        %v3832 = vpop.permute.xlu0 %3831
        %3833 = vrot.lane.b32.xlu0 %v1593, 64
        %v3834 = vpop.permute.xlu0 %3833
        %v3840 = vsel %vm2467, %v3200, 0
        %v3843 = vsel %vm2467, %v3201, 0
        %v3846 = vsel %vm2467, %v3202, 0
        %v3849 = vsel %vm2467, %v3203, 0
        %3851 = vmatprep.subr.bf16.mxu0 0
        %3852 = vmatpush1.bf16.msra.mxu0 %v3828
        %3853 = vmatprep.subr.bf16.mxu0 0
        %3854 = vmatpush1.bf16.msra.mxu0 %v3830
        %3855 = vmatprep.subr.bf16.mxu0 0
        %3856 = vmatpush1.bf16.msra.mxu0 %v3832
        %3857 = vmatprep.subr.bf16.mxu0 0
        %3858 = vmatpush1.bf16.msra.mxu0 %v3834
        %3859 = vmatprep.subr.bf16.mxu0 0
        %3860 = vmatpush1.bf16.msra.mxu0 0
        %3861 = vmatprep.subr.bf16.mxu0 0
        %3862 = vmatpush1.bf16.msra.mxu0 0
        %3863 = vmatprep.subr.bf16.mxu0 0
        %3864 = vmatpush1.bf16.msra.mxu0 0
        %3865 = vmatprep.subr.bf16.mxu0 0
        %3866 = vmatpush1.bf16.msra.mxu0 0
        %3867 = vmatprep.subr.bf16.mxu0 0
        %3868 = vmatpush1.bf16.msra.mxu0 0
        %3869 = vmatprep.subr.bf16.mxu0 0
        %3870 = vmatpush1.bf16.msra.mxu0 0
        %3871 = vmatprep.subr.bf16.mxu0 0
        %3872 = vmatpush1.bf16.msra.mxu0 0
        %3873 = vmatprep.subr.bf16.mxu0 0
        %3874 = vmatpush1.bf16.msra.mxu0 0
        %3875 = vmatprep.subr.bf16.mxu0 0
        %3876 = vmatpush1.bf16.msra.mxu0 0
        %3877 = vmatprep.subr.bf16.mxu0 0
        %3878 = vmatpush1.bf16.msra.mxu0 0
        %3879 = vmatprep.subr.bf16.mxu0 0
        %3880 = vmatpush1.bf16.msra.mxu0 0
        %3881 = vmatprep.subr.bf16.mxu0 0
        %3882 = vmatpush1.bf16.msra.mxu0 0
        %3883 = vmatprep.mubr.bf16.mxu0 0
        %3884 = vmatmul.mubr.bf16.gmra.mrb[0].mxu0 %v3840
        %v3885 = vpop.f32.mrb[0].mxu0
        %v3886 = vadd.f32 0.0, %v3885
        %v3887 = vpop.f32.mrb[0].mxu0
        %v3888 = vpop.f32.mrb[0].mxu0
        %v3889 = vadd.f32 0.0, %v3888
        %v3890 = vpop.f32.mrb[0].mxu0
        %3891 = vmatprep.mubr.bf16.mxu0 0
        %3892 = vmatmul.mubr.bf16.gmra.mrb[0].mxu0 %v3843
        %v3893 = vpop.f32.mrb[0].mxu0
        %v3894 = vadd.f32 0.0, %v3893
        %v3895 = vpop.f32.mrb[0].mxu0
        %v3896 = vpop.f32.mrb[0].mxu0
        %v3897 = vadd.f32 0.0, %v3896
        %v3898 = vpop.f32.mrb[0].mxu0
        %3899 = vmatprep.mubr.bf16.mxu0 0
        %3900 = vmatmul.mubr.bf16.gmra.mrb[0].mxu0 %v3846
        %v3901 = vpop.f32.mrb[0].mxu0
        %v3902 = vadd.f32 0.0, %v3901
        %v3903 = vpop.f32.mrb[0].mxu0
        %v3904 = vpop.f32.mrb[0].mxu0
        %v3905 = vadd.f32 0.0, %v3904
        %v3906 = vpop.f32.mrb[0].mxu0
        %3907 = vmatprep.mubr.bf16.mxu0 0
        %3908 = vmatmul.mubr.bf16.gmra.mrb[0].mxu0 %v3849
        %v3909 = vpop.f32.mrb[0].mxu0
        %v3910 = vadd.f32 0.0, %v3909
        %v3911 = vpop.f32.mrb[0].mxu0
        %v3912 = vpop.f32.mrb[0].mxu0
        %v3913 = vadd.f32 0.0, %v3912
        %v3914 = vpop.f32.mrb[0].mxu0
        %3915 = vdwg.mxu0
        %3948 = vrot.lane.b32.xlu0 %v3619, 16
        %v3949 = vpop.permute.xlu0 %3948
        %3950 = vrot.lane.b32.xlu0 %v3622, 16
        %v3951 = vpop.permute.xlu0 %3950
        %3952 = vrot.lane.b32.xlu0 %v3627, 16
        %v3953 = vpop.permute.xlu0 %3952
        %3954 = vrot.lane.b32.xlu0 %v3630, 16
        %v3955 = vpop.permute.xlu0 %3954
        %3956 = vrot.lane.b32.xlu0 %v3635, 16
        %v3957 = vpop.permute.xlu0 %3956
        %3958 = vrot.lane.b32.xlu0 %v3638, 16
        %v3959 = vpop.permute.xlu0 %3958
        %3960 = vrot.lane.b32.xlu0 %v3643, 16
        %v3961 = vpop.permute.xlu0 %3960
        %3962 = vrot.lane.b32.xlu0 %v3646, 16
        %v3963 = vpop.permute.xlu0 %3962
        %3964 = vrot.lane.b32.xlu0 %v3708, 16
        %v3965 = vpop.permute.xlu0 %3964
        %3966 = vrot.lane.b32.xlu0 %v3711, 16
        %v3967 = vpop.permute.xlu0 %3966
        %3968 = vrot.lane.b32.xlu0 %v3716, 16
        %v3969 = vpop.permute.xlu0 %3968
        %3970 = vrot.lane.b32.xlu0 %v3719, 16
        %v3971 = vpop.permute.xlu0 %3970
        %3972 = vrot.lane.b32.xlu0 %v3724, 16
        %v3973 = vpop.permute.xlu0 %3972
        %3974 = vrot.lane.b32.xlu0 %v3727, 16
        %v3975 = vpop.permute.xlu0 %3974
        %3976 = vrot.lane.b32.xlu0 %v3732, 16
        %v3977 = vpop.permute.xlu0 %3976
        %3978 = vrot.lane.b32.xlu0 %v3735, 16
        %v3979 = vpop.permute.xlu0 %3978
        %3980 = vrot.lane.b32.xlu0 %v3797, 16
        %v3981 = vpop.permute.xlu0 %3980
        %3982 = vrot.lane.b32.xlu0 %v3800, 16
        %v3983 = vpop.permute.xlu0 %3982
        %3984 = vrot.lane.b32.xlu0 %v3805, 16
        %v3985 = vpop.permute.xlu0 %3984
        %3986 = vrot.lane.b32.xlu0 %v3808, 16
        %v3987 = vpop.permute.xlu0 %3986
        %3988 = vrot.lane.b32.xlu0 %v3813, 16
        %v3989 = vpop.permute.xlu0 %3988
        %3990 = vrot.lane.b32.xlu0 %v3816, 16
        %v3991 = vpop.permute.xlu0 %3990
        %3992 = vrot.lane.b32.xlu0 %v3821, 16
        %v3993 = vpop.permute.xlu0 %3992
        %3994 = vrot.lane.b32.xlu0 %v3824, 16
        %v3995 = vpop.permute.xlu0 %3994
        %3996 = vrot.lane.b32.xlu0 %v3886, 16
        %v3997 = vpop.permute.xlu0 %3996
        %3998 = vrot.lane.b32.xlu0 %v3889, 16
        %v3999 = vpop.permute.xlu0 %3998
        %4000 = vrot.lane.b32.xlu0 %v3894, 16
        %v4001 = vpop.permute.xlu0 %4000
        %4002 = vrot.lane.b32.xlu0 %v3897, 16
        %v4003 = vpop.permute.xlu0 %4002
        %4004 = vrot.lane.b32.xlu0 %v3902, 16
        %v4005 = vpop.permute.xlu0 %4004
        %4006 = vrot.lane.b32.xlu0 %v3905, 16
        %v4007 = vpop.permute.xlu0 %4006
        %4008 = vrot.lane.b32.xlu0 %v3910, 16
        %v4009 = vpop.permute.xlu0 %4008
        %4010 = vrot.lane.b32.xlu0 %v3913, 16
        %v4011 = vpop.permute.xlu0 %4010
        %v4044 = vsel %vm1606, %v3263, %v3949
        %v4045 = vsel %vm1606, %v3266, %v3951
        %v4046 = vsel %vm1606, %v3271, %v3953
        %v4047 = vsel %vm1606, %v3274, %v3955
        %v4048 = vsel %vm1606, %v3279, %v3957
        %v4049 = vsel %vm1606, %v3282, %v3959
        %v4050 = vsel %vm1606, %v3287, %v3961
        %v4051 = vsel %vm1606, %v3290, %v3963
        %v4052 = vsel %vm1606, %v3352, %v3965
        %v4053 = vsel %vm1606, %v3355, %v3967
        %v4054 = vsel %vm1606, %v3360, %v3969
        %v4055 = vsel %vm1606, %v3363, %v3971
        %v4056 = vsel %vm1606, %v3368, %v3973
        %v4057 = vsel %vm1606, %v3371, %v3975
        %v4058 = vsel %vm1606, %v3376, %v3977
        %v4059 = vsel %vm1606, %v3379, %v3979
        %v4060 = vsel %vm1606, %v3441, %v3981
        %v4061 = vsel %vm1606, %v3444, %v3983
        %v4062 = vsel %vm1606, %v3449, %v3985
        %v4063 = vsel %vm1606, %v3452, %v3987
        %v4064 = vsel %vm1606, %v3457, %v3989
        %v4065 = vsel %vm1606, %v3460, %v3991
        %v4066 = vsel %vm1606, %v3465, %v3993
        %v4067 = vsel %vm1606, %v3468, %v3995
        %v4068 = vsel %vm1606, %v3530, %v3997
        %v4069 = vsel %vm1606, %v3533, %v3999
        %v4070 = vsel %vm1606, %v3538, %v4001
        %v4071 = vsel %vm1606, %v3541, %v4003
        %v4072 = vsel %vm1606, %v3546, %v4005
        %v4073 = vsel %vm1606, %v3549, %v4007
        %v4074 = vsel %vm1606, %v3554, %v4009
        %v4075 = vsel %vm1606, %v3557, %v4011
        %v4076 = vpack.c.bf16 %v4045, %v4044
        %v4077 = vpack.c.bf16 %v4047, %v4046
        %v4078 = vpack.c.bf16 %v4049, %v4048
        %v4079 = vpack.c.bf16 %v4051, %v4050
        %v4080 = vpack.c.bf16 %v4053, %v4052
        %v4081 = vpack.c.bf16 %v4055, %v4054
        %v4082 = vpack.c.bf16 %v4057, %v4056
        %v4083 = vpack.c.bf16 %v4059, %v4058
        %v4084 = vpack.c.bf16 %v4061, %v4060
        %v4085 = vpack.c.bf16 %v4063, %v4062
        %v4086 = vpack.c.bf16 %v4065, %v4064
        %v4087 = vpack.c.bf16 %v4067, %v4066
        %v4088 = vpack.c.bf16 %v4069, %v4068
        %v4089 = vpack.c.bf16 %v4071, %v4070
        %v4090 = vpack.c.bf16 %v4073, %v4072
        %v4091 = vpack.c.bf16 %v4075, %v4074
        %v4092 = vld [vmem:[%s6] sm:$0xf]
        %v4093 = vld [vmem:[%s6 + $0x4] sm:$0xf]
        %v4094 = vld [vmem:[%s6 + $0x8] sm:$0xf]
        %v4095 = vld [vmem:[%s6 + $0xc] sm:$0xf]
        %v4096 = vld [vmem:[%s7] sm:$0x1]
        %v4098 = vlaneseq
        %v4099 = vshrl.u32 %v4098, 7
        %v4100 = vsub.s32 0, %v4099
        %v4101 = vrot.slane %v4096, %v4100
        %v4107 = vunpack.c.l.b16 %v4092
        %v4108 = vunpack.c.l.b16 %v4093
        %v4109 = vunpack.c.l.b16 %v4094
        %v4110 = vunpack.c.l.b16 %v4095
        %v4111 = vpack.c.b16 %v4108, %v4107
        %v4112 = vpack.c.b16 %v4110, %v4109
        %v4116 = vsel %vm676, %v4076, 0
        %v4119 = vsel %vm676, %v4077, 0
        %v4122 = vsel %vm676, %v4078, 0
        %v4125 = vsel %vm676, %v4079, 0
        %v4128 = vsel %vm676, %v4080, 0
        %v4131 = vsel %vm676, %v4081, 0
        %v4134 = vsel %vm676, %v4082, 0
        %v4137 = vsel %vm676, %v4083, 0
        %v4140 = vsel %vm676, %v4084, 0
        %v4143 = vsel %vm676, %v4085, 0
        %v4146 = vsel %vm676, %v4086, 0
        %v4149 = vsel %vm676, %v4087, 0
        %v4152 = vsel %vm676, %v4088, 0
        %v4155 = vsel %vm676, %v4089, 0
        %v4158 = vsel %vm676, %v4090, 0
        %v4161 = vsel %vm676, %v4091, 0
        %4163 = vmatprep.subr.bf16.mxu0 0
        %4164 = vmatpush1.bf16.msra.mxu0 %v4111
        %4165 = vmatprep.subr.bf16.mxu0 0
        %4166 = vmatpush1.bf16.msra.mxu0 %v4112
        %4167 = vmatprep.subr.bf16.mxu0 0
        %4168 = vmatpush1.bf16.msra.mxu0 0
        %4169 = vmatprep.subr.bf16.mxu0 0
        %4170 = vmatpush1.bf16.msra.mxu0 0
        %4171 = vmatprep.subr.bf16.mxu0 0
        %4172 = vmatpush1.bf16.msra.mxu0 0
        %4173 = vmatprep.subr.bf16.mxu0 0
        %4174 = vmatpush1.bf16.msra.mxu0 0
        %4175 = vmatprep.subr.bf16.mxu0 0
        %4176 = vmatpush1.bf16.msra.mxu0 0
        %4177 = vmatprep.subr.bf16.mxu0 0
        %4178 = vmatpush1.bf16.msra.mxu0 0
        %4179 = vmatprep.subr.bf16.mxu0 0
        %4180 = vmatpush1.bf16.msra.mxu0 0
        %4181 = vmatprep.subr.bf16.mxu0 0
        %4182 = vmatpush1.bf16.msra.mxu0 0
        %4183 = vmatprep.subr.bf16.mxu0 0
        %4184 = vmatpush1.bf16.msra.mxu0 0
        %4185 = vmatprep.subr.bf16.mxu0 0
        %4186 = vmatpush1.bf16.msra.mxu0 0
        %4187 = vmatprep.subr.bf16.mxu0 0
        %4188 = vmatpush1.bf16.msra.mxu0 0
        %4189 = vmatprep.subr.bf16.mxu0 0
        %4190 = vmatpush1.bf16.msra.mxu0 0
        %4191 = vmatprep.subr.bf16.mxu0 0
        %4192 = vmatpush1.bf16.msra.mxu0 0
        %4193 = vmatprep.subr.bf16.mxu0 0
        %4194 = vmatpush1.bf16.msra.mxu0 0
        %4195 = vmatprep.mubr.bf16.mxu0 0
        %4196 = vmatmul.mubr.bf16.gmra.mrb[0].mxu0 %v4116
        %v4197 = vpop.f32.mrb[0].mxu0
        %v4198 = vadd.f32 %v4101, %v4197
        %v4199 = vpop.f32.mrb[0].mxu0
        %v4200 = vpop.f32.mrb[0].mxu0
        %v4201 = vadd.f32 %v4101, %v4200
        %v4202 = vpop.f32.mrb[0].mxu0
        %4203 = vmatprep.mubr.bf16.mxu0 0
        %4204 = vmatmul.mubr.bf16.gmra.mrb[0].mxu0 %v4119
        %v4205 = vpop.f32.mrb[0].mxu0
        %v4206 = vadd.f32 %v4101, %v4205
        %v4207 = vpop.f32.mrb[0].mxu0
        %v4208 = vpop.f32.mrb[0].mxu0
        %v4209 = vadd.f32 %v4101, %v4208
        %v4210 = vpop.f32.mrb[0].mxu0
        %4211 = vmatprep.mubr.bf16.mxu0 0
        %4212 = vmatmul.mubr.bf16.gmra.mrb[0].mxu0 %v4122
        %v4213 = vpop.f32.mrb[0].mxu0
        %v4214 = vadd.f32 %v4101, %v4213
        %v4215 = vpop.f32.mrb[0].mxu0
        %v4216 = vpop.f32.mrb[0].mxu0
        %v4217 = vadd.f32 %v4101, %v4216
        %v4218 = vpop.f32.mrb[0].mxu0
        %4219 = vmatprep.mubr.bf16.mxu0 0
        %4220 = vmatmul.mubr.bf16.gmra.mrb[0].mxu0 %v4125
        %v4221 = vpop.f32.mrb[0].mxu0
        %v4222 = vadd.f32 %v4101, %v4221
        %v4223 = vpop.f32.mrb[0].mxu0
        %v4224 = vpop.f32.mrb[0].mxu0
        %v4225 = vadd.f32 %v4101, %v4224
        %v4226 = vpop.f32.mrb[0].mxu0
        %4227 = vmatprep.mubr.bf16.mxu0 0
        %4228 = vmatmul.mubr.bf16.gmra.mrb[0].mxu0 %v4128
        %v4229 = vpop.f32.mrb[0].mxu0
        %v4230 = vadd.f32 %v4101, %v4229
        %v4231 = vpop.f32.mrb[0].mxu0
        %v4232 = vpop.f32.mrb[0].mxu0
        %v4233 = vadd.f32 %v4101, %v4232
        %v4234 = vpop.f32.mrb[0].mxu0
        %4235 = vmatprep.mubr.bf16.mxu0 0
        %4236 = vmatmul.mubr.bf16.gmra.mrb[0].mxu0 %v4131
        %v4237 = vpop.f32.mrb[0].mxu0
        %v4238 = vadd.f32 %v4101, %v4237
        %v4239 = vpop.f32.mrb[0].mxu0
        %v4240 = vpop.f32.mrb[0].mxu0
        %v4241 = vadd.f32 %v4101, %v4240
        %v4242 = vpop.f32.mrb[0].mxu0
        %4243 = vmatprep.mubr.bf16.mxu0 0
        %4244 = vmatmul.mubr.bf16.gmra.mrb[0].mxu0 %v4134
        %v4245 = vpop.f32.mrb[0].mxu0
        %v4246 = vadd.f32 %v4101, %v4245
        %v4247 = vpop.f32.mrb[0].mxu0
        %v4248 = vpop.f32.mrb[0].mxu0
        %v4249 = vadd.f32 %v4101, %v4248
        %v4250 = vpop.f32.mrb[0].mxu0
        %4251 = vmatprep.mubr.bf16.mxu0 0
        %4252 = vmatmul.mubr.bf16.gmra.mrb[0].mxu0 %v4137
        %v4253 = vpop.f32.mrb[0].mxu0
        %v4254 = vadd.f32 %v4101, %v4253
        %v4255 = vpop.f32.mrb[0].mxu0
        %v4256 = vpop.f32.mrb[0].mxu0
        %v4257 = vadd.f32 %v4101, %v4256
        %v4258 = vpop.f32.mrb[0].mxu0
        %4259 = vmatprep.mubr.bf16.mxu0 0
        %4260 = vmatmul.mubr.bf16.gmra.mrb[0].mxu0 %v4140
        %v4261 = vpop.f32.mrb[0].mxu0
        %v4262 = vadd.f32 %v4101, %v4261
        %v4263 = vpop.f32.mrb[0].mxu0
        %v4264 = vpop.f32.mrb[0].mxu0
        %v4265 = vadd.f32 %v4101, %v4264
        %v4266 = vpop.f32.mrb[0].mxu0
        %4267 = vmatprep.mubr.bf16.mxu0 0
        %4268 = vmatmul.mubr.bf16.gmra.mrb[0].mxu0 %v4143
        %v4269 = vpop.f32.mrb[0].mxu0
        %v4270 = vadd.f32 %v4101, %v4269
        %v4271 = vpop.f32.mrb[0].mxu0
        %v4272 = vpop.f32.mrb[0].mxu0
        %v4273 = vadd.f32 %v4101, %v4272
        %v4274 = vpop.f32.mrb[0].mxu0
        %4275 = vmatprep.mubr.bf16.mxu0 0
        %4276 = vmatmul.mubr.bf16.gmra.mrb[0].mxu0 %v4146
        %v4277 = vpop.f32.mrb[0].mxu0
        %v4278 = vadd.f32 %v4101, %v4277
        %v4279 = vpop.f32.mrb[0].mxu0
        %v4280 = vpop.f32.mrb[0].mxu0
        %v4281 = vadd.f32 %v4101, %v4280
        %v4282 = vpop.f32.mrb[0].mxu0
        %4283 = vmatprep.mubr.bf16.mxu0 0
        %4284 = vmatmul.mubr.bf16.gmra.mrb[0].mxu0 %v4149
        %v4285 = vpop.f32.mrb[0].mxu0
        %v4286 = vadd.f32 %v4101, %v4285
        %v4287 = vpop.f32.mrb[0].mxu0
        %v4288 = vpop.f32.mrb[0].mxu0
        %v4289 = vadd.f32 %v4101, %v4288
        %v4290 = vpop.f32.mrb[0].mxu0
        %4291 = vmatprep.mubr.bf16.mxu0 0
        %4292 = vmatmul.mubr.bf16.gmra.mrb[0].mxu0 %v4152
        %v4293 = vpop.f32.mrb[0].mxu0
        %v4294 = vadd.f32 %v4101, %v4293
        %v4295 = vpop.f32.mrb[0].mxu0
        %v4296 = vpop.f32.mrb[0].mxu0
        %v4297 = vadd.f32 %v4101, %v4296
        %v4298 = vpop.f32.mrb[0].mxu0
        %4299 = vmatprep.mubr.bf16.mxu0 0
        %4300 = vmatmul.mubr.bf16.gmra.mrb[0].mxu0 %v4155
        %v4301 = vpop.f32.mrb[0].mxu0
        %v4302 = vadd.f32 %v4101, %v4301
        %v4303 = vpop.f32.mrb[0].mxu0
        %v4304 = vpop.f32.mrb[0].mxu0
        %v4305 = vadd.f32 %v4101, %v4304
        %v4306 = vpop.f32.mrb[0].mxu0
        %4307 = vmatprep.mubr.bf16.mxu0 0
        %4308 = vmatmul.mubr.bf16.gmra.mrb[0].mxu0 %v4158
        %v4309 = vpop.f32.mrb[0].mxu0
        %v4310 = vadd.f32 %v4101, %v4309
        %v4311 = vpop.f32.mrb[0].mxu0
        %v4312 = vpop.f32.mrb[0].mxu0
        %v4313 = vadd.f32 %v4101, %v4312
        %v4314 = vpop.f32.mrb[0].mxu0
        %4315 = vmatprep.mubr.bf16.mxu0 0
        %4316 = vmatmul.mubr.bf16.gmra.mrb[0].mxu0 %v4161
        %v4317 = vpop.f32.mrb[0].mxu0
        %v4318 = vadd.f32 %v4101, %v4317
        %v4319 = vpop.f32.mrb[0].mxu0
        %v4320 = vpop.f32.mrb[0].mxu0
        %v4321 = vadd.f32 %v4101, %v4320
        %v4322 = vpop.f32.mrb[0].mxu0
        %4323 = vdwg.mxu0
        %v4324 = vadd.f32 %v642, %v4198
        %v4325 = vadd.f32 %v643, %v4201
        %v4326 = vadd.f32 %v644, %v4206
        %v4327 = vadd.f32 %v645, %v4209
        %v4328 = vadd.f32 %v646, %v4214
        %v4329 = vadd.f32 %v647, %v4217
        %v4330 = vadd.f32 %v648, %v4222
        %v4331 = vadd.f32 %v649, %v4225
        %v4332 = vadd.f32 %v650, %v4230
        %v4333 = vadd.f32 %v651, %v4233
        %v4334 = vadd.f32 %v652, %v4238
        %v4335 = vadd.f32 %v653, %v4241
        %v4336 = vadd.f32 %v654, %v4246
        %v4337 = vadd.f32 %v655, %v4249
        %v4338 = vadd.f32 %v656, %v4254
        %v4339 = vadd.f32 %v657, %v4257
        %v4340 = vadd.f32 %v658, %v4262
        %v4341 = vadd.f32 %v659, %v4265
        %v4342 = vadd.f32 %v660, %v4270
        %v4343 = vadd.f32 %v661, %v4273
        %v4344 = vadd.f32 %v662, %v4278
        %v4345 = vadd.f32 %v663, %v4281
        %v4346 = vadd.f32 %v664, %v4286
        %v4347 = vadd.f32 %v665, %v4289
        %v4348 = vadd.f32 %v666, %v4294
        %v4349 = vadd.f32 %v667, %v4297
        %v4350 = vadd.f32 %v668, %v4302
        %v4351 = vadd.f32 %v669, %v4305
        %v4352 = vadd.f32 %v670, %v4310
        %v4353 = vadd.f32 %v671, %v4313
        %v4354 = vadd.f32 %v672, %v4318
        %v4355 = vadd.f32 %v673, %v4321
        %v4356 = vld [vmem:[%s8] sm:$0x1]
        %v4357 = vld [vmem:[%s9] sm:$0x1]
        %v4358 = vsel %vm676, %v4324, 0.0
        %4359 = vadd.xlane.f32.xlu0 %v4358
        %v4360 = vpop.xlane.xlu0 %4359
        %v4361 = vsel %vm676, %v4325, 0.0
        %4362 = vadd.xlane.f32.xlu0 %v4361
        %v4363 = vpop.xlane.xlu0 %4362
        %v4364 = vsel %vm676, %v4326, 0.0
        %4365 = vadd.xlane.f32.xlu0 %v4364
        %v4366 = vpop.xlane.xlu0 %4365
        %v4367 = vsel %vm676, %v4327, 0.0
        %4368 = vadd.xlane.f32.xlu0 %v4367
        %v4369 = vpop.xlane.xlu0 %4368
        %v4370 = vsel %vm676, %v4328, 0.0
        %4371 = vadd.xlane.f32.xlu0 %v4370
        %v4372 = vpop.xlane.xlu0 %4371
        %v4373 = vsel %vm676, %v4329, 0.0
        %4374 = vadd.xlane.f32.xlu0 %v4373
        %v4375 = vpop.xlane.xlu0 %4374
        %v4376 = vsel %vm676, %v4330, 0.0
        %4377 = vadd.xlane.f32.xlu0 %v4376
        %v4378 = vpop.xlane.xlu0 %4377
        %v4379 = vsel %vm676, %v4331, 0.0
        %4380 = vadd.xlane.f32.xlu0 %v4379
        %v4381 = vpop.xlane.xlu0 %4380
        %v4382 = vsel %vm676, %v4332, 0.0
        %4383 = vadd.xlane.f32.xlu0 %v4382
        %v4384 = vpop.xlane.xlu0 %4383
        %v4385 = vsel %vm676, %v4333, 0.0
        %4386 = vadd.xlane.f32.xlu0 %v4385
        %v4387 = vpop.xlane.xlu0 %4386
        %v4388 = vsel %vm676, %v4334, 0.0
        %4389 = vadd.xlane.f32.xlu0 %v4388
        %v4390 = vpop.xlane.xlu0 %4389
        %v4391 = vsel %vm676, %v4335, 0.0
        %4392 = vadd.xlane.f32.xlu0 %v4391
        %v4393 = vpop.xlane.xlu0 %4392
        %v4394 = vsel %vm676, %v4336, 0.0
        %4395 = vadd.xlane.f32.xlu0 %v4394
        %v4396 = vpop.xlane.xlu0 %4395
        %v4397 = vsel %vm676, %v4337, 0.0
        %4398 = vadd.xlane.f32.xlu0 %v4397
        %v4399 = vpop.xlane.xlu0 %4398
        %v4400 = vsel %vm676, %v4338, 0.0
        %4401 = vadd.xlane.f32.xlu0 %v4400
        %v4402 = vpop.xlane.xlu0 %4401
        %v4403 = vsel %vm676, %v4339, 0.0
        %4404 = vadd.xlane.f32.xlu0 %v4403
        %v4405 = vpop.xlane.xlu0 %4404
        %v4406 = vsel %vm676, %v4340, 0.0
        %4407 = vadd.xlane.f32.xlu0 %v4406
        %v4408 = vpop.xlane.xlu0 %4407
        %v4409 = vsel %vm676, %v4341, 0.0
        %4410 = vadd.xlane.f32.xlu0 %v4409
        %v4411 = vpop.xlane.xlu0 %4410
        %v4412 = vsel %vm676, %v4342, 0.0
        %4413 = vadd.xlane.f32.xlu0 %v4412
        %v4414 = vpop.xlane.xlu0 %4413
        %v4415 = vsel %vm676, %v4343, 0.0
        %4416 = vadd.xlane.f32.xlu0 %v4415
        %v4417 = vpop.xlane.xlu0 %4416
        %v4418 = vsel %vm676, %v4344, 0.0
        %4419 = vadd.xlane.f32.xlu0 %v4418
        %v4420 = vpop.xlane.xlu0 %4419
        %v4421 = vsel %vm676, %v4345, 0.0
        %4422 = vadd.xlane.f32.xlu0 %v4421
        %v4423 = vpop.xlane.xlu0 %4422
        %v4424 = vsel %vm676, %v4346, 0.0
        %4425 = vadd.xlane.f32.xlu0 %v4424
        %v4426 = vpop.xlane.xlu0 %4425
        %v4427 = vsel %vm676, %v4347, 0.0
        %4428 = vadd.xlane.f32.xlu0 %v4427
        %v4429 = vpop.xlane.xlu0 %4428
        %v4430 = vsel %vm676, %v4348, 0.0
        %4431 = vadd.xlane.f32.xlu0 %v4430
        %v4432 = vpop.xlane.xlu0 %4431
        %v4433 = vsel %vm676, %v4349, 0.0
        %4434 = vadd.xlane.f32.xlu0 %v4433
        %v4435 = vpop.xlane.xlu0 %4434
        %v4436 = vsel %vm676, %v4350, 0.0
        %4437 = vadd.xlane.f32.xlu0 %v4436
        %v4438 = vpop.xlane.xlu0 %4437
        %v4439 = vsel %vm676, %v4351, 0.0
        %4440 = vadd.xlane.f32.xlu0 %v4439
        %v4441 = vpop.xlane.xlu0 %4440
        %v4442 = vsel %vm676, %v4352, 0.0
        %4443 = vadd.xlane.f32.xlu0 %v4442
        %v4444 = vpop.xlane.xlu0 %4443
        %v4445 = vsel %vm676, %v4353, 0.0
        %4446 = vadd.xlane.f32.xlu0 %v4445
        %v4447 = vpop.xlane.xlu0 %4446
        %v4448 = vsel %vm676, %v4354, 0.0
        %4449 = vadd.xlane.f32.xlu0 %v4448
        %v4450 = vpop.xlane.xlu0 %4449
        %v4451 = vsel %vm676, %v4355, 0.0
        %4452 = vadd.xlane.f32.xlu0 %v4451
        %v4453 = vpop.xlane.xlu0 %4452
        %v4454 = vmul.f32 %v4360, %v773
        %v4455 = vmul.f32 %v4363, %v773
        %v4456 = vmul.f32 %v4366, %v773
        %v4457 = vmul.f32 %v4369, %v773
        %v4458 = vmul.f32 %v4372, %v773
        %v4459 = vmul.f32 %v4375, %v773
        %v4460 = vmul.f32 %v4378, %v773
        %v4461 = vmul.f32 %v4381, %v773
        %v4462 = vmul.f32 %v4384, %v773
        %v4463 = vmul.f32 %v4387, %v773
        %v4464 = vmul.f32 %v4390, %v773
        %v4465 = vmul.f32 %v4393, %v773
        %v4466 = vmul.f32 %v4396, %v773
        %v4467 = vmul.f32 %v4399, %v773
        %v4468 = vmul.f32 %v4402, %v773
        %v4469 = vmul.f32 %v4405, %v773
        %v4470 = vmul.f32 %v4408, %v773
        %v4471 = vmul.f32 %v4411, %v773
        %v4472 = vmul.f32 %v4414, %v773
        %v4473 = vmul.f32 %v4417, %v773
        %v4474 = vmul.f32 %v4420, %v773
        %v4475 = vmul.f32 %v4423, %v773
        %v4476 = vmul.f32 %v4426, %v773
        %v4477 = vmul.f32 %v4429, %v773
        %v4478 = vmul.f32 %v4432, %v773
        %v4479 = vmul.f32 %v4435, %v773
        %v4480 = vmul.f32 %v4438, %v773
        %v4481 = vmul.f32 %v4441, %v773
        %v4482 = vmul.f32 %v4444, %v773
        %v4483 = vmul.f32 %v4447, %v773
        %v4484 = vmul.f32 %v4450, %v773
        %v4485 = vmul.f32 %v4453, %v773
        %v4486 = vsub.f32 %v4324, %v4454
        %v4487 = vsub.f32 %v4325, %v4455
        %v4488 = vsub.f32 %v4326, %v4456
        %v4489 = vsub.f32 %v4327, %v4457
        %v4490 = vsub.f32 %v4328, %v4458
        %v4491 = vsub.f32 %v4329, %v4459
        %v4492 = vsub.f32 %v4330, %v4460
        %v4493 = vsub.f32 %v4331, %v4461
        %v4494 = vsub.f32 %v4332, %v4462
        %v4495 = vsub.f32 %v4333, %v4463
        %v4496 = vsub.f32 %v4334, %v4464
        %v4497 = vsub.f32 %v4335, %v4465
        %v4498 = vsub.f32 %v4336, %v4466
        %v4499 = vsub.f32 %v4337, %v4467
        %v4500 = vsub.f32 %v4338, %v4468
        %v4501 = vsub.f32 %v4339, %v4469
        %v4502 = vsub.f32 %v4340, %v4470
        %v4503 = vsub.f32 %v4341, %v4471
        %v4504 = vsub.f32 %v4342, %v4472
        %v4505 = vsub.f32 %v4343, %v4473
        %v4506 = vsub.f32 %v4344, %v4474
        %v4507 = vsub.f32 %v4345, %v4475
        %v4508 = vsub.f32 %v4346, %v4476
        %v4509 = vsub.f32 %v4347, %v4477
        %v4510 = vsub.f32 %v4348, %v4478
        %v4511 = vsub.f32 %v4349, %v4479
        %v4512 = vsub.f32 %v4350, %v4480
        %v4513 = vsub.f32 %v4351, %v4481
        %v4514 = vsub.f32 %v4352, %v4482
        %v4515 = vsub.f32 %v4353, %v4483
        %v4516 = vsub.f32 %v4354, %v4484
        %v4517 = vsub.f32 %v4355, %v4485
        %v4518 = vmul.f32 %v4486, %v4486
        %v4519 = vmul.f32 %v4487, %v4487
        %v4520 = vmul.f32 %v4488, %v4488
        %v4521 = vmul.f32 %v4489, %v4489
        %v4522 = vmul.f32 %v4490, %v4490
        %v4523 = vmul.f32 %v4491, %v4491
        %v4524 = vmul.f32 %v4492, %v4492
        %v4525 = vmul.f32 %v4493, %v4493
        %v4526 = vmul.f32 %v4494, %v4494
        %v4527 = vmul.f32 %v4495, %v4495
        %v4528 = vmul.f32 %v4496, %v4496
        %v4529 = vmul.f32 %v4497, %v4497
        %v4530 = vmul.f32 %v4498, %v4498
        %v4531 = vmul.f32 %v4499, %v4499
        %v4532 = vmul.f32 %v4500, %v4500
        %v4533 = vmul.f32 %v4501, %v4501
        %v4534 = vmul.f32 %v4502, %v4502
        %v4535 = vmul.f32 %v4503, %v4503
        %v4536 = vmul.f32 %v4504, %v4504
        %v4537 = vmul.f32 %v4505, %v4505
        %v4538 = vmul.f32 %v4506, %v4506
        %v4539 = vmul.f32 %v4507, %v4507
        %v4540 = vmul.f32 %v4508, %v4508
        %v4541 = vmul.f32 %v4509, %v4509
        %v4542 = vmul.f32 %v4510, %v4510
        %v4543 = vmul.f32 %v4511, %v4511
        %v4544 = vmul.f32 %v4512, %v4512
        %v4545 = vmul.f32 %v4513, %v4513
        %v4546 = vmul.f32 %v4514, %v4514
        %v4547 = vmul.f32 %v4515, %v4515
        %v4548 = vmul.f32 %v4516, %v4516
        %v4549 = vmul.f32 %v4517, %v4517
        %v4550 = vsel %vm676, %v4518, 0.0
        %4551 = vadd.xlane.f32.xlu0 %v4550
        %v4552 = vpop.xlane.xlu0 %4551
        %v4553 = vsel %vm676, %v4519, 0.0
        %4554 = vadd.xlane.f32.xlu0 %v4553
        %v4555 = vpop.xlane.xlu0 %4554
        %v4556 = vsel %vm676, %v4520, 0.0
        %4557 = vadd.xlane.f32.xlu0 %v4556
        %v4558 = vpop.xlane.xlu0 %4557
        %v4559 = vsel %vm676, %v4521, 0.0
        %4560 = vadd.xlane.f32.xlu0 %v4559
        %v4561 = vpop.xlane.xlu0 %4560
        %v4562 = vsel %vm676, %v4522, 0.0
        %4563 = vadd.xlane.f32.xlu0 %v4562
        %v4564 = vpop.xlane.xlu0 %4563
        %v4565 = vsel %vm676, %v4523, 0.0
        %4566 = vadd.xlane.f32.xlu0 %v4565
        %v4567 = vpop.xlane.xlu0 %4566
        %v4568 = vsel %vm676, %v4524, 0.0
        %4569 = vadd.xlane.f32.xlu0 %v4568
        %v4570 = vpop.xlane.xlu0 %4569
        %v4571 = vsel %vm676, %v4525, 0.0
        %4572 = vadd.xlane.f32.xlu0 %v4571
        %v4573 = vpop.xlane.xlu0 %4572
        %v4574 = vsel %vm676, %v4526, 0.0
        %4575 = vadd.xlane.f32.xlu0 %v4574
        %v4576 = vpop.xlane.xlu0 %4575
        %v4577 = vsel %vm676, %v4527, 0.0
        %4578 = vadd.xlane.f32.xlu0 %v4577
        %v4579 = vpop.xlane.xlu0 %4578
        %v4580 = vsel %vm676, %v4528, 0.0
        %4581 = vadd.xlane.f32.xlu0 %v4580
        %v4582 = vpop.xlane.xlu0 %4581
        %v4583 = vsel %vm676, %v4529, 0.0
        %4584 = vadd.xlane.f32.xlu0 %v4583
        %v4585 = vpop.xlane.xlu0 %4584
        %v4586 = vsel %vm676, %v4530, 0.0
        %4587 = vadd.xlane.f32.xlu0 %v4586
        %v4588 = vpop.xlane.xlu0 %4587
        %v4589 = vsel %vm676, %v4531, 0.0
        %4590 = vadd.xlane.f32.xlu0 %v4589
        %v4591 = vpop.xlane.xlu0 %4590
        %v4592 = vsel %vm676, %v4532, 0.0
        %4593 = vadd.xlane.f32.xlu0 %v4592
        %v4594 = vpop.xlane.xlu0 %4593
        %v4595 = vsel %vm676, %v4533, 0.0
        %4596 = vadd.xlane.f32.xlu0 %v4595
        %v4597 = vpop.xlane.xlu0 %4596
        %v4598 = vsel %vm676, %v4534, 0.0
        %4599 = vadd.xlane.f32.xlu0 %v4598
        %v4600 = vpop.xlane.xlu0 %4599
        %v4601 = vsel %vm676, %v4535, 0.0
        %4602 = vadd.xlane.f32.xlu0 %v4601
        %v4603 = vpop.xlane.xlu0 %4602
        %v4604 = vsel %vm676, %v4536, 0.0
        %4605 = vadd.xlane.f32.xlu0 %v4604
        %v4606 = vpop.xlane.xlu0 %4605
        %v4607 = vsel %vm676, %v4537, 0.0
        %4608 = vadd.xlane.f32.xlu0 %v4607
        %v4609 = vpop.xlane.xlu0 %4608
        %v4610 = vsel %vm676, %v4538, 0.0
        %4611 = vadd.xlane.f32.xlu0 %v4610
        %v4612 = vpop.xlane.xlu0 %4611
        %v4613 = vsel %vm676, %v4539, 0.0
        %4614 = vadd.xlane.f32.xlu0 %v4613
        %v4615 = vpop.xlane.xlu0 %4614
        %v4616 = vsel %vm676, %v4540, 0.0
        %4617 = vadd.xlane.f32.xlu0 %v4616
        %v4618 = vpop.xlane.xlu0 %4617
        %v4619 = vsel %vm676, %v4541, 0.0
        %4620 = vadd.xlane.f32.xlu0 %v4619
        %v4621 = vpop.xlane.xlu0 %4620
        %v4622 = vsel %vm676, %v4542, 0.0
        %4623 = vadd.xlane.f32.xlu0 %v4622
        %v4624 = vpop.xlane.xlu0 %4623
        %v4625 = vsel %vm676, %v4543, 0.0
        %4626 = vadd.xlane.f32.xlu0 %v4625
        %v4627 = vpop.xlane.xlu0 %4626
        %v4628 = vsel %vm676, %v4544, 0.0
        %4629 = vadd.xlane.f32.xlu0 %v4628
        %v4630 = vpop.xlane.xlu0 %4629
        %v4631 = vsel %vm676, %v4545, 0.0
        %4632 = vadd.xlane.f32.xlu0 %v4631
        %v4633 = vpop.xlane.xlu0 %4632
        %v4634 = vsel %vm676, %v4546, 0.0
        %4635 = vadd.xlane.f32.xlu0 %v4634
        %v4636 = vpop.xlane.xlu0 %4635
        %v4637 = vsel %vm676, %v4547, 0.0
        %4638 = vadd.xlane.f32.xlu0 %v4637
        %v4639 = vpop.xlane.xlu0 %4638
        %v4640 = vsel %vm676, %v4548, 0.0
        %4641 = vadd.xlane.f32.xlu0 %v4640
        %v4642 = vpop.xlane.xlu0 %4641
        %v4643 = vsel %vm676, %v4549, 0.0
        %4644 = vadd.xlane.f32.xlu0 %v4643
        %v4645 = vpop.xlane.xlu0 %4644
        %v4646 = vmul.f32 %v4552, %v773
        %v4647 = vmul.f32 %v4555, %v773
        %v4648 = vmul.f32 %v4558, %v773
        %v4649 = vmul.f32 %v4561, %v773
        %v4650 = vmul.f32 %v4564, %v773
        %v4651 = vmul.f32 %v4567, %v773
        %v4652 = vmul.f32 %v4570, %v773
        %v4653 = vmul.f32 %v4573, %v773
        %v4654 = vmul.f32 %v4576, %v773
        %v4655 = vmul.f32 %v4579, %v773
        %v4656 = vmul.f32 %v4582, %v773
        %v4657 = vmul.f32 %v4585, %v773
        %v4658 = vmul.f32 %v4588, %v773
        %v4659 = vmul.f32 %v4591, %v773
        %v4660 = vmul.f32 %v4594, %v773
        %v4661 = vmul.f32 %v4597, %v773
        %v4662 = vmul.f32 %v4600, %v773
        %v4663 = vmul.f32 %v4603, %v773
        %v4664 = vmul.f32 %v4606, %v773
        %v4665 = vmul.f32 %v4609, %v773
        %v4666 = vmul.f32 %v4612, %v773
        %v4667 = vmul.f32 %v4615, %v773
        %v4668 = vmul.f32 %v4618, %v773
        %v4669 = vmul.f32 %v4621, %v773
        %v4670 = vmul.f32 %v4624, %v773
        %v4671 = vmul.f32 %v4627, %v773
        %v4672 = vmul.f32 %v4630, %v773
        %v4673 = vmul.f32 %v4633, %v773
        %v4674 = vmul.f32 %v4636, %v773
        %v4675 = vmul.f32 %v4639, %v773
        %v4676 = vmul.f32 %v4642, %v773
        %v4677 = vmul.f32 %v4645, %v773
        %v4678 = vadd.f32 %v4646, 1e-05
        %v4679 = vadd.f32 %v4647, 1e-05
        %v4680 = vadd.f32 %v4648, 1e-05
        %v4681 = vadd.f32 %v4649, 1e-05
        %v4682 = vadd.f32 %v4650, 1e-05
        %v4683 = vadd.f32 %v4651, 1e-05
        %v4684 = vadd.f32 %v4652, 1e-05
        %v4685 = vadd.f32 %v4653, 1e-05
        %v4686 = vadd.f32 %v4654, 1e-05
        %v4687 = vadd.f32 %v4655, 1e-05
        %v4688 = vadd.f32 %v4656, 1e-05
        %v4689 = vadd.f32 %v4657, 1e-05
        %v4690 = vadd.f32 %v4658, 1e-05
        %v4691 = vadd.f32 %v4659, 1e-05
        %v4692 = vadd.f32 %v4660, 1e-05
        %v4693 = vadd.f32 %v4661, 1e-05
        %v4694 = vadd.f32 %v4662, 1e-05
        %v4695 = vadd.f32 %v4663, 1e-05
        %v4696 = vadd.f32 %v4664, 1e-05
        %v4697 = vadd.f32 %v4665, 1e-05
        %v4698 = vadd.f32 %v4666, 1e-05
        %v4699 = vadd.f32 %v4667, 1e-05
        %v4700 = vadd.f32 %v4668, 1e-05
        %v4701 = vadd.f32 %v4669, 1e-05
        %v4702 = vadd.f32 %v4670, 1e-05
        %v4703 = vadd.f32 %v4671, 1e-05
        %v4704 = vadd.f32 %v4672, 1e-05
        %v4705 = vadd.f32 %v4673, 1e-05
        %v4706 = vadd.f32 %v4674, 1e-05
        %v4707 = vadd.f32 %v4675, 1e-05
        %v4708 = vadd.f32 %v4676, 1e-05
        %v4709 = vadd.f32 %v4677, 1e-05
        %v4710 = vrsqrt.pop %v4678
        %v4711 = vrsqrt.pop %v4679
        %v4712 = vrsqrt.pop %v4680
        %v4713 = vrsqrt.pop %v4681
        %v4714 = vrsqrt.pop %v4682
        %v4715 = vrsqrt.pop %v4683
        %v4716 = vrsqrt.pop %v4684
        %v4717 = vrsqrt.pop %v4685
        %v4718 = vrsqrt.pop %v4686
        %v4719 = vrsqrt.pop %v4687
        %v4720 = vrsqrt.pop %v4688
        %v4721 = vrsqrt.pop %v4689
        %v4722 = vrsqrt.pop %v4690
        %v4723 = vrsqrt.pop %v4691
        %v4724 = vrsqrt.pop %v4692
        %v4725 = vrsqrt.pop %v4693
        %v4726 = vrsqrt.pop %v4694
        %v4727 = vrsqrt.pop %v4695
        %v4728 = vrsqrt.pop %v4696
        %v4729 = vrsqrt.pop %v4697
        %v4730 = vrsqrt.pop %v4698
        %v4731 = vrsqrt.pop %v4699
        %v4732 = vrsqrt.pop %v4700
        %v4733 = vrsqrt.pop %v4701
        %v4734 = vrsqrt.pop %v4702
        %v4735 = vrsqrt.pop %v4703
        %v4736 = vrsqrt.pop %v4704
        %v4737 = vrsqrt.pop %v4705
        %v4738 = vrsqrt.pop %v4706
        %v4739 = vrsqrt.pop %v4707
        %v4740 = vrsqrt.pop %v4708
        %v4741 = vrsqrt.pop %v4709
        %v4742 = vmul.f32 %v4486, %v4710
        %v4743 = vmul.f32 %v4487, %v4711
        %v4744 = vmul.f32 %v4488, %v4712
        %v4745 = vmul.f32 %v4489, %v4713
        %v4746 = vmul.f32 %v4490, %v4714
        %v4747 = vmul.f32 %v4491, %v4715
        %v4748 = vmul.f32 %v4492, %v4716
        %v4749 = vmul.f32 %v4493, %v4717
        %v4750 = vmul.f32 %v4494, %v4718
        %v4751 = vmul.f32 %v4495, %v4719
        %v4752 = vmul.f32 %v4496, %v4720
        %v4753 = vmul.f32 %v4497, %v4721
        %v4754 = vmul.f32 %v4498, %v4722
        %v4755 = vmul.f32 %v4499, %v4723
        %v4756 = vmul.f32 %v4500, %v4724
        %v4757 = vmul.f32 %v4501, %v4725
        %v4758 = vmul.f32 %v4502, %v4726
        %v4759 = vmul.f32 %v4503, %v4727
        %v4760 = vmul.f32 %v4504, %v4728
        %v4761 = vmul.f32 %v4505, %v4729
        %v4762 = vmul.f32 %v4506, %v4730
        %v4763 = vmul.f32 %v4507, %v4731
        %v4764 = vmul.f32 %v4508, %v4732
        %v4765 = vmul.f32 %v4509, %v4733
        %v4766 = vmul.f32 %v4510, %v4734
        %v4767 = vmul.f32 %v4511, %v4735
        %v4768 = vmul.f32 %v4512, %v4736
        %v4769 = vmul.f32 %v4513, %v4737
        %v4770 = vmul.f32 %v4514, %v4738
        %v4771 = vmul.f32 %v4515, %v4739
        %v4772 = vmul.f32 %v4516, %v4740
        %v4773 = vmul.f32 %v4517, %v4741
        %v4775 = vlaneseq
        %v4776 = vshrl.u32 %v4775, 7
        %v4777 = vsub.s32 0, %v4776
        %v4778 = vrot.slane %v4356, %v4777
        %v4780 = vmul.f32 %v4742, %v4778
        %v4781 = vmul.f32 %v4743, %v4778
        %v4782 = vmul.f32 %v4744, %v4778
        %v4783 = vmul.f32 %v4745, %v4778
        %v4784 = vmul.f32 %v4746, %v4778
        %v4785 = vmul.f32 %v4747, %v4778
        %v4786 = vmul.f32 %v4748, %v4778
        %v4787 = vmul.f32 %v4749, %v4778
        %v4788 = vmul.f32 %v4750, %v4778
        %v4789 = vmul.f32 %v4751, %v4778
        %v4790 = vmul.f32 %v4752, %v4778
        %v4791 = vmul.f32 %v4753, %v4778
        %v4792 = vmul.f32 %v4754, %v4778
        %v4793 = vmul.f32 %v4755, %v4778
        %v4794 = vmul.f32 %v4756, %v4778
        %v4795 = vmul.f32 %v4757, %v4778
        %v4796 = vmul.f32 %v4758, %v4778
        %v4797 = vmul.f32 %v4759, %v4778
        %v4798 = vmul.f32 %v4760, %v4778
        %v4799 = vmul.f32 %v4761, %v4778
        %v4800 = vmul.f32 %v4762, %v4778
        %v4801 = vmul.f32 %v4763, %v4778
        %v4802 = vmul.f32 %v4764, %v4778
        %v4803 = vmul.f32 %v4765, %v4778
        %v4804 = vmul.f32 %v4766, %v4778
        %v4805 = vmul.f32 %v4767, %v4778
        %v4806 = vmul.f32 %v4768, %v4778
        %v4807 = vmul.f32 %v4769, %v4778
        %v4808 = vmul.f32 %v4770, %v4778
        %v4809 = vmul.f32 %v4771, %v4778
        %v4810 = vmul.f32 %v4772, %v4778
        %v4811 = vmul.f32 %v4773, %v4778
        %v4813 = vlaneseq
        %v4814 = vshrl.u32 %v4813, 7
        %v4815 = vsub.s32 0, %v4814
        %v4816 = vrot.slane %v4357, %v4815
        %v4818 = vadd.f32 %v4780, %v4816
        %v4819 = vadd.f32 %v4781, %v4816
        %v4820 = vadd.f32 %v4782, %v4816
        %v4821 = vadd.f32 %v4783, %v4816
        %v4822 = vadd.f32 %v4784, %v4816
        %v4823 = vadd.f32 %v4785, %v4816
        %v4824 = vadd.f32 %v4786, %v4816
        %v4825 = vadd.f32 %v4787, %v4816
        %v4826 = vadd.f32 %v4788, %v4816
        %v4827 = vadd.f32 %v4789, %v4816
        %v4828 = vadd.f32 %v4790, %v4816
        %v4829 = vadd.f32 %v4791, %v4816
        %v4830 = vadd.f32 %v4792, %v4816
        %v4831 = vadd.f32 %v4793, %v4816
        %v4832 = vadd.f32 %v4794, %v4816
        %v4833 = vadd.f32 %v4795, %v4816
        %v4834 = vadd.f32 %v4796, %v4816
        %v4835 = vadd.f32 %v4797, %v4816
        %v4836 = vadd.f32 %v4798, %v4816
        %v4837 = vadd.f32 %v4799, %v4816
        %v4838 = vadd.f32 %v4800, %v4816
        %v4839 = vadd.f32 %v4801, %v4816
        %v4840 = vadd.f32 %v4802, %v4816
        %v4841 = vadd.f32 %v4803, %v4816
        %v4842 = vadd.f32 %v4804, %v4816
        %v4843 = vadd.f32 %v4805, %v4816
        %v4844 = vadd.f32 %v4806, %v4816
        %v4845 = vadd.f32 %v4807, %v4816
        %v4846 = vadd.f32 %v4808, %v4816
        %v4847 = vadd.f32 %v4809, %v4816
        %v4848 = vadd.f32 %v4810, %v4816
        %v4849 = vadd.f32 %v4811, %v4816
        %v4850 = vpack.c.bf16 %v4819, %v4818
        %v4851 = vpack.c.bf16 %v4821, %v4820
        %v4852 = vpack.c.bf16 %v4823, %v4822
        %v4853 = vpack.c.bf16 %v4825, %v4824
        %v4854 = vpack.c.bf16 %v4827, %v4826
        %v4855 = vpack.c.bf16 %v4829, %v4828
        %v4856 = vpack.c.bf16 %v4831, %v4830
        %v4857 = vpack.c.bf16 %v4833, %v4832
        %v4858 = vpack.c.bf16 %v4835, %v4834
        %v4859 = vpack.c.bf16 %v4837, %v4836
        %v4860 = vpack.c.bf16 %v4839, %v4838
        %v4861 = vpack.c.bf16 %v4841, %v4840
        %v4862 = vpack.c.bf16 %v4843, %v4842
        %v4863 = vpack.c.bf16 %v4845, %v4844
        %v4864 = vpack.c.bf16 %v4847, %v4846
        %v4865 = vpack.c.bf16 %v4849, %v4848
        %v4866 = vld [vmem:[%s10] sm:$0xf]
        %v4867 = vld [vmem:[%s10 + $0x4] sm:$0xf]
        %v4868 = vld [vmem:[%s10 + $0x8] sm:$0xf]
        %v4869 = vld [vmem:[%s10 + $0xc] sm:$0xf]
        %v4870 = vld [vmem:[%s11] sm:$0x1]
        %v4872 = vlaneseq
        %v4873 = vshrl.u32 %v4872, 7
        %v4874 = vsub.s32 0, %v4873
        %v4875 = vrot.slane %v4870, %v4874
        %v4881 = vunpack.c.l.b16 %v4866
        %v4882 = vunpack.c.l.b16 %v4867
        %v4883 = vunpack.c.l.b16 %v4868
        %v4884 = vunpack.c.l.b16 %v4869
        %v4885 = vpack.c.b16 %v4882, %v4881
        %v4886 = vpack.c.b16 %v4884, %v4883
        %v4890 = vsel %vm676, %v4850, 0
        %v4893 = vsel %vm676, %v4851, 0
        %v4896 = vsel %vm676, %v4852, 0
        %v4899 = vsel %vm676, %v4853, 0
        %v4902 = vsel %vm676, %v4854, 0
        %v4905 = vsel %vm676, %v4855, 0
        %v4908 = vsel %vm676, %v4856, 0
        %v4911 = vsel %vm676, %v4857, 0
        %v4914 = vsel %vm676, %v4858, 0
        %v4917 = vsel %vm676, %v4859, 0
        %v4920 = vsel %vm676, %v4860, 0
        %v4923 = vsel %vm676, %v4861, 0
        %v4926 = vsel %vm676, %v4862, 0
        %v4929 = vsel %vm676, %v4863, 0
        %v4932 = vsel %vm676, %v4864, 0
        %v4935 = vsel %vm676, %v4865, 0
        %4937 = vmatprep.subr.bf16.mxu0 0
        %4938 = vmatpush1.bf16.msra.mxu0 %v4885
        %4939 = vmatprep.subr.bf16.mxu0 0
        %4940 = vmatpush1.bf16.msra.mxu0 %v4886
        %4941 = vmatprep.subr.bf16.mxu0 0
        %4942 = vmatpush1.bf16.msra.mxu0 0
        %4943 = vmatprep.subr.bf16.mxu0 0
        %4944 = vmatpush1.bf16.msra.mxu0 0
        %4945 = vmatprep.subr.bf16.mxu0 0
        %4946 = vmatpush1.bf16.msra.mxu0 0
        %4947 = vmatprep.subr.bf16.mxu0 0
        %4948 = vmatpush1.bf16.msra.mxu0 0
        %4949 = vmatprep.subr.bf16.mxu0 0
        %4950 = vmatpush1.bf16.msra.mxu0 0
        %4951 = vmatprep.subr.bf16.mxu0 0
        %4952 = vmatpush1.bf16.msra.mxu0 0
        %4953 = vmatprep.subr.bf16.mxu0 0
        %4954 = vmatpush1.bf16.msra.mxu0 0
        %4955 = vmatprep.subr.bf16.mxu0 0
        %4956 = vmatpush1.bf16.msra.mxu0 0
        %4957 = vmatprep.subr.bf16.mxu0 0
        %4958 = vmatpush1.bf16.msra.mxu0 0
        %4959 = vmatprep.subr.bf16.mxu0 0
        %4960 = vmatpush1.bf16.msra.mxu0 0
        %4961 = vmatprep.subr.bf16.mxu0 0
        %4962 = vmatpush1.bf16.msra.mxu0 0
        %4963 = vmatprep.subr.bf16.mxu0 0
        %4964 = vmatpush1.bf16.msra.mxu0 0
        %4965 = vmatprep.subr.bf16.mxu0 0
        %4966 = vmatpush1.bf16.msra.mxu0 0
        %4967 = vmatprep.subr.bf16.mxu0 0
        %4968 = vmatpush1.bf16.msra.mxu0 0
        %4969 = vmatprep.mubr.bf16.mxu0 0
        %4970 = vmatmul.mubr.bf16.gmra.mrb[0].mxu0 %v4890
        %v4971 = vpop.f32.mrb[0].mxu0
        %v4972 = vadd.f32 %v4875, %v4971
        %v4973 = vpop.f32.mrb[0].mxu0
        %v4974 = vpop.f32.mrb[0].mxu0
        %v4975 = vadd.f32 %v4875, %v4974
        %v4976 = vpop.f32.mrb[0].mxu0
        %4977 = vmatprep.mubr.bf16.mxu0 0
        %4978 = vmatmul.mubr.bf16.gmra.mrb[0].mxu0 %v4893
        %v4979 = vpop.f32.mrb[0].mxu0
        %v4980 = vadd.f32 %v4875, %v4979
        %v4981 = vpop.f32.mrb[0].mxu0
        %v4982 = vpop.f32.mrb[0].mxu0
        %v4983 = vadd.f32 %v4875, %v4982
        %v4984 = vpop.f32.mrb[0].mxu0
        %4985 = vmatprep.mubr.bf16.mxu0 0
        %4986 = vmatmul.mubr.bf16.gmra.mrb[0].mxu0 %v4896
        %v4987 = vpop.f32.mrb[0].mxu0
        %v4988 = vadd.f32 %v4875, %v4987
        %v4989 = vpop.f32.mrb[0].mxu0
        %v4990 = vpop.f32.mrb[0].mxu0
        %v4991 = vadd.f32 %v4875, %v4990
        %v4992 = vpop.f32.mrb[0].mxu0
        %4993 = vmatprep.mubr.bf16.mxu0 0
        %4994 = vmatmul.mubr.bf16.gmra.mrb[0].mxu0 %v4899
        %v4995 = vpop.f32.mrb[0].mxu0
        %v4996 = vadd.f32 %v4875, %v4995
        %v4997 = vpop.f32.mrb[0].mxu0
        %v4998 = vpop.f32.mrb[0].mxu0
        %v4999 = vadd.f32 %v4875, %v4998
        %v5000 = vpop.f32.mrb[0].mxu0
        %5001 = vmatprep.mubr.bf16.mxu0 0
        %5002 = vmatmul.mubr.bf16.gmra.mrb[0].mxu0 %v4902
        %v5003 = vpop.f32.mrb[0].mxu0
        %v5004 = vadd.f32 %v4875, %v5003
        %v5005 = vpop.f32.mrb[0].mxu0
        %v5006 = vpop.f32.mrb[0].mxu0
        %v5007 = vadd.f32 %v4875, %v5006
        %v5008 = vpop.f32.mrb[0].mxu0
        %5009 = vmatprep.mubr.bf16.mxu0 0
        %5010 = vmatmul.mubr.bf16.gmra.mrb[0].mxu0 %v4905
        %v5011 = vpop.f32.mrb[0].mxu0
        %v5012 = vadd.f32 %v4875, %v5011
        %v5013 = vpop.f32.mrb[0].mxu0
        %v5014 = vpop.f32.mrb[0].mxu0
        %v5015 = vadd.f32 %v4875, %v5014
        %v5016 = vpop.f32.mrb[0].mxu0
        %5017 = vmatprep.mubr.bf16.mxu0 0
        %5018 = vmatmul.mubr.bf16.gmra.mrb[0].mxu0 %v4908
        %v5019 = vpop.f32.mrb[0].mxu0
        %v5020 = vadd.f32 %v4875, %v5019
        %v5021 = vpop.f32.mrb[0].mxu0
        %v5022 = vpop.f32.mrb[0].mxu0
        %v5023 = vadd.f32 %v4875, %v5022
        %v5024 = vpop.f32.mrb[0].mxu0
        %5025 = vmatprep.mubr.bf16.mxu0 0
        %5026 = vmatmul.mubr.bf16.gmra.mrb[0].mxu0 %v4911
        %v5027 = vpop.f32.mrb[0].mxu0
        %v5028 = vadd.f32 %v4875, %v5027
        %v5029 = vpop.f32.mrb[0].mxu0
        %v5030 = vpop.f32.mrb[0].mxu0
        %v5031 = vadd.f32 %v4875, %v5030
        %v5032 = vpop.f32.mrb[0].mxu0
        %5033 = vmatprep.mubr.bf16.mxu0 0
        %5034 = vmatmul.mubr.bf16.gmra.mrb[0].mxu0 %v4914
        %v5035 = vpop.f32.mrb[0].mxu0
        %v5036 = vadd.f32 %v4875, %v5035
        %v5037 = vpop.f32.mrb[0].mxu0
        %v5038 = vpop.f32.mrb[0].mxu0
        %v5039 = vadd.f32 %v4875, %v5038
        %v5040 = vpop.f32.mrb[0].mxu0
        %5041 = vmatprep.mubr.bf16.mxu0 0
        %5042 = vmatmul.mubr.bf16.gmra.mrb[0].mxu0 %v4917
        %v5043 = vpop.f32.mrb[0].mxu0
        %v5044 = vadd.f32 %v4875, %v5043
        %v5045 = vpop.f32.mrb[0].mxu0
        %v5046 = vpop.f32.mrb[0].mxu0
        %v5047 = vadd.f32 %v4875, %v5046
        %v5048 = vpop.f32.mrb[0].mxu0
        %5049 = vmatprep.mubr.bf16.mxu0 0
        %5050 = vmatmul.mubr.bf16.gmra.mrb[0].mxu0 %v4920
        %v5051 = vpop.f32.mrb[0].mxu0
        %v5052 = vadd.f32 %v4875, %v5051
        %v5053 = vpop.f32.mrb[0].mxu0
        %v5054 = vpop.f32.mrb[0].mxu0
        %v5055 = vadd.f32 %v4875, %v5054
        %v5056 = vpop.f32.mrb[0].mxu0
        %5057 = vmatprep.mubr.bf16.mxu0 0
        %5058 = vmatmul.mubr.bf16.gmra.mrb[0].mxu0 %v4923
        %v5059 = vpop.f32.mrb[0].mxu0
        %v5060 = vadd.f32 %v4875, %v5059
        %v5061 = vpop.f32.mrb[0].mxu0
        %v5062 = vpop.f32.mrb[0].mxu0
        %v5063 = vadd.f32 %v4875, %v5062
        %v5064 = vpop.f32.mrb[0].mxu0
        %5065 = vmatprep.mubr.bf16.mxu0 0
        %5066 = vmatmul.mubr.bf16.gmra.mrb[0].mxu0 %v4926
        %v5067 = vpop.f32.mrb[0].mxu0
        %v5068 = vadd.f32 %v4875, %v5067
        %v5069 = vpop.f32.mrb[0].mxu0
        %v5070 = vpop.f32.mrb[0].mxu0
        %v5071 = vadd.f32 %v4875, %v5070
        %v5072 = vpop.f32.mrb[0].mxu0
        %5073 = vmatprep.mubr.bf16.mxu0 0
        %5074 = vmatmul.mubr.bf16.gmra.mrb[0].mxu0 %v4929
        %v5075 = vpop.f32.mrb[0].mxu0
        %v5076 = vadd.f32 %v4875, %v5075
        %v5077 = vpop.f32.mrb[0].mxu0
        %v5078 = vpop.f32.mrb[0].mxu0
        %v5079 = vadd.f32 %v4875, %v5078
        %v5080 = vpop.f32.mrb[0].mxu0
        %5081 = vmatprep.mubr.bf16.mxu0 0
        %5082 = vmatmul.mubr.bf16.gmra.mrb[0].mxu0 %v4932
        %v5083 = vpop.f32.mrb[0].mxu0
        %v5084 = vadd.f32 %v4875, %v5083
        %v5085 = vpop.f32.mrb[0].mxu0
        %v5086 = vpop.f32.mrb[0].mxu0
        %v5087 = vadd.f32 %v4875, %v5086
        %v5088 = vpop.f32.mrb[0].mxu0
        %5089 = vmatprep.mubr.bf16.mxu0 0
        %5090 = vmatmul.mubr.bf16.gmra.mrb[0].mxu0 %v4935
        %v5091 = vpop.f32.mrb[0].mxu0
        %v5092 = vadd.f32 %v4875, %v5091
        %v5093 = vpop.f32.mrb[0].mxu0
        %v5094 = vpop.f32.mrb[0].mxu0
        %v5095 = vadd.f32 %v4875, %v5094
        %v5096 = vpop.f32.mrb[0].mxu0
        %5097 = vdwg.mxu0
        %v5098 = vmul.f32 %v4972, 0.5
        %v5099 = vmul.f32 %v4975, 0.5
        %v5100 = vmul.f32 %v4980, 0.5
        %v5101 = vmul.f32 %v4983, 0.5
        %v5102 = vmul.f32 %v4988, 0.5
        %v5103 = vmul.f32 %v4991, 0.5
        %v5104 = vmul.f32 %v4996, 0.5
        %v5105 = vmul.f32 %v4999, 0.5
        %v5106 = vmul.f32 %v5004, 0.5
        %v5107 = vmul.f32 %v5007, 0.5
        %v5108 = vmul.f32 %v5012, 0.5
        %v5109 = vmul.f32 %v5015, 0.5
        %v5110 = vmul.f32 %v5020, 0.5
        %v5111 = vmul.f32 %v5023, 0.5
        %v5112 = vmul.f32 %v5028, 0.5
        %v5113 = vmul.f32 %v5031, 0.5
        %v5114 = vmul.f32 %v5036, 0.5
        %v5115 = vmul.f32 %v5039, 0.5
        %v5116 = vmul.f32 %v5044, 0.5
        %v5117 = vmul.f32 %v5047, 0.5
        %v5118 = vmul.f32 %v5052, 0.5
        %v5119 = vmul.f32 %v5055, 0.5
        %v5120 = vmul.f32 %v5060, 0.5
        %v5121 = vmul.f32 %v5063, 0.5
        %v5122 = vmul.f32 %v5068, 0.5
        %v5123 = vmul.f32 %v5071, 0.5
        %v5124 = vmul.f32 %v5076, 0.5
        %v5125 = vmul.f32 %v5079, 0.5
        %v5126 = vmul.f32 %v5084, 0.5
        %v5127 = vmul.f32 %v5087, 0.5
        %v5128 = vmul.f32 %v5092, 0.5
        %v5129 = vmul.f32 %v5095, 0.5
        %v5130 = vmul.f32 %v4972, 0.70710677
        %v5131 = vmul.f32 %v4975, 0.70710677
        %v5132 = vmul.f32 %v4980, 0.70710677
        %v5133 = vmul.f32 %v4983, 0.70710677
        %v5134 = vmul.f32 %v4988, 0.70710677
        %v5135 = vmul.f32 %v4991, 0.70710677
        %v5136 = vmul.f32 %v4996, 0.70710677
        %v5137 = vmul.f32 %v4999, 0.70710677
        %v5138 = vmul.f32 %v5004, 0.70710677
        %v5139 = vmul.f32 %v5007, 0.70710677
        %v5140 = vmul.f32 %v5012, 0.70710677
        %v5141 = vmul.f32 %v5015, 0.70710677
        %v5142 = vmul.f32 %v5020, 0.70710677
        %v5143 = vmul.f32 %v5023, 0.70710677
        %v5144 = vmul.f32 %v5028, 0.70710677
        %v5145 = vmul.f32 %v5031, 0.70710677
        %v5146 = vmul.f32 %v5036, 0.70710677
        %v5147 = vmul.f32 %v5039, 0.70710677
        %v5148 = vmul.f32 %v5044, 0.70710677
        %v5149 = vmul.f32 %v5047, 0.70710677
        %v5150 = vmul.f32 %v5052, 0.70710677
        %v5151 = vmul.f32 %v5055, 0.70710677
        %v5152 = vmul.f32 %v5060, 0.70710677
        %v5153 = vmul.f32 %v5063, 0.70710677
        %v5154 = vmul.f32 %v5068, 0.70710677
        %v5155 = vmul.f32 %v5071, 0.70710677
        %v5156 = vmul.f32 %v5076, 0.70710677
        %v5157 = vmul.f32 %v5079, 0.70710677
        %v5158 = vmul.f32 %v5084, 0.70710677
        %v5159 = vmul.f32 %v5087, 0.70710677
        %v5160 = vmul.f32 %v5092, 0.70710677
        %v5161 = vmul.f32 %v5095, 0.70710677
        %v5162 = verf.f32.pop %v5130
        %v5163 = verf.f32.pop %v5131
        %v5164 = verf.f32.pop %v5132
        %v5165 = verf.f32.pop %v5133
        %v5166 = verf.f32.pop %v5134
        %v5167 = verf.f32.pop %v5135
        %v5168 = verf.f32.pop %v5136
        %v5169 = verf.f32.pop %v5137
        %v5170 = verf.f32.pop %v5138
        %v5171 = verf.f32.pop %v5139
        %v5172 = verf.f32.pop %v5140
        %v5173 = verf.f32.pop %v5141
        %v5174 = verf.f32.pop %v5142
        %v5175 = verf.f32.pop %v5143
        %v5176 = verf.f32.pop %v5144
        %v5177 = verf.f32.pop %v5145
        %v5178 = verf.f32.pop %v5146
        %v5179 = verf.f32.pop %v5147
        %v5180 = verf.f32.pop %v5148
        %v5181 = verf.f32.pop %v5149
        %v5182 = verf.f32.pop %v5150
        %v5183 = verf.f32.pop %v5151
        %v5184 = verf.f32.pop %v5152
        %v5185 = verf.f32.pop %v5153
        %v5186 = verf.f32.pop %v5154
        %v5187 = verf.f32.pop %v5155
        %v5188 = verf.f32.pop %v5156
        %v5189 = verf.f32.pop %v5157
        %v5190 = verf.f32.pop %v5158
        %v5191 = verf.f32.pop %v5159
        %v5192 = verf.f32.pop %v5160
        %v5193 = verf.f32.pop %v5161
        %v5194 = vadd.f32 %v5162, 1.0
        %v5195 = vadd.f32 %v5163, 1.0
        %v5196 = vadd.f32 %v5164, 1.0
        %v5197 = vadd.f32 %v5165, 1.0
        %v5198 = vadd.f32 %v5166, 1.0
        %v5199 = vadd.f32 %v5167, 1.0
        %v5200 = vadd.f32 %v5168, 1.0
        %v5201 = vadd.f32 %v5169, 1.0
        %v5202 = vadd.f32 %v5170, 1.0
        %v5203 = vadd.f32 %v5171, 1.0
        %v5204 = vadd.f32 %v5172, 1.0
        %v5205 = vadd.f32 %v5173, 1.0
        %v5206 = vadd.f32 %v5174, 1.0
        %v5207 = vadd.f32 %v5175, 1.0
        %v5208 = vadd.f32 %v5176, 1.0
        %v5209 = vadd.f32 %v5177, 1.0
        %v5210 = vadd.f32 %v5178, 1.0
        %v5211 = vadd.f32 %v5179, 1.0
        %v5212 = vadd.f32 %v5180, 1.0
        %v5213 = vadd.f32 %v5181, 1.0
        %v5214 = vadd.f32 %v5182, 1.0
        %v5215 = vadd.f32 %v5183, 1.0
        %v5216 = vadd.f32 %v5184, 1.0
        %v5217 = vadd.f32 %v5185, 1.0
        %v5218 = vadd.f32 %v5186, 1.0
        %v5219 = vadd.f32 %v5187, 1.0
        %v5220 = vadd.f32 %v5188, 1.0
        %v5221 = vadd.f32 %v5189, 1.0
        %v5222 = vadd.f32 %v5190, 1.0
        %v5223 = vadd.f32 %v5191, 1.0
        %v5224 = vadd.f32 %v5192, 1.0
        %v5225 = vadd.f32 %v5193, 1.0
        %v5226 = vmul.f32 %v5098, %v5194
        %v5227 = vmul.f32 %v5099, %v5195
        %v5228 = vmul.f32 %v5100, %v5196
        %v5229 = vmul.f32 %v5101, %v5197
        %v5230 = vmul.f32 %v5102, %v5198
        %v5231 = vmul.f32 %v5103, %v5199
        %v5232 = vmul.f32 %v5104, %v5200
        %v5233 = vmul.f32 %v5105, %v5201
        %v5234 = vmul.f32 %v5106, %v5202
        %v5235 = vmul.f32 %v5107, %v5203
        %v5236 = vmul.f32 %v5108, %v5204
        %v5237 = vmul.f32 %v5109, %v5205
        %v5238 = vmul.f32 %v5110, %v5206
        %v5239 = vmul.f32 %v5111, %v5207
        %v5240 = vmul.f32 %v5112, %v5208
        %v5241 = vmul.f32 %v5113, %v5209
        %v5242 = vmul.f32 %v5114, %v5210
        %v5243 = vmul.f32 %v5115, %v5211
        %v5244 = vmul.f32 %v5116, %v5212
        %v5245 = vmul.f32 %v5117, %v5213
        %v5246 = vmul.f32 %v5118, %v5214
        %v5247 = vmul.f32 %v5119, %v5215
        %v5248 = vmul.f32 %v5120, %v5216
        %v5249 = vmul.f32 %v5121, %v5217
        %v5250 = vmul.f32 %v5122, %v5218
        %v5251 = vmul.f32 %v5123, %v5219
        %v5252 = vmul.f32 %v5124, %v5220
        %v5253 = vmul.f32 %v5125, %v5221
        %v5254 = vmul.f32 %v5126, %v5222
        %v5255 = vmul.f32 %v5127, %v5223
        %v5256 = vmul.f32 %v5128, %v5224
        %v5257 = vmul.f32 %v5129, %v5225
        %v5258 = vpack.c.bf16 %v5227, %v5226
        %v5259 = vpack.c.bf16 %v5229, %v5228
        %v5260 = vpack.c.bf16 %v5231, %v5230
        %v5261 = vpack.c.bf16 %v5233, %v5232
        %v5262 = vpack.c.bf16 %v5235, %v5234
        %v5263 = vpack.c.bf16 %v5237, %v5236
        %v5264 = vpack.c.bf16 %v5239, %v5238
        %v5265 = vpack.c.bf16 %v5241, %v5240
        %v5266 = vpack.c.bf16 %v5243, %v5242
        %v5267 = vpack.c.bf16 %v5245, %v5244
        %v5268 = vpack.c.bf16 %v5247, %v5246
        %v5269 = vpack.c.bf16 %v5249, %v5248
        %v5270 = vpack.c.bf16 %v5251, %v5250
        %v5271 = vpack.c.bf16 %v5253, %v5252
        %v5272 = vpack.c.bf16 %v5255, %v5254
        %v5273 = vpack.c.bf16 %v5257, %v5256
        %v5274 = vld [vmem:[%s12] sm:$0xf]
        %v5275 = vld [vmem:[%s12 + $0x4] sm:$0xf]
        %v5276 = vld [vmem:[%s12 + $0x8] sm:$0xf]
        %v5277 = vld [vmem:[%s12 + $0xc] sm:$0xf]
        %v5278 = vld [vmem:[%s12 + $0x10] sm:$0xf]
        %v5279 = vld [vmem:[%s12 + $0x14] sm:$0xf]
        %v5280 = vld [vmem:[%s12 + $0x18] sm:$0xf]
        %v5281 = vld [vmem:[%s12 + $0x1c] sm:$0xf]
        %v5282 = vld [vmem:[%s12 + $0x20] sm:$0xf]
        %v5283 = vld [vmem:[%s12 + $0x24] sm:$0xf]
        %v5284 = vld [vmem:[%s12 + $0x28] sm:$0xf]
        %v5285 = vld [vmem:[%s12 + $0x2c] sm:$0xf]
        %v5286 = vld [vmem:[%s12 + $0x30] sm:$0xf]
        %v5287 = vld [vmem:[%s12 + $0x34] sm:$0xf]
        %v5288 = vld [vmem:[%s12 + $0x38] sm:$0xf]
        %v5289 = vld [vmem:[%s12 + $0x3c] sm:$0xf]
        %v5290 = vld [vmem:[%s13] sm:$0x1]
        %v5292 = vlaneseq
        %v5293 = vshrl.u32 %v5292, 7
        %v5294 = vsub.s32 0, %v5293
        %v5295 = vrot.slane %v5290, %v5294
        %v5313 = vunpack.c.l.b16 %v5274
        %v5314 = vunpack.c.l.b16 %v5275
        %v5315 = vunpack.c.l.b16 %v5276
        %v5316 = vunpack.c.l.b16 %v5277
        %v5317 = vunpack.c.l.b16 %v5278
        %v5318 = vunpack.c.l.b16 %v5279
        %v5319 = vunpack.c.l.b16 %v5280
        %v5320 = vunpack.c.l.b16 %v5281
        %v5321 = vunpack.c.l.b16 %v5282
        %v5322 = vunpack.c.l.b16 %v5283
        %v5323 = vunpack.c.l.b16 %v5284
        %v5324 = vunpack.c.l.b16 %v5285
        %v5325 = vunpack.c.l.b16 %v5286
        %v5326 = vunpack.c.l.b16 %v5287
        %v5327 = vunpack.c.l.b16 %v5288
        %v5328 = vunpack.c.l.b16 %v5289
        %v5329 = vpack.c.b16 %v5314, %v5313
        %v5330 = vpack.c.b16 %v5316, %v5315
        %v5331 = vpack.c.b16 %v5318, %v5317
        %v5332 = vpack.c.b16 %v5320, %v5319
        %v5333 = vpack.c.b16 %v5322, %v5321
        %v5334 = vpack.c.b16 %v5324, %v5323
        %v5335 = vpack.c.b16 %v5326, %v5325
        %v5336 = vpack.c.b16 %v5328, %v5327
        %5345 = vmatprep.subr.bf16.mxu0 0
        %5346 = vmatpush1.bf16.msra.mxu0 %v5329
        %5347 = vmatprep.subr.bf16.mxu0 0
        %5348 = vmatpush1.bf16.msra.mxu0 %v5330
        %5349 = vmatprep.subr.bf16.mxu0 0
        %5350 = vmatpush1.bf16.msra.mxu0 %v5331
        %5351 = vmatprep.subr.bf16.mxu0 0
        %5352 = vmatpush1.bf16.msra.mxu0 %v5332
        %5353 = vmatprep.subr.bf16.mxu0 0
        %5354 = vmatpush1.bf16.msra.mxu0 %v5333
        %5355 = vmatprep.subr.bf16.mxu0 0
        %5356 = vmatpush1.bf16.msra.mxu0 %v5334
        %5357 = vmatprep.subr.bf16.mxu0 0
        %5358 = vmatpush1.bf16.msra.mxu0 %v5335
        %5359 = vmatprep.subr.bf16.mxu0 0
        %5360 = vmatpush1.bf16.msra.mxu0 %v5336
        %5361 = vmatprep.subr.bf16.mxu0 0
        %5362 = vmatpush1.bf16.msra.mxu0 0
        %5363 = vmatprep.subr.bf16.mxu0 0
        %5364 = vmatpush1.bf16.msra.mxu0 0
        %5365 = vmatprep.subr.bf16.mxu0 0
        %5366 = vmatpush1.bf16.msra.mxu0 0
        %5367 = vmatprep.subr.bf16.mxu0 0
        %5368 = vmatpush1.bf16.msra.mxu0 0
        %5369 = vmatprep.subr.bf16.mxu0 0
        %5370 = vmatpush1.bf16.msra.mxu0 0
        %5371 = vmatprep.subr.bf16.mxu0 0
        %5372 = vmatpush1.bf16.msra.mxu0 0
        %5373 = vmatprep.subr.bf16.mxu0 0
        %5374 = vmatpush1.bf16.msra.mxu0 0
        %5375 = vmatprep.subr.bf16.mxu0 0
        %5376 = vmatpush1.bf16.msra.mxu0 0
        %5377 = vmatprep.mubr.bf16.mxu0 0
        %5378 = vmatmul.mubr.bf16.gmra.mrb[0].mxu0 %v5258
        %v5379 = vpop.f32.mrb[0].mxu0
        %v5380 = vadd.f32 %v5295, %v5379
        %v5381 = vpop.f32.mrb[0].mxu0
        %v5382 = vpop.f32.mrb[0].mxu0
        %v5383 = vadd.f32 %v5295, %v5382
        %v5384 = vpop.f32.mrb[0].mxu0
        %5385 = vmatprep.mubr.bf16.mxu0 0
        %5386 = vmatmul.mubr.bf16.gmra.mrb[0].mxu0 %v5259
        %v5387 = vpop.f32.mrb[0].mxu0
        %v5388 = vadd.f32 %v5295, %v5387
        %v5389 = vpop.f32.mrb[0].mxu0
        %v5390 = vpop.f32.mrb[0].mxu0
        %v5391 = vadd.f32 %v5295, %v5390
        %v5392 = vpop.f32.mrb[0].mxu0
        %5393 = vmatprep.mubr.bf16.mxu0 0
        %5394 = vmatmul.mubr.bf16.gmra.mrb[0].mxu0 %v5260
        %v5395 = vpop.f32.mrb[0].mxu0
        %v5396 = vadd.f32 %v5295, %v5395
        %v5397 = vpop.f32.mrb[0].mxu0
        %v5398 = vpop.f32.mrb[0].mxu0
        %v5399 = vadd.f32 %v5295, %v5398
        %v5400 = vpop.f32.mrb[0].mxu0
        %5401 = vmatprep.mubr.bf16.mxu0 0
        %5402 = vmatmul.mubr.bf16.gmra.mrb[0].mxu0 %v5261
        %v5403 = vpop.f32.mrb[0].mxu0
        %v5404 = vadd.f32 %v5295, %v5403
        %v5405 = vpop.f32.mrb[0].mxu0
        %v5406 = vpop.f32.mrb[0].mxu0
        %v5407 = vadd.f32 %v5295, %v5406
        %v5408 = vpop.f32.mrb[0].mxu0
        %5409 = vmatprep.mubr.bf16.mxu0 0
        %5410 = vmatmul.mubr.bf16.gmra.mrb[0].mxu0 %v5262
        %v5411 = vpop.f32.mrb[0].mxu0
        %v5412 = vadd.f32 %v5295, %v5411
        %v5413 = vpop.f32.mrb[0].mxu0
        %v5414 = vpop.f32.mrb[0].mxu0
        %v5415 = vadd.f32 %v5295, %v5414
        %v5416 = vpop.f32.mrb[0].mxu0
        %5417 = vmatprep.mubr.bf16.mxu0 0
        %5418 = vmatmul.mubr.bf16.gmra.mrb[0].mxu0 %v5263
        %v5419 = vpop.f32.mrb[0].mxu0
        %v5420 = vadd.f32 %v5295, %v5419
        %v5421 = vpop.f32.mrb[0].mxu0
        %v5422 = vpop.f32.mrb[0].mxu0
        %v5423 = vadd.f32 %v5295, %v5422
        %v5424 = vpop.f32.mrb[0].mxu0
        %5425 = vmatprep.mubr.bf16.mxu0 0
        %5426 = vmatmul.mubr.bf16.gmra.mrb[0].mxu0 %v5264
        %v5427 = vpop.f32.mrb[0].mxu0
        %v5428 = vadd.f32 %v5295, %v5427
        %v5429 = vpop.f32.mrb[0].mxu0
        %v5430 = vpop.f32.mrb[0].mxu0
        %v5431 = vadd.f32 %v5295, %v5430
        %v5432 = vpop.f32.mrb[0].mxu0
        %5433 = vmatprep.mubr.bf16.mxu0 0
        %5434 = vmatmul.mubr.bf16.gmra.mrb[0].mxu0 %v5265
        %v5435 = vpop.f32.mrb[0].mxu0
        %v5436 = vadd.f32 %v5295, %v5435
        %v5437 = vpop.f32.mrb[0].mxu0
        %v5438 = vpop.f32.mrb[0].mxu0
        %v5439 = vadd.f32 %v5295, %v5438
        %v5440 = vpop.f32.mrb[0].mxu0
        %5441 = vmatprep.mubr.bf16.mxu0 0
        %5442 = vmatmul.mubr.bf16.gmra.mrb[0].mxu0 %v5266
        %v5443 = vpop.f32.mrb[0].mxu0
        %v5444 = vadd.f32 %v5295, %v5443
        %v5445 = vpop.f32.mrb[0].mxu0
        %v5446 = vpop.f32.mrb[0].mxu0
        %v5447 = vadd.f32 %v5295, %v5446
        %v5448 = vpop.f32.mrb[0].mxu0
        %5449 = vmatprep.mubr.bf16.mxu0 0
        %5450 = vmatmul.mubr.bf16.gmra.mrb[0].mxu0 %v5267
        %v5451 = vpop.f32.mrb[0].mxu0
        %v5452 = vadd.f32 %v5295, %v5451
        %v5453 = vpop.f32.mrb[0].mxu0
        %v5454 = vpop.f32.mrb[0].mxu0
        %v5455 = vadd.f32 %v5295, %v5454
        %v5456 = vpop.f32.mrb[0].mxu0
        %5457 = vmatprep.mubr.bf16.mxu0 0
        %5458 = vmatmul.mubr.bf16.gmra.mrb[0].mxu0 %v5268
        %v5459 = vpop.f32.mrb[0].mxu0
        %v5460 = vadd.f32 %v5295, %v5459
        %v5461 = vpop.f32.mrb[0].mxu0
        %v5462 = vpop.f32.mrb[0].mxu0
        %v5463 = vadd.f32 %v5295, %v5462
        %v5464 = vpop.f32.mrb[0].mxu0
        %5465 = vmatprep.mubr.bf16.mxu0 0
        %5466 = vmatmul.mubr.bf16.gmra.mrb[0].mxu0 %v5269
        %v5467 = vpop.f32.mrb[0].mxu0
        %v5468 = vadd.f32 %v5295, %v5467
        %v5469 = vpop.f32.mrb[0].mxu0
        %v5470 = vpop.f32.mrb[0].mxu0
        %v5471 = vadd.f32 %v5295, %v5470
        %v5472 = vpop.f32.mrb[0].mxu0
        %5473 = vmatprep.mubr.bf16.mxu0 0
        %5474 = vmatmul.mubr.bf16.gmra.mrb[0].mxu0 %v5270
        %v5475 = vpop.f32.mrb[0].mxu0
        %v5476 = vadd.f32 %v5295, %v5475
        %v5477 = vpop.f32.mrb[0].mxu0
        %v5478 = vpop.f32.mrb[0].mxu0
        %v5479 = vadd.f32 %v5295, %v5478
        %v5480 = vpop.f32.mrb[0].mxu0
        %5481 = vmatprep.mubr.bf16.mxu0 0
        %5482 = vmatmul.mubr.bf16.gmra.mrb[0].mxu0 %v5271
        %v5483 = vpop.f32.mrb[0].mxu0
        %v5484 = vadd.f32 %v5295, %v5483
        %v5485 = vpop.f32.mrb[0].mxu0
        %v5486 = vpop.f32.mrb[0].mxu0
        %v5487 = vadd.f32 %v5295, %v5486
        %v5488 = vpop.f32.mrb[0].mxu0
        %5489 = vmatprep.mubr.bf16.mxu0 0
        %5490 = vmatmul.mubr.bf16.gmra.mrb[0].mxu0 %v5272
        %v5491 = vpop.f32.mrb[0].mxu0
        %v5492 = vadd.f32 %v5295, %v5491
        %v5493 = vpop.f32.mrb[0].mxu0
        %v5494 = vpop.f32.mrb[0].mxu0
        %v5495 = vadd.f32 %v5295, %v5494
        %v5496 = vpop.f32.mrb[0].mxu0
        %5497 = vmatprep.mubr.bf16.mxu0 0
        %5498 = vmatmul.mubr.bf16.gmra.mrb[0].mxu0 %v5273
        %v5499 = vpop.f32.mrb[0].mxu0
        %v5500 = vadd.f32 %v5295, %v5499
        %v5501 = vpop.f32.mrb[0].mxu0
        %v5502 = vpop.f32.mrb[0].mxu0
        %v5503 = vadd.f32 %v5295, %v5502
        %v5504 = vpop.f32.mrb[0].mxu0
        %5505 = vdwg.mxu0
        %v5506 = vadd.f32 %v4324, %v5380
        %v5507 = vadd.f32 %v4325, %v5383
        %v5508 = vadd.f32 %v4326, %v5388
        %v5509 = vadd.f32 %v4327, %v5391
        %v5510 = vadd.f32 %v4328, %v5396
        %v5511 = vadd.f32 %v4329, %v5399
        %v5512 = vadd.f32 %v4330, %v5404
        %v5513 = vadd.f32 %v4331, %v5407
        %v5514 = vadd.f32 %v4332, %v5412
        %v5515 = vadd.f32 %v4333, %v5415
        %v5516 = vadd.f32 %v4334, %v5420
        %v5517 = vadd.f32 %v4335, %v5423
        %v5518 = vadd.f32 %v4336, %v5428
        %v5519 = vadd.f32 %v4337, %v5431
        %v5520 = vadd.f32 %v4338, %v5436
        %v5521 = vadd.f32 %v4339, %v5439
        %v5522 = vadd.f32 %v4340, %v5444
        %v5523 = vadd.f32 %v4341, %v5447
        %v5524 = vadd.f32 %v4342, %v5452
        %v5525 = vadd.f32 %v4343, %v5455
        %v5526 = vadd.f32 %v4344, %v5460
        %v5527 = vadd.f32 %v4345, %v5463
        %v5528 = vadd.f32 %v4346, %v5468
        %v5529 = vadd.f32 %v4347, %v5471
        %v5530 = vadd.f32 %v4348, %v5476
        %v5531 = vadd.f32 %v4349, %v5479
        %v5532 = vadd.f32 %v4350, %v5484
        %v5533 = vadd.f32 %v4351, %v5487
        %v5534 = vadd.f32 %v4352, %v5492
        %v5535 = vadd.f32 %v4353, %v5495
        %v5536 = vadd.f32 %v4354, %v5500
        %v5537 = vadd.f32 %v4355, %v5503
        %5538 = vst.msk [vmem:[%s638] sm:$0xff] %vm676, %v5506
        %5539 = vst.msk [vmem:[%s638 + $0x8] sm:$0xff] %vm676, %v5507
        %5540 = vst.msk [vmem:[%s638 + $0x10] sm:$0xff] %vm676, %v5508
        %5541 = vst.msk [vmem:[%s638 + $0x18] sm:$0xff] %vm676, %v5509
        %5542 = vst.msk [vmem:[%s638 + $0x20] sm:$0xff] %vm676, %v5510
        %5543 = vst.msk [vmem:[%s638 + $0x28] sm:$0xff] %vm676, %v5511
        %5544 = vst.msk [vmem:[%s638 + $0x30] sm:$0xff] %vm676, %v5512
        %5545 = vst.msk [vmem:[%s638 + $0x38] sm:$0xff] %vm676, %v5513
        %5546 = vst.msk [vmem:[%s638 + $0x40] sm:$0xff] %vm676, %v5514
        %5547 = vst.msk [vmem:[%s638 + $0x48] sm:$0xff] %vm676, %v5515
        %5548 = vst.msk [vmem:[%s638 + $0x50] sm:$0xff] %vm676, %v5516
        %5549 = vst.msk [vmem:[%s638 + $0x58] sm:$0xff] %vm676, %v5517
        %5550 = vst.msk [vmem:[%s638 + $0x60] sm:$0xff] %vm676, %v5518
        %5551 = vst.msk [vmem:[%s638 + $0x68] sm:$0xff] %vm676, %v5519
        %5552 = vst.msk [vmem:[%s638 + $0x70] sm:$0xff] %vm676, %v5520
        %5553 = vst.msk [vmem:[%s638 + $0x78] sm:$0xff] %vm676, %v5521
        %5554 = vst.msk [vmem:[%s638 + $0x80] sm:$0xff] %vm676, %v5522
        %5555 = vst.msk [vmem:[%s638 + $0x88] sm:$0xff] %vm676, %v5523
        %5556 = vst.msk [vmem:[%s638 + $0x90] sm:$0xff] %vm676, %v5524
        %5557 = vst.msk [vmem:[%s638 + $0x98] sm:$0xff] %vm676, %v5525
        %5558 = vst.msk [vmem:[%s638 + $0xa0] sm:$0xff] %vm676, %v5526
        %5559 = vst.msk [vmem:[%s638 + $0xa8] sm:$0xff] %vm676, %v5527
        %5560 = vst.msk [vmem:[%s638 + $0xb0] sm:$0xff] %vm676, %v5528
        %5561 = vst.msk [vmem:[%s638 + $0xb8] sm:$0xff] %vm676, %v5529
        %5562 = vst.msk [vmem:[%s638 + $0xc0] sm:$0xff] %vm676, %v5530
        %5563 = vst.msk [vmem:[%s638 + $0xc8] sm:$0xff] %vm676, %v5531
        %5564 = vst.msk [vmem:[%s638 + $0xd0] sm:$0xff] %vm676, %v5532
        %5565 = vst.msk [vmem:[%s638 + $0xd8] sm:$0xff] %vm676, %v5533
        %5566 = vst.msk [vmem:[%s638 + $0xe0] sm:$0xff] %vm676, %v5534
        %5567 = vst.msk [vmem:[%s638 + $0xe8] sm:$0xff] %vm676, %v5535
        %5568 = vst.msk [vmem:[%s638 + $0xf0] sm:$0xff] %vm676, %v5536
        %5569 = vst.msk [vmem:[%s638 + $0xf8] sm:$0xff] %vm676, %v5537
        %s5570 = sand.u32 %s348, 1
        %s5571 = sand.u32 %s348, 1
        %s5572 = smul.addr %s5571, 256
        %s5573 = scalar_lea.vmem [#allocation3], %s5572
        // Predicated region
        $region115: #{swin_block_forward.1} parent=109 // pred_check
          %p5574 = pneg %p358
        $region116: #{swin_block_forward.1} parent=109 // pred_check_branch
          %5576 = sbr.rel (%p5574) target = $region118
        $region117: #{swin_block_forward.1} parent=109 // pred_region
          %s5577 = smul.u32 4, %s29
          %s5578 = smul.addr %s5577, 16
          %s5579 = sadd.s32 %s30, %s5578
          %s5580 = smul.addr %s5579, 8
          %s5581 = scalar_lea.vmem %s14, %s5580
          // Predicated region
          $region119: #{swin_block_forward.1} parent=117 // pred_check
            _
          $region120: #{swin_block_forward.1} parent=117 // pred_check_branch
            %5583 = sbr.rel (0) target = $region122
          $region121: #{swin_block_forward.1} parent=117 // pred_region
            // Predicated region
            $region123: #{swin_block_forward.1} parent=121 // pred_check
              _
            $region124: #{swin_block_forward.1} parent=121 // pred_check_branch
              %5585 = sbr.rel (0) target = $region126
            $region125: #{swin_block_forward.1} parent=121 // pred_region
              // Predicated region
              $region138: #{swin_block_forward.1} parent=125 // pred_check
                _
              $region139: #{swin_block_forward.1} parent=125 // pred_check_branch
                %5662 = sbr.rel (0) target = $region141
              $region140: #{swin_block_forward.1} parent=125 // pred_region
                loop: start=0, step=1, limit=1
                $region142: #{swin_block_forward.1} parent=140 // loop_pre_header
                  _
                $region143: #{swin_block_forward.1} parent=140 // loop_header
                  %s5664 = sphi 0, %s5668
                  %p5665 = scmp.ge.s32.totalorder %s5664, 1
                  %s5669 = sphi %s5573, %s5573
                  %s5670 = sphi %s5581, %s5581
                $region144: #{swin_block_forward.1} parent=140 // loop_header_branch
                  %5667 = sbr.rel (%p5665) target = $region148
                $region145: #{swin_block_forward.1} parent=140 // loop_body
                  %v5671 = vld [vmem:[%s5669] sm:$0xff]
                  %5672 = vst [vmem:[%s5670] sm:$0xff] %v5671
                  %v5673 = vld [vmem:[%s5669 + $0x8] sm:$0xff]
                  %5674 = vst [vmem:[%s5670 + $0x10] sm:$0xff] %v5673
                  %v5675 = vld [vmem:[%s5669 + $0x10] sm:$0xff]
                  %5676 = vst [vmem:[%s5670 + $0x20] sm:$0xff] %v5675
                  %v5677 = vld [vmem:[%s5669 + $0x18] sm:$0xff]
                  %5678 = vst [vmem:[%s5670 + $0x30] sm:$0xff] %v5677
                  %v5679 = vld [vmem:[%s5669 + $0x20] sm:$0xff]
                  %5680 = vst [vmem:[%s5670 + $0x40] sm:$0xff] %v5679
                  %v5681 = vld [vmem:[%s5669 + $0x28] sm:$0xff]
                  %5682 = vst [vmem:[%s5670 + $0x50] sm:$0xff] %v5681
                  %v5683 = vld [vmem:[%s5669 + $0x30] sm:$0xff]
                  %5684 = vst [vmem:[%s5670 + $0x60] sm:$0xff] %v5683
                  %v5685 = vld [vmem:[%s5669 + $0x38] sm:$0xff]
                  %5686 = vst [vmem:[%s5670 + $0x70] sm:$0xff] %v5685
                  %v5687 = vld [vmem:[%s5669 + $0x40] sm:$0xff]
                  %5688 = vst [vmem:[%s5670 + $0x80] sm:$0xff] %v5687
                  %v5689 = vld [vmem:[%s5669 + $0x48] sm:$0xff]
                  %5690 = vst [vmem:[%s5670 + $0x90] sm:$0xff] %v5689
                  %v5691 = vld [vmem:[%s5669 + $0x50] sm:$0xff]
                  %5692 = vst [vmem:[%s5670 + $0xa0] sm:$0xff] %v5691
                  %v5693 = vld [vmem:[%s5669 + $0x58] sm:$0xff]
                  %5694 = vst [vmem:[%s5670 + $0xb0] sm:$0xff] %v5693
                  %v5695 = vld [vmem:[%s5669 + $0x60] sm:$0xff]
                  %5696 = vst [vmem:[%s5670 + $0xc0] sm:$0xff] %v5695
                  %v5697 = vld [vmem:[%s5669 + $0x68] sm:$0xff]
                  %5698 = vst [vmem:[%s5670 + $0xd0] sm:$0xff] %v5697
                  %v5699 = vld [vmem:[%s5669 + $0x70] sm:$0xff]
                  %5700 = vst [vmem:[%s5670 + $0xe0] sm:$0xff] %v5699
                  %v5701 = vld [vmem:[%s5669 + $0x78] sm:$0xff]
                  %5702 = vst [vmem:[%s5670 + $0xf0] sm:$0xff] %v5701
                  %v5703 = vld [vmem:[%s5669 + $0x80] sm:$0xff]
                  %5704 = vst [vmem:[%s5670 + $0x100] sm:$0xff] %v5703
                  %v5705 = vld [vmem:[%s5669 + $0x88] sm:$0xff]
                  %5706 = vst [vmem:[%s5670 + $0x110] sm:$0xff] %v5705
                  %v5707 = vld [vmem:[%s5669 + $0x90] sm:$0xff]
                  %5708 = vst [vmem:[%s5670 + $0x120] sm:$0xff] %v5707
                  %v5709 = vld [vmem:[%s5669 + $0x98] sm:$0xff]
                  %5710 = vst [vmem:[%s5670 + $0x130] sm:$0xff] %v5709
                  %v5711 = vld [vmem:[%s5669 + $0xa0] sm:$0xff]
                  %5712 = vst [vmem:[%s5670 + $0x140] sm:$0xff] %v5711
                  %v5713 = vld [vmem:[%s5669 + $0xa8] sm:$0xff]
                  %5714 = vst [vmem:[%s5670 + $0x150] sm:$0xff] %v5713
                  %v5715 = vld [vmem:[%s5669 + $0xb0] sm:$0xff]
                  %5716 = vst [vmem:[%s5670 + $0x160] sm:$0xff] %v5715
                  %v5717 = vld [vmem:[%s5669 + $0xb8] sm:$0xff]
                  %5718 = vst [vmem:[%s5670 + $0x170] sm:$0xff] %v5717
                  %v5719 = vld [vmem:[%s5669 + $0xc0] sm:$0xff]
                  %5720 = vst [vmem:[%s5670 + $0x180] sm:$0xff] %v5719
                  %v5721 = vld [vmem:[%s5669 + $0xc8] sm:$0xff]
                  %5722 = vst [vmem:[%s5670 + $0x190] sm:$0xff] %v5721
                  %v5723 = vld [vmem:[%s5669 + $0xd0] sm:$0xff]
                  %5724 = vst [vmem:[%s5670 + $0x1a0] sm:$0xff] %v5723
                  %v5725 = vld [vmem:[%s5669 + $0xd8] sm:$0xff]
                  %5726 = vst [vmem:[%s5670 + $0x1b0] sm:$0xff] %v5725
                  %v5727 = vld [vmem:[%s5669 + $0xe0] sm:$0xff]
                  %5728 = vst [vmem:[%s5670 + $0x1c0] sm:$0xff] %v5727
                  %v5729 = vld [vmem:[%s5669 + $0xe8] sm:$0xff]
                  %5730 = vst [vmem:[%s5670 + $0x1d0] sm:$0xff] %v5729
                  %v5731 = vld [vmem:[%s5669 + $0xf0] sm:$0xff]
                  %5732 = vst [vmem:[%s5670 + $0x1e0] sm:$0xff] %v5731
                  %v5733 = vld [vmem:[%s5669 + $0xf8] sm:$0xff]
                  %5734 = vst [vmem:[%s5670 + $0x1f0] sm:$0xff] %v5733
                $region146: #{swin_block_forward.1} parent=140 // loop_footer
                  %s5668 = sadd.s32 1, %s5664
                $region147: #{swin_block_forward.1} parent=140 // loop_footer_branch
                  %5663 = sbr.rel target = $region143
                $region148: #{swin_block_forward.1} parent=140 // loop_exit
                  _
              $region141: #{swin_block_forward.1} parent=125 // pred_fallthru
                _
              // Predicated region
              $region149: #{swin_block_forward.1} parent=125 // pred_check
                _
              $region150: #{swin_block_forward.1} parent=125 // pred_check_branch
                %5736 = sbr.rel target = $region152
              $region151: #{swin_block_forward.1} parent=125 // pred_region
                _
              $region152: #{swin_block_forward.1} parent=125 // pred_fallthru
                _
            $region126: #{swin_block_forward.1} parent=121 // pred_fallthru
              _
            // Predicated region
            $region127: #{swin_block_forward.1} parent=121 // pred_check
              _
            $region128: #{swin_block_forward.1} parent=121 // pred_check_branch
              %5587 = sbr.rel target = $region130
            $region129: #{swin_block_forward.1} parent=121 // pred_region
              loop: start=0, step=1, limit=1
              $region131: #{swin_block_forward.1} parent=129 // loop_pre_header
                _
              $region132: #{swin_block_forward.1} parent=129 // loop_header
                %s5590 = sphi 0, %s5594
                %p5591 = scmp.ge.s32.totalorder %s5590, 1
                %s5595 = sphi %s5573, %s5573
                %s5596 = sphi %s5581, %s5581
              $region133: #{swin_block_forward.1} parent=129 // loop_header_branch
                %5593 = sbr.rel (%p5591) target = $region137
              $region134: #{swin_block_forward.1} parent=129 // loop_body
                %v5597 = vld [vmem:[%s5595] sm:$0xff]
                %5598 = vst [vmem:[%s5596] sm:$0xff] %v5597
                %v5599 = vld [vmem:[%s5595 + $0x8] sm:$0xff]
                %5600 = vst [vmem:[%s5596 + $0x10] sm:$0xff] %v5599
                %v5601 = vld [vmem:[%s5595 + $0x10] sm:$0xff]
                %5602 = vst [vmem:[%s5596 + $0x20] sm:$0xff] %v5601
                %v5603 = vld [vmem:[%s5595 + $0x18] sm:$0xff]
                %5604 = vst [vmem:[%s5596 + $0x30] sm:$0xff] %v5603
                %v5605 = vld [vmem:[%s5595 + $0x20] sm:$0xff]
                %5606 = vst [vmem:[%s5596 + $0x40] sm:$0xff] %v5605
                %v5607 = vld [vmem:[%s5595 + $0x28] sm:$0xff]
                %5608 = vst [vmem:[%s5596 + $0x50] sm:$0xff] %v5607
                %v5609 = vld [vmem:[%s5595 + $0x30] sm:$0xff]
                %5610 = vst [vmem:[%s5596 + $0x60] sm:$0xff] %v5609
                %v5611 = vld [vmem:[%s5595 + $0x38] sm:$0xff]
                %5612 = vst [vmem:[%s5596 + $0x70] sm:$0xff] %v5611
                %v5613 = vld [vmem:[%s5595 + $0x40] sm:$0xff]
                %5614 = vst [vmem:[%s5596 + $0x80] sm:$0xff] %v5613
                %v5615 = vld [vmem:[%s5595 + $0x48] sm:$0xff]
                %5616 = vst [vmem:[%s5596 + $0x90] sm:$0xff] %v5615
                %v5617 = vld [vmem:[%s5595 + $0x50] sm:$0xff]
                %5618 = vst [vmem:[%s5596 + $0xa0] sm:$0xff] %v5617
                %v5619 = vld [vmem:[%s5595 + $0x58] sm:$0xff]
                %5620 = vst [vmem:[%s5596 + $0xb0] sm:$0xff] %v5619
                %v5621 = vld [vmem:[%s5595 + $0x60] sm:$0xff]
                %5622 = vst [vmem:[%s5596 + $0xc0] sm:$0xff] %v5621
                %v5623 = vld [vmem:[%s5595 + $0x68] sm:$0xff]
                %5624 = vst [vmem:[%s5596 + $0xd0] sm:$0xff] %v5623
                %v5625 = vld [vmem:[%s5595 + $0x70] sm:$0xff]
                %5626 = vst [vmem:[%s5596 + $0xe0] sm:$0xff] %v5625
                %v5627 = vld [vmem:[%s5595 + $0x78] sm:$0xff]
                %5628 = vst [vmem:[%s5596 + $0xf0] sm:$0xff] %v5627
                %v5629 = vld [vmem:[%s5595 + $0x80] sm:$0xff]
                %5630 = vst [vmem:[%s5596 + $0x100] sm:$0xff] %v5629
                %v5631 = vld [vmem:[%s5595 + $0x88] sm:$0xff]
                %5632 = vst [vmem:[%s5596 + $0x110] sm:$0xff] %v5631
                %v5633 = vld [vmem:[%s5595 + $0x90] sm:$0xff]
                %5634 = vst [vmem:[%s5596 + $0x120] sm:$0xff] %v5633
                %v5635 = vld [vmem:[%s5595 + $0x98] sm:$0xff]
                %5636 = vst [vmem:[%s5596 + $0x130] sm:$0xff] %v5635
                %v5637 = vld [vmem:[%s5595 + $0xa0] sm:$0xff]
                %5638 = vst [vmem:[%s5596 + $0x140] sm:$0xff] %v5637
                %v5639 = vld [vmem:[%s5595 + $0xa8] sm:$0xff]
                %5640 = vst [vmem:[%s5596 + $0x150] sm:$0xff] %v5639
                %v5641 = vld [vmem:[%s5595 + $0xb0] sm:$0xff]
                %5642 = vst [vmem:[%s5596 + $0x160] sm:$0xff] %v5641
                %v5643 = vld [vmem:[%s5595 + $0xb8] sm:$0xff]
                %5644 = vst [vmem:[%s5596 + $0x170] sm:$0xff] %v5643
                %v5645 = vld [vmem:[%s5595 + $0xc0] sm:$0xff]
                %5646 = vst [vmem:[%s5596 + $0x180] sm:$0xff] %v5645
                %v5647 = vld [vmem:[%s5595 + $0xc8] sm:$0xff]
                %5648 = vst [vmem:[%s5596 + $0x190] sm:$0xff] %v5647
                %v5649 = vld [vmem:[%s5595 + $0xd0] sm:$0xff]
                %5650 = vst [vmem:[%s5596 + $0x1a0] sm:$0xff] %v5649
                %v5651 = vld [vmem:[%s5595 + $0xd8] sm:$0xff]
                %5652 = vst [vmem:[%s5596 + $0x1b0] sm:$0xff] %v5651
                %v5653 = vld [vmem:[%s5595 + $0xe0] sm:$0xff]
                %5654 = vst [vmem:[%s5596 + $0x1c0] sm:$0xff] %v5653
                %v5655 = vld [vmem:[%s5595 + $0xe8] sm:$0xff]
                %5656 = vst [vmem:[%s5596 + $0x1d0] sm:$0xff] %v5655
                %v5657 = vld [vmem:[%s5595 + $0xf0] sm:$0xff]
                %5658 = vst [vmem:[%s5596 + $0x1e0] sm:$0xff] %v5657
                %v5659 = vld [vmem:[%s5595 + $0xf8] sm:$0xff]
                %5660 = vst [vmem:[%s5596 + $0x1f0] sm:$0xff] %v5659
              $region135: #{swin_block_forward.1} parent=129 // loop_footer
                %s5594 = sadd.s32 1, %s5590
              $region136: #{swin_block_forward.1} parent=129 // loop_footer_branch
                %5589 = sbr.rel target = $region132
              $region137: #{swin_block_forward.1} parent=129 // loop_exit
                _
            $region130: #{swin_block_forward.1} parent=121 // pred_fallthru
              _
          $region122: #{swin_block_forward.1} parent=117 // pred_fallthru
            _
          %5737 = vnop
        $region118: #{swin_block_forward.1} parent=109 // pred_fallthru
          _
      $region110: #{swin_block_forward.1} parent=5 // pred_fallthru
        _
      %p5738 = scmp.le.s32.totalorder 2, %s20
      // Predicated region
      $region153: #{swin_block_forward.1} parent=5 // pred_check
        %p5739 = pneg %p5738
      $region154: #{swin_block_forward.1} parent=5 // pred_check_branch
        %5741 = sbr.rel (%p5739) target = $region156
      $region155: #{swin_block_forward.1} parent=5 // pred_region
        %s5742 = ssub.s32 %s20, 2
        // Predicated region
        $region157: #{swin_block_forward.1} parent=155 // pred_check
          %p5743 = pneg %p364
        $region158: #{swin_block_forward.1} parent=155 // pred_check_branch
          %5745 = sbr.rel (%p5743) target = $region160
        $region159: #{swin_block_forward.1} parent=155 // pred_region
          %s5746 = sand.u32 %s349, 1
          %s5747 = sand.u32 %s349, 1
          %s5748 = smul.addr %s5747, 256
          %s5749 = scalar_lea.vmem [#allocation3], %s5748
        $region160: #{swin_block_forward.1} parent=155 // pred_fallthru
          _
      $region156: #{swin_block_forward.1} parent=5 // pred_fallthru
        _
    $region6: #{swin_block_forward.1} parent=1 // loop_footer
      %s24 = sadd.s32 1, %s20
    $region7: #{swin_block_forward.1} parent=1 // loop_footer_branch
      %19 = sbr.rel target = $region3
    $region8: #{swin_block_forward.1} parent=1 // loop_exit
      _

</llo_original>
